<compile_context>
chip_gen: v5e
topology: v5e:2x2
jax: 0.10.0
libtpu: 0.0.40
codegen_flags: <defaults>
</compile_context>

<pallas_src>
import functools

import jax
import jax.numpy as jnp
from jax import lax
from jax.experimental import pallas as pl
from jax.experimental.pallas import tpu as pltpu


# =========================== helpers ===========================

def _round_up(x, m):
    return (x + m - 1) // m * m


_TILE_CACHE = None


def _pick_tiles():
    """Generation-aware matmul tiles: smaller K tile on small-VMEM parts (v7x)."""
    global _TILE_CACHE
    if _TILE_CACHE is None:
        try:
            vmem = pltpu.get_tpu_info().vmem_capacity_bytes
        except Exception:
            vmem = 64 << 20
        tk = 2048 if vmem >= (100 << 20) else 1024
        _TILE_CACHE = (256, 256, tk)
    return _TILE_CACHE


def _sigmoid(v):
    # exp -> EUP, approx reciprocal -> EUP; keeps the divide off the VALU slot.
    return pl.reciprocal(1.0 + jnp.exp(-v), approx=True)


# =========================== tiled matmul + bias (+clip) kernel ===========================

def _mm_bias_kernel(x_ref, w_ref, b_ref, o_ref, acc_ref, *, clip_lo, clip_hi):
    @pl.when(pl.program_id(2) == 0)
    def _():
        acc_ref[...] = jnp.zeros_like(acc_ref)

    acc_ref[...] += jnp.dot(x_ref[...], w_ref[...],
                            preferred_element_type=jnp.float32)

    @pl.when(pl.program_id(2) == pl.num_programs(2) - 1)
    def _():
        out = acc_ref[...] + b_ref[...]
        if clip_lo is not None:
            out = jnp.clip(out, clip_lo, clip_hi)
        o_ref[...] = out.astype(o_ref.dtype)


def mm_bias(x, w, bias, clip=None, out_dtype=jnp.float32):
    """out = clip(x @ w + bias); bf16 operands, f32 accumulation, tiled over M/N/K."""
    M, K = x.shape
    _, N = w.shape
    TM, TN, TK = _pick_tiles()
    tm = min(TM, _round_up(M, 8))
    tn = min(TN, _round_up(N, 128))
    tk = min(TK, _round_up(K, 128))
    Mp, Np, Kp = _round_up(M, tm), _round_up(N, tn), _round_up(K, tk)

    xp = jnp.zeros((Mp, Kp), jnp.bfloat16).at[:M, :K].set(x.astype(jnp.bfloat16))
    wp = jnp.zeros((Kp, Np), jnp.bfloat16).at[:K, :N].set(w.astype(jnp.bfloat16))
    bp = jnp.zeros((1, Np), jnp.float32).at[0, :N].set(bias.astype(jnp.float32))

    clip_lo, clip_hi = (None, None) if clip is None else clip
    kernel = functools.partial(_mm_bias_kernel, clip_lo=clip_lo, clip_hi=clip_hi)

    out = pl.pallas_call(
        kernel,
        out_shape=jax.ShapeDtypeStruct((Mp, Np), out_dtype),
        grid=(Mp // tm, Np // tn, Kp // tk),
        in_specs=[
            pl.BlockSpec((tm, tk), lambda i, j, k: (i, k)),
            pl.BlockSpec((tk, tn), lambda i, j, k: (k, j)),
            pl.BlockSpec((1, tn), lambda i, j, k: (0, j)),
        ],
        out_specs=pl.BlockSpec((tm, tn), lambda i, j, k: (i, j)),
        scratch_shapes=[pltpu.VMEM((tm, tn), jnp.float32)],
        compiler_params=pltpu.CompilerParams(
            dimension_semantics=("parallel", "parallel", "arbitrary")),
    )(xp, wp, bp)
    return out[:M, :N]


# =========================== GRU scan kernel (both directions, chunked time) ===========================

def _gru_scan_kernel(gx_ref, mask_ref, whh_ref, bhh_ref, o_ref, h_ref, *,
                     t_chunk, h_pad):
    @pl.when(pl.program_id(0) == 0)
    def _():
        h_ref[...] = jnp.zeros_like(h_ref)

    whh = whh_ref[...]            # (2, H_pad, 3*H_pad) bf16
    bhh = bhh_ref[...]            # (2, 1, 3*H_pad)     f32

    def step(tc, h):
        gx = gx_ref[tc]           # (2, Bp, 3*H_pad) f32 (already includes b_ih)
        m = mask_ref[tc]          # (1, Bp, 1) — 1.0 where t < length
        gh = jnp.einsum('dbh,dhk->dbk', h.astype(jnp.bfloat16), whh,
                        preferred_element_type=jnp.float32) + bhh
        xr = gx[..., 0 * h_pad:1 * h_pad]
        xz = gx[..., 1 * h_pad:2 * h_pad]
        xn = gx[..., 2 * h_pad:3 * h_pad]
        hr = gh[..., 0 * h_pad:1 * h_pad]
        hz = gh[..., 1 * h_pad:2 * h_pad]
        hn = gh[..., 2 * h_pad:3 * h_pad]
        r = _sigmoid(xr + hr)
        z = _sigmoid(xz + hz)
        n = jnp.tanh(xn + r * hn)
        h_new = (1.0 - z) * n + z * h
        o_ref[tc] = m * h_new                    # zero past sequence end
        return m * h_new + (1.0 - m) * h         # frozen past sequence end

    h_last = lax.fori_loop(0, t_chunk, step, h_ref[...], unroll=True)
    h_ref[...] = h_last


def gru_scan(gx, mask4, whh, bhh, h_pad, t_chunk):
    """gx: (Tp, 2, Bp, 3*H_pad); mask4: (Tp, 1, Bp, 1); whh: (2, H_pad, 3*H_pad)."""
    Tp, D, Bp, G = gx.shape
    kernel = functools.partial(_gru_scan_kernel, t_chunk=t_chunk, h_pad=h_pad)
    return pl.pallas_call(
        kernel,
        out_shape=jax.ShapeDtypeStruct((Tp, D, Bp, h_pad), jnp.float32),
        grid=(Tp // t_chunk,),
        in_specs=[
            pl.BlockSpec((t_chunk, D, Bp, G), lambda i: (i, 0, 0, 0)),
            pl.BlockSpec((t_chunk, 1, Bp, 1), lambda i: (i, 0, 0, 0)),
            pl.BlockSpec((D, h_pad, G), lambda i: (0, 0, 0)),
            pl.BlockSpec((D, 1, G), lambda i: (0, 0, 0)),
        ],
        out_specs=pl.BlockSpec((t_chunk, D, Bp, h_pad), lambda i: (i, 0, 0, 0)),
        scratch_shapes=[pltpu.VMEM((D, Bp, h_pad), jnp.float32)],
        compiler_params=pltpu.CompilerParams(dimension_semantics=("arbitrary",)),
    )(gx, mask4, whh, bhh)


# =========================== FC + log_softmax kernel ===========================

def _fc_logsoftmax_kernel(x_ref, w_ref, b_ref, o_ref, *, n_valid):
    logits = jnp.dot(x_ref[...], w_ref[...],
                     preferred_element_type=jnp.float32) + b_ref[...]
    col = lax.broadcasted_iota(jnp.int32, logits.shape, 1)
    logits = jnp.where(col < n_valid, logits, -1e30)
    m = jnp.max(logits, axis=-1, keepdims=True)
    s = logits - m
    lse = jnp.log(jnp.sum(jnp.exp(s), axis=-1, keepdims=True))
    o_ref[...] = s - lse


def fc_logsoftmax(x, w, b, n_valid):
    """x: (M, H_pad) -> log_softmax(x @ w + b) over the first n_valid columns."""
    M, K = x.shape
    _, N = w.shape                                   # N = V_pad (multiple of 128)
    tm = min(256, _round_up(M, 8))
    Mp = _round_up(M, tm)
    xp = x if Mp == M else jnp.pad(x, ((0, Mp - M), (0, 0)))
    kernel = functools.partial(_fc_logsoftmax_kernel, n_valid=n_valid)
    out = pl.pallas_call(
        kernel,
        out_shape=jax.ShapeDtypeStruct((Mp, N), jnp.float32),
        grid=(Mp // tm,),
        in_specs=[
            pl.BlockSpec((tm, K), lambda i: (i, 0)),
            pl.BlockSpec((K, N), lambda i: (0, 0)),
            pl.BlockSpec((1, N), lambda i: (0, 0)),
        ],
        out_specs=pl.BlockSpec((tm, N), lambda i: (i, 0)),
        compiler_params=pltpu.CompilerParams(dimension_semantics=("parallel",)),
    )(xp.astype(jnp.bfloat16), w.astype(jnp.bfloat16), b.reshape(1, N))
    return out[:M]


# =========================== glue (JAX) ===========================

def _im2col(x, kh, kw, sh, sw, ph, pw):
    """x: (B, C, H, W) NCHW -> patches (B*OH*OW, C*kh*kw), feature order (C, kh, kw)."""
    B, C, H, W = x.shape
    OH = (H + 2 * ph - kh) // sh + 1
    OW = (W + 2 * pw - kw) // sw + 1
    xp = jnp.pad(x, ((0, 0), (0, 0), (ph, ph), (pw, pw)))
    i_idx = (jnp.arange(OH) * sh)[:, None] + jnp.arange(kh)[None, :]      # (OH, kh)
    j_idx = (jnp.arange(OW) * sw)[:, None] + jnp.arange(kw)[None, :]      # (OW, kw)
    patches = xp[:, :, i_idx[:, :, None, None], j_idx[None, None, :, :]]  # (B,C,OH,kh,OW,kw)
    patches = patches.transpose(0, 2, 4, 1, 3, 5)                         # (B,OH,OW,C,kh,kw)
    return patches.reshape(B * OH * OW, C * kh * kw), OH, OW


def conv_bn_hardtanh(x, p, stride, padding):
    """Conv2d + BatchNorm2d(eval, folded) + Hardtanh(0, 20) via tiled Pallas matmul."""
    B = x.shape[0]
    patches, OH, OW = _im2col(x, p["kh"], p["kw"], stride[0], stride[1],
                              padding[0], padding[1])
    out = mm_bias(patches, p["w"], p["b"], clip=(0.0, 20.0), out_dtype=jnp.bfloat16)
    return out.reshape(B, OH, OW, -1).transpose(0, 3, 1, 2)               # (B, OC, OH, OW)


def gru_block(x, lengths, layer, h_pad, t_chunk=8):
    """Bidirectional GRU (packed-sequence semantics via masking), fwd+bwd summed.

    x: (Bp, T, F) with Bp a multiple of 8; returns (Bp, T, H_pad)."""
    Bp, T, F = x.shape

    # One fused matmul for both directions' input projections (BN already folded in).
    gx = mm_bias(x.reshape(Bp * T, F), layer["w_in_cat"], layer["b_in_cat"])
    gx = gx.reshape(Bp, T, 2, -1)
    gx_f = gx[:, :, 0]                                                    # (Bp, T, 3H_pad)
    gx_b = gx[:, :, 1]

    # per-sequence time reversal (within valid length) for the backward stream
    t_range = jnp.arange(T)
    rev_idx = jnp.clip(lengths[:, None] - 1 - t_range[None, :], 0, T - 1)  # (Bp, T)
    gx_b = jnp.take_along_axis(gx_b, rev_idx[:, :, None], axis=1)

    gx_db = jnp.stack([gx_f, gx_b], axis=0).transpose(2, 0, 1, 3)          # (T, 2, Bp, 3H_pad)

    mask_tb = (t_range[:, None] < lengths[None, :]).astype(jnp.float32)    # (T, Bp)

    Tp = _round_up(T, t_chunk)
    gx_pad = gx_db if Tp == T else jnp.pad(gx_db, ((0, Tp - T), (0, 0), (0, 0), (0, 0)))
    mask_pad = mask_tb if Tp == T else jnp.pad(mask_tb, ((0, Tp - T), (0, 0)))
    mask4 = mask_pad[:, None, :, None]                                     # (Tp, 1, Bp, 1)

    out = gru_scan(gx_pad, mask4, layer["whh"], layer["bhh"], h_pad, t_chunk)

    out_f = out[:T, 0].transpose(1, 0, 2)                                  # (Bp, T, H_pad)
    out_b = out[:T, 1].transpose(1, 0, 2)
    out_b = jnp.take_along_axis(out_b, rev_idx[:, :, None], axis=1)        # un-reverse
    out_b = out_b * mask_tb.T[:, :, None]

    return out_f + out_b


def deepspeech2_forward(prep, spectrogram, spectrogram_length):
    h_pad = prep["H_pad"]
    x = spectrogram[:, None, :, :].astype(jnp.bfloat16)                    # (B, 1, F, T)
    x = conv_bn_hardtanh(x, prep["conv1"], stride=(2, 2), padding=(20, 5))
    x = conv_bn_hardtanh(x, prep["conv2"], stride=(2, 1), padding=(10, 5))
    out_len = spectrogram_length // 2                                      # ConvBlock.scaling

    B, C, F2, T2 = x.shape
    x = x.reshape(B, C * F2, T2).transpose(0, 2, 1)                        # (B, T2, C*F2)

    # pad batch to a multiple of 8 sublanes; padded rows have length 0 -> zero outputs
    B_pad = _round_up(B, 8)
    if B_pad != B:
        x = jnp.pad(x, ((0, B_pad - B), (0, 0), (0, 0)))
        lengths = jnp.pad(out_len, (0, B_pad - B))
    else:
        lengths = out_len

    for layer in prep["gru"]:
        x = gru_block(x, lengths, layer, h_pad)

    M = B_pad * T2
    lp = fc_logsoftmax(x.reshape(M, h_pad), prep["fc_w"], prep["fc_b"], prep["V"])
    lp = lp.reshape(B_pad, T2, -1)[:B, :, :prep["V"]]
    return lp, out_len


# =========================== parameters ===========================

def make_params(key, n_features, n_tokens, n_conv_layers=2, n_rnn_layers=2, fc_hidden=16):
    """Raw (PyTorch-shaped) parameters."""
    assert n_conv_layers == 2  # this script implements the default 2-layer conv block
    H = fc_hidden * 2
    rnn_in = (n_features // (2 ** n_conv_layers)) * 32

    keys = iter(jax.random.split(key, 128))

    def nrm(shape, s=0.1):
        return (jax.random.normal(next(keys), shape, jnp.float32) * s).astype(jnp.float32)

    def bn_params(c):
        gamma = 1.0 + nrm((c,))
        beta = nrm((c,))
        scale = gamma / jnp.sqrt(1.0 + 1e-5)          # running_var = 1
        shift = beta                                   # running_mean = 0
        return dict(scale=scale, shift=shift)

    params = {"H": H, "rnn_in": rnn_in}
    params["conv1"] = dict(w=nrm((32, 1, 41, 11), 0.05), b=nrm((32,)),
                           gamma=1.0 + nrm((32,)), beta=nrm((32,)),
                           rm=jnp.zeros((32,), jnp.float32), rv=jnp.ones((32,), jnp.float32))
    params["conv2"] = dict(w=nrm((32, 32, 21, 11), 0.02), b=nrm((32,)),
                           gamma=1.0 + nrm((32,)), beta=nrm((32,)),
                           rm=jnp.zeros((32,), jnp.float32), rv=jnp.ones((32,), jnp.float32))

    grus, bn_t = [], []
    in_sz = rnn_in
    for layer in range(n_rnn_layers):
        def direction(isz):
            return dict(w_ih=nrm((3 * H, isz)), w_hh=nrm((3 * H, H)),
                        b_ih=nrm((3 * H,)), b_hh=nrm((3 * H,)))
        if layer > 0:
            bn_t.append(bn_params(H))
        grus.append(dict(fwd=direction(in_sz), bwd=direction(in_sz)))
        in_sz = H
    params["gru"] = grus
    params["bn_t"] = bn_t
    params["bn_f"] = bn_params(H)
    params["fc_w"] = nrm((n_tokens, H))
    return params


def _pad_gate_cols(w, H, H_pad):
    """w: (K, 3H) -> (K, 3*H_pad) with each gate's columns placed at g*H_pad."""
    K = w.shape[0]
    out = jnp.zeros((K, 3 * H_pad), jnp.float32)
    for g in range(3):
        out = out.at[:, g * H_pad:g * H_pad + H].set(w[:, g * H:(g + 1) * H])
    return out


def _pad_gate_vec(b, H, H_pad):
    out = jnp.zeros((3 * H_pad,), jnp.float32)
    for g in range(3):
        out = out.at[g * H_pad:g * H_pad + H].set(b[g * H:(g + 1) * H])
    return out


def prepare_params(raw, n_tokens):
    """Fold BatchNorms into adjacent weights, pad to lane-dense kernel layouts."""
    H = raw["H"]
    H_pad = _round_up(H, 128)
    prep = {"H": H, "H_pad": H_pad}

    # ---- conv layers: fold BN scale into the weight, everything else into the bias
    for name in ("conv1", "conv2"):
        p = raw[name]
        OC, C, kh, kw = p["w"].shape
        s = p["gamma"] / jnp.sqrt(p["rv"] + 1e-5)
        wmat = p["w"].reshape(OC, C * kh * kw).T * s[None, :]              # (K, OC)
        shift = (p["b"] - p["rm"]) * s + p["beta"]                         # (OC,)
        prep[name] = dict(w=wmat, b=shift, kh=kh, kw=kw)

    # ---- GRU layers: fold preceding BatchNormT into w_ih/b_ih, pad gates to H_pad
    layers = []
    for li, gp in enumerate(raw["gru"]):
        if li == 0:
            s, sh = None, None
        else:
            bn = raw["bn_t"][li - 1]
            s, sh = bn["scale"], bn["shift"]

        def prep_dir(d):
            W = d["w_ih"].T                                                # (in, 3H)
            b_eff = d["b_ih"]
            if s is not None:
                b_eff = b_eff + sh @ W
                W = s[:, None] * W
            Wp = _pad_gate_cols(W, H, H_pad)                               # (in, 3H_pad)
            if li > 0:  # activations carry H_pad features (zero beyond H)
                Wp = jnp.zeros((H_pad, 3 * H_pad), jnp.float32).at[:Wp.shape[0]].set(Wp)
            bp = _pad_gate_vec(b_eff, H, H_pad)
            whh_p = _pad_gate_cols(d["w_hh"].T, H, H_pad)                  # (H, 3H_pad)
            whh_p = jnp.zeros((H_pad, 3 * H_pad), jnp.float32).at[:H].set(whh_p)
            bhh_p = _pad_gate_vec(d["b_hh"], H, H_pad)
            return Wp, bp, whh_p, bhh_p

        Wf, bf, whf, bhf = prep_dir(gp["fwd"])
        Wb, bb, whb, bhb = prep_dir(gp["bwd"])
        layers.append(dict(
            w_in_cat=jnp.concatenate([Wf, Wb], axis=1),                    # (K_in, 6H_pad)
            b_in_cat=jnp.concatenate([bf, bb], axis=0),                    # (6H_pad,)
            whh=jnp.stack([whf, whb], axis=0).astype(jnp.bfloat16),        # (2, H_pad, 3H_pad)
            bhh=jnp.stack([bhf, bhb], axis=0)[:, None, :],                 # (2, 1, 3H_pad)
        ))
    prep["gru"] = layers

    # ---- final BatchNorm1d folded into the FC; vocab padded to 128 lanes
    s, sh = raw["bn_f"]["scale"], raw["bn_f"]["shift"]
    Wfc = raw["fc_w"].T                                                    # (H, V)
    V = Wfc.shape[1]
    V_pad = _round_up(V, 128)
    prep["fc_w"] = jnp.zeros((H_pad, V_pad), jnp.float32).at[:H, :V].set(s[:, None] * Wfc)
    prep["fc_b"] = jnp.zeros((V_pad,), jnp.float32).at[:V].set(sh @ Wfc)
    prep["V"] = V
    return prep


# =========================== main ===========================

if __name__ == "__main__":
    B, n_features, T = 2, 16, 16
    n_tokens = 16
    n_rnn_layers = 2
    fc_hidden = 16

    key = jax.random.PRNGKey(0)
    k_param, k_spec = jax.random.split(key)
    raw_params = make_params(k_param, n_features, n_tokens,
                             n_conv_layers=2, n_rnn_layers=n_rnn_layers,
                             fc_hidden=fc_hidden)
    prep = prepare_params(raw_params, n_tokens)

    spectrogram = jax.random.normal(k_spec, (B, n_features, T), jnp.float32)
    # keep at least one full-length sequence so max(out_len) == conv output T
    spectrogram_length = jnp.array([16, 12], dtype=jnp.int32)

    fwd = jax.jit(functools.partial(deepspeech2_forward, prep))
    log_probs, log_probs_length = fwd(spectrogram, spectrogram_length)
    jax.block_until_ready((log_probs, log_probs_length))

    assert log_probs.shape == (B, T // 2, n_tokens), log_probs.shape
    assert log_probs_length.shape == (B,)
    assert bool(jnp.all(jnp.isfinite(log_probs)))
    # log_softmax sanity: rows sum to ~1 in prob space
    assert bool(jnp.allclose(jnp.exp(log_probs).sum(-1), 1.0, atol=1e-4))

    print("KERNEL_OK")
</pallas_src>

<mosaic_0001>
module attributes {stable_mosaic.version = 11 : i64} {
  func.func @_mm_bias_kernel(%arg0: i32, %arg1: i32, %arg2: i32, %arg3: memref<128x512xbf16, #tpu.memory_space<vmem>>, %arg4: memref<512x128xbf16, #tpu.memory_space<vmem>>, %arg5: memref<1x128xf32, #tpu.memory_space<vmem>>, %arg6: memref<128x128xbf16, #tpu.memory_space<vmem>>, %arg7: memref<128x128xf32, #tpu.memory_space<vmem>>) attributes {dimension_semantics = [#tpu.dimension_semantics<parallel>, #tpu.dimension_semantics<parallel>, #tpu.dimension_semantics<arbitrary>], iteration_bounds = array<i64: 1, 1, 1>, scalar_prefetch = 0 : i64, scratch_operands = 1 : i64, tpu.core_type = #tpu.core_type<tc>, window_params = [{transform_indices = @transform_0, window_bounds = array<i64: 128, 512>}, {transform_indices = @transform_1, window_bounds = array<i64: 512, 128>}, {transform_indices = @transform_2, window_bounds = array<i64: 1, 128>}, {transform_indices = @transform_3, window_bounds = array<i64: 128, 128>}]} {
    %c0_i32 = arith.constant 0 : i32
    %0 = arith.cmpi eq, %arg2, %c0_i32 : i32
    %1 = arith.extui %0 : i1 to i32
    %c0_i32_0 = arith.constant 0 : i32
    %2 = arith.cmpi ne, %1, %c0_i32_0 : i32
    scf.if %2 {
      %cst_10 = arith.constant 0.000000e+00 : f32
      %12 = vector.broadcast %cst_10 : f32 to vector<128x128xf32>
      %c0_11 = arith.constant 0 : index
      %c0_12 = arith.constant 0 : index
      %13 = vector.load %arg7[%c0_11, %c0_12] : memref<128x128xf32, #tpu.memory_space<vmem>>, vector<128x128xf32>
      tpu.vector_store %arg7[%c0_11, %c0_12], %12 {strides = array<i32>} : memref<128x128xf32, #tpu.memory_space<vmem>>, vector<128x128xf32>,
    } else {
    }
    %c0 = arith.constant 0 : index
    %c0_1 = arith.constant 0 : index
    %3 = vector.load %arg7[%c0, %c0_1] : memref<128x128xf32, #tpu.memory_space<vmem>>, vector<128x128xf32>
    %c0_2 = arith.constant 0 : index
    %c0_3 = arith.constant 0 : index
    %4 = vector.load %arg3[%c0_2, %c0_3] : memref<128x512xbf16, #tpu.memory_space<vmem>>, vector<128x512xbf16>
    %c0_4 = arith.constant 0 : index
    %c0_5 = arith.constant 0 : index
    %5 = vector.load %arg4[%c0_4, %c0_5] : memref<512x128xbf16, #tpu.memory_space<vmem>>, vector<512x128xbf16>
    %cst = arith.constant dense<0.000000e+00> : vector<128x128xf32>
    %6 = tpu.matmul %4, %5, %cst {dimension_numbers = #tpu.dot_dimension_numbers<[1], [0], [0], [1], [0, 0, 1, 1], [], []>} : vector<128x512xbf16>, vector<512x128xbf16>, vector<128x128xf32> -> vector<128x128xf32>
    %7 = arith.addf %3, %6 : vector<128x128xf32>
    %c0_6 = arith.constant 0 : index
    %c0_7 = arith.constant 0 : index
    %8 = vector.load %arg7[%c0_6, %c0_7] : memref<128x128xf32, #tpu.memory_space<vmem>>, vector<128x128xf32>
    tpu.vector_store %arg7[%c0_6, %c0_7], %7 {strides = array<i32>} : memref<128x128xf32, #tpu.memory_space<vmem>>, vector<128x128xf32>,
    %c0_i32_8 = arith.constant 0 : i32
    %9 = arith.cmpi eq, %arg2, %c0_i32_8 : i32
    %10 = arith.extui %9 : i1 to i32
    %c0_i32_9 = arith.constant 0 : i32
    %11 = arith.cmpi ne, %10, %c0_i32_9 : i32
    scf.if %11 {
      %c0_10 = arith.constant 0 : index
      %c0_11 = arith.constant 0 : index
      %12 = vector.load %arg7[%c0_10, %c0_11] : memref<128x128xf32, #tpu.memory_space<vmem>>, vector<128x128xf32>
      %c0_12 = arith.constant 0 : index
      %c0_13 = arith.constant 0 : index
      %13 = vector.load %arg5[%c0_12, %c0_13] : memref<1x128xf32, #tpu.memory_space<vmem>>, vector<1x128xf32>
      %14 = vector.broadcast %13 : vector<1x128xf32> to vector<128x128xf32>
      %15 = arith.addf %12, %14 : vector<128x128xf32>
      %cst_14 = arith.constant 0.000000e+00 : f32
      %cst_15 = arith.constant 2.000000e+01 : f32
      %16 = vector.broadcast %cst_14 : f32 to vector<128x128xf32>
      %17 = arith.maximumf %16, %15 : vector<128x128xf32>
      %18 = vector.broadcast %cst_15 : f32 to vector<128x128xf32>
      %19 = arith.minimumf %18, %17 : vector<128x128xf32>
      %20 = arith.truncf %19 : vector<128x128xf32> to vector<128x128xbf16>
      %c0_16 = arith.constant 0 : index
      %c0_17 = arith.constant 0 : index
      %21 = vector.load %arg6[%c0_16, %c0_17] : memref<128x128xbf16, #tpu.memory_space<vmem>>, vector<128x128xbf16>
      tpu.vector_store %arg6[%c0_16, %c0_17], %20 {strides = array<i32>} : memref<128x128xbf16, #tpu.memory_space<vmem>>, vector<128x128xbf16>,
    } else {
    }
    return
  }
  func.func @transform_0(%arg0: i32, %arg1: i32, %arg2: i32) -> (i32, i32) {
    %c0_i32 = arith.constant 0 : i32
    return %arg0, %arg2 : i32, i32
  }
  func.func @transform_1(%arg0: i32, %arg1: i32, %arg2: i32) -> (i32, i32) {
    %c0_i32 = arith.constant 0 : i32
    return %arg2, %arg1 : i32, i32
  }
  func.func @transform_2(%arg0: i32, %arg1: i32, %arg2: i32) -> (i32, i32) {
    %c0_i32 = arith.constant 0 : i32
    %c0_i32_0 = arith.constant 0 : i32
    return %c0_i32, %arg1 : i32, i32
  }
  func.func @transform_3(%arg0: i32, %arg1: i32, %arg2: i32) -> (i32, i32) {
    %c0_i32 = arith.constant 0 : i32
    return %arg0, %arg1 : i32, i32
  }
}

module attributes {stable_mosaic.version = 11 : i64} {
  func.func @_mm_bias_kernel(%arg0: i32, %arg1: i32, %arg2: i32, %arg3: memref<64x1024xbf16, #tpu.memory_space<vmem>>, %arg4: memref<1024x128xbf16, #tpu.memory_space<vmem>>, %arg5: memref<1x128xf32, #tpu.memory_space<vmem>>, %arg6: memref<64x128xbf16, #tpu.memory_space<vmem>>, %arg7: memref<64x128xf32, #tpu.memory_space<vmem>>) attributes {dimension_semantics = [#tpu.dimension_semantics<parallel>, #tpu.dimension_semantics<parallel>, #tpu.dimension_semantics<arbitrary>], iteration_bounds = array<i64: 1, 1, 8>, scalar_prefetch = 0 : i64, scratch_operands = 1 : i64, tpu.core_type = #tpu.core_type<tc>, window_params = [{transform_indices = @transform_0, window_bounds = array<i64: 64, 1024>}, {transform_indices = @transform_1, window_bounds = array<i64: 1024, 128>}, {transform_indices = @transform_2, window_bounds = array<i64: 1, 128>}, {transform_indices = @transform_3, window_bounds = array<i64: 64, 128>}]} {
    %c0_i32 = arith.constant 0 : i32
    %0 = arith.cmpi eq, %arg2, %c0_i32 : i32
    %1 = arith.extui %0 : i1 to i32
    %c0_i32_0 = arith.constant 0 : i32
    %2 = arith.cmpi ne, %1, %c0_i32_0 : i32
    scf.if %2 {
      %cst_9 = arith.constant 0.000000e+00 : f32
      %12 = vector.broadcast %cst_9 : f32 to vector<64x128xf32>
      %c0_10 = arith.constant 0 : index
      %c0_11 = arith.constant 0 : index
      %13 = vector.load %arg7[%c0_10, %c0_11] : memref<64x128xf32, #tpu.memory_space<vmem>>, vector<64x128xf32>
      tpu.vector_store %arg7[%c0_10, %c0_11], %12 {strides = array<i32>} : memref<64x128xf32, #tpu.memory_space<vmem>>, vector<64x128xf32>,
    } else {
    }
    %c0 = arith.constant 0 : index
    %c0_1 = arith.constant 0 : index
    %3 = vector.load %arg7[%c0, %c0_1] : memref<64x128xf32, #tpu.memory_space<vmem>>, vector<64x128xf32>
    %c0_2 = arith.constant 0 : index
    %c0_3 = arith.constant 0 : index
    %4 = vector.load %arg3[%c0_2, %c0_3] : memref<64x1024xbf16, #tpu.memory_space<vmem>>, vector<64x1024xbf16>
    %c0_4 = arith.constant 0 : index
    %c0_5 = arith.constant 0 : index
    %5 = vector.load %arg4[%c0_4, %c0_5] : memref<1024x128xbf16, #tpu.memory_space<vmem>>, vector<1024x128xbf16>
    %cst = arith.constant dense<0.000000e+00> : vector<64x128xf32>
    %6 = tpu.matmul %4, %5, %cst {dimension_numbers = #tpu.dot_dimension_numbers<[1], [0], [0], [1], [0, 0, 1, 1], [], []>} : vector<64x1024xbf16>, vector<1024x128xbf16>, vector<64x128xf32> -> vector<64x128xf32>
    %7 = arith.addf %3, %6 : vector<64x128xf32>
    %c0_6 = arith.constant 0 : index
    %c0_7 = arith.constant 0 : index
    %8 = vector.load %arg7[%c0_6, %c0_7] : memref<64x128xf32, #tpu.memory_space<vmem>>, vector<64x128xf32>
    tpu.vector_store %arg7[%c0_6, %c0_7], %7 {strides = array<i32>} : memref<64x128xf32, #tpu.memory_space<vmem>>, vector<64x128xf32>,
    %c7_i32 = arith.constant 7 : i32
    %9 = arith.cmpi eq, %arg2, %c7_i32 : i32
    %10 = arith.extui %9 : i1 to i32
    %c0_i32_8 = arith.constant 0 : i32
    %11 = arith.cmpi ne, %10, %c0_i32_8 : i32
    scf.if %11 {
      %c0_9 = arith.constant 0 : index
      %c0_10 = arith.constant 0 : index
      %12 = vector.load %arg7[%c0_9, %c0_10] : memref<64x128xf32, #tpu.memory_space<vmem>>, vector<64x128xf32>
      %c0_11 = arith.constant 0 : index
      %c0_12 = arith.constant 0 : index
      %13 = vector.load %arg5[%c0_11, %c0_12] : memref<1x128xf32, #tpu.memory_space<vmem>>, vector<1x128xf32>
      %14 = vector.broadcast %13 : vector<1x128xf32> to vector<64x128xf32>
      %15 = arith.addf %12, %14 : vector<64x128xf32>
      %cst_13 = arith.constant 0.000000e+00 : f32
      %cst_14 = arith.constant 2.000000e+01 : f32
      %16 = vector.broadcast %cst_13 : f32 to vector<64x128xf32>
      %17 = arith.maximumf %16, %15 : vector<64x128xf32>
      %18 = vector.broadcast %cst_14 : f32 to vector<64x128xf32>
      %19 = arith.minimumf %18, %17 : vector<64x128xf32>
      %20 = arith.truncf %19 : vector<64x128xf32> to vector<64x128xbf16>
      %c0_15 = arith.constant 0 : index
      %c0_16 = arith.constant 0 : index
      %21 = vector.load %arg6[%c0_15, %c0_16] : memref<64x128xbf16, #tpu.memory_space<vmem>>, vector<64x128xbf16>
      tpu.vector_store %arg6[%c0_15, %c0_16], %20 {strides = array<i32>} : memref<64x128xbf16, #tpu.memory_space<vmem>>, vector<64x128xbf16>,
    } else {
    }
    return
  }
  func.func @transform_0(%arg0: i32, %arg1: i32, %arg2: i32) -> (i32, i32) {
    %c0_i32 = arith.constant 0 : i32
    return %arg0, %arg2 : i32, i32
  }
  func.func @transform_1(%arg0: i32, %arg1: i32, %arg2: i32) -> (i32, i32) {
    %c0_i32 = arith.constant 0 : i32
    return %arg2, %arg1 : i32, i32
  }
  func.func @transform_2(%arg0: i32, %arg1: i32, %arg2: i32) -> (i32, i32) {
    %c0_i32 = arith.constant 0 : i32
    %c0_i32_0 = arith.constant 0 : i32
    return %c0_i32, %arg1 : i32, i32
  }
  func.func @transform_3(%arg0: i32, %arg1: i32, %arg2: i32) -> (i32, i32) {
    %c0_i32 = arith.constant 0 : i32
    return %arg0, %arg1 : i32, i32
  }
}

module attributes {stable_mosaic.version = 11 : i64} {
  func.func @_mm_bias_kernel(%arg0: i32, %arg1: i32, %arg2: i32, %arg3: memref<64x128xbf16, #tpu.memory_space<vmem>>, %arg4: memref<128x256xbf16, #tpu.memory_space<vmem>>, %arg5: memref<1x256xf32, #tpu.memory_space<vmem>>, %arg6: memref<64x256xf32, #tpu.memory_space<vmem>>, %arg7: memref<64x256xf32, #tpu.memory_space<vmem>>) attributes {dimension_semantics = [#tpu.dimension_semantics<parallel>, #tpu.dimension_semantics<parallel>, #tpu.dimension_semantics<arbitrary>], iteration_bounds = array<i64: 1, 3, 1>, scalar_prefetch = 0 : i64, scratch_operands = 1 : i64, tpu.core_type = #tpu.core_type<tc>, window_params = [{transform_indices = @transform_0, window_bounds = array<i64: 64, 128>}, {transform_indices = @transform_1, window_bounds = array<i64: 128, 256>}, {transform_indices = @transform_2, window_bounds = array<i64: 1, 256>}, {transform_indices = @transform_3, window_bounds = array<i64: 64, 256>}]} {
    %c0_i32 = arith.constant 0 : i32
    %0 = arith.cmpi eq, %arg2, %c0_i32 : i32
    %1 = arith.extui %0 : i1 to i32
    %c0_i32_0 = arith.constant 0 : i32
    %2 = arith.cmpi ne, %1, %c0_i32_0 : i32
    scf.if %2 {
      %cst_10 = arith.constant 0.000000e+00 : f32
      %12 = vector.broadcast %cst_10 : f32 to vector<64x256xf32>
      %c0_11 = arith.constant 0 : index
      %c0_12 = arith.constant 0 : index
      %13 = vector.load %arg7[%c0_11, %c0_12] : memref<64x256xf32, #tpu.memory_space<vmem>>, vector<64x256xf32>
      tpu.vector_store %arg7[%c0_11, %c0_12], %12 {strides = array<i32>} : memref<64x256xf32, #tpu.memory_space<vmem>>, vector<64x256xf32>,
    } else {
    }
    %c0 = arith.constant 0 : index
    %c0_1 = arith.constant 0 : index
    %3 = vector.load %arg7[%c0, %c0_1] : memref<64x256xf32, #tpu.memory_space<vmem>>, vector<64x256xf32>
    %c0_2 = arith.constant 0 : index
    %c0_3 = arith.constant 0 : index
    %4 = vector.load %arg3[%c0_2, %c0_3] : memref<64x128xbf16, #tpu.memory_space<vmem>>, vector<64x128xbf16>
    %c0_4 = arith.constant 0 : index
    %c0_5 = arith.constant 0 : index
    %5 = vector.load %arg4[%c0_4, %c0_5] : memref<128x256xbf16, #tpu.memory_space<vmem>>, vector<128x256xbf16>
    %cst = arith.constant dense<0.000000e+00> : vector<64x256xf32>
    %6 = tpu.matmul %4, %5, %cst {dimension_numbers = #tpu.dot_dimension_numbers<[1], [0], [0], [1], [0, 0, 1, 1], [], []>} : vector<64x128xbf16>, vector<128x256xbf16>, vector<64x256xf32> -> vector<64x256xf32>
    %7 = arith.addf %3, %6 : vector<64x256xf32>
    %c0_6 = arith.constant 0 : index
    %c0_7 = arith.constant 0 : index
    %8 = vector.load %arg7[%c0_6, %c0_7] : memref<64x256xf32, #tpu.memory_space<vmem>>, vector<64x256xf32>
    tpu.vector_store %arg7[%c0_6, %c0_7], %7 {strides = array<i32>} : memref<64x256xf32, #tpu.memory_space<vmem>>, vector<64x256xf32>,
    %c0_i32_8 = arith.constant 0 : i32
    %9 = arith.cmpi eq, %arg2, %c0_i32_8 : i32
    %10 = arith.extui %9 : i1 to i32
    %c0_i32_9 = arith.constant 0 : i32
    %11 = arith.cmpi ne, %10, %c0_i32_9 : i32
    scf.if %11 {
      %c0_10 = arith.constant 0 : index
      %c0_11 = arith.constant 0 : index
      %12 = vector.load %arg7[%c0_10, %c0_11] : memref<64x256xf32, #tpu.memory_space<vmem>>, vector<64x256xf32>
      %c0_12 = arith.constant 0 : index
      %c0_13 = arith.constant 0 : index
      %13 = vector.load %arg5[%c0_12, %c0_13] : memref<1x256xf32, #tpu.memory_space<vmem>>, vector<1x256xf32>
      %14 = vector.broadcast %13 : vector<1x256xf32> to vector<64x256xf32>
      %15 = arith.addf %12, %14 : vector<64x256xf32>
      %c0_14 = arith.constant 0 : index
      %c0_15 = arith.constant 0 : index
      %16 = vector.load %arg6[%c0_14, %c0_15] : memref<64x256xf32, #tpu.memory_space<vmem>>, vector<64x256xf32>
      tpu.vector_store %arg6[%c0_14, %c0_15], %15 {strides = array<i32>} : memref<64x256xf32, #tpu.memory_space<vmem>>, vector<64x256xf32>,
    } else {
    }
    return
  }
  func.func @transform_0(%arg0: i32, %arg1: i32, %arg2: i32) -> (i32, i32) {
    %c0_i32 = arith.constant 0 : i32
    return %arg0, %arg2 : i32, i32
  }
  func.func @transform_1(%arg0: i32, %arg1: i32, %arg2: i32) -> (i32, i32) {
    %c0_i32 = arith.constant 0 : i32
    return %arg2, %arg1 : i32, i32
  }
  func.func @transform_2(%arg0: i32, %arg1: i32, %arg2: i32) -> (i32, i32) {
    %c0_i32 = arith.constant 0 : i32
    %c0_i32_0 = arith.constant 0 : i32
    return %c0_i32, %arg1 : i32, i32
  }
  func.func @transform_3(%arg0: i32, %arg1: i32, %arg2: i32) -> (i32, i32) {
    %c0_i32 = arith.constant 0 : i32
    return %arg0, %arg1 : i32, i32
  }
}

module attributes {stable_mosaic.version = 11 : i64} {
  func.func @_gru_scan_kernel(%arg0: i32, %arg1: memref<8x2x8x384xf32, #tpu.memory_space<vmem>>, %arg2: memref<8x1x8x1xf32, #tpu.memory_space<vmem>>, %arg3: memref<2x128x384xbf16, #tpu.memory_space<vmem>>, %arg4: memref<2x1x384xf32, #tpu.memory_space<vmem>>, %arg5: memref<8x2x8x128xf32, #tpu.memory_space<vmem>>, %arg6: memref<2x8x128xf32, #tpu.memory_space<vmem>>) attributes {dimension_semantics = [#tpu.dimension_semantics<arbitrary>], iteration_bounds = array<i64: 1>, scalar_prefetch = 0 : i64, scratch_operands = 1 : i64, tpu.core_type = #tpu.core_type<tc>, window_params = [{transform_indices = @transform_0, window_bounds = array<i64: 8, 2, 8, 384>}, {transform_indices = @transform_1, window_bounds = array<i64: 8, 1, 8, 1>}, {pipeline_mode = #tpu.pipeline_mode<synchronous>, transform_indices = @transform_2, window_bounds = array<i64: 2, 128, 384>}, {pipeline_mode = #tpu.pipeline_mode<synchronous>, transform_indices = @transform_3, window_bounds = array<i64: 2, 1, 384>}, {transform_indices = @transform_4, window_bounds = array<i64: 8, 2, 8, 128>}]} {
    %c0_i32 = arith.constant 0 : i32
    %0 = arith.cmpi eq, %arg0, %c0_i32 : i32
    %1 = arith.extui %0 : i1 to i32
    %c0_i32_0 = arith.constant 0 : i32
    %2 = arith.cmpi ne, %1, %c0_i32_0 : i32
    scf.if %2 {
      %cst_140 = arith.constant 0.000000e+00 : f32
      %415 = vector.broadcast %cst_140 : f32 to vector<2x8x128xf32>
      %c0_141 = arith.constant 0 : index
      %c0_142 = arith.constant 0 : index
      %c0_143 = arith.constant 0 : index
      %416 = vector.load %arg6[%c0_141, %c0_142, %c0_143] : memref<2x8x128xf32, #tpu.memory_space<vmem>>, vector<2x8x128xf32>
      tpu.vector_store %arg6[%c0_141, %c0_142, %c0_143], %415 {strides = array<i32>} : memref<2x8x128xf32, #tpu.memory_space<vmem>>, vector<2x8x128xf32>,
    } else {
    }
    %c0 = arith.constant 0 : index
    %c0_1 = arith.constant 0 : index
    %c0_2 = arith.constant 0 : index
    %3 = vector.load %arg3[%c0, %c0_1, %c0_2] : memref<2x128x384xbf16, #tpu.memory_space<vmem>>, vector<2x128x384xbf16>
    %c0_3 = arith.constant 0 : index
    %c0_4 = arith.constant 0 : index
    %c0_5 = arith.constant 0 : index
    %4 = vector.load %arg4[%c0_3, %c0_4, %c0_5] : memref<2x1x384xf32, #tpu.memory_space<vmem>>, vector<2x1x384xf32>
    %c0_6 = arith.constant 0 : index
    %c0_7 = arith.constant 0 : index
    %c0_8 = arith.constant 0 : index
    %5 = vector.load %arg6[%c0_6, %c0_7, %c0_8] : memref<2x8x128xf32, #tpu.memory_space<vmem>>, vector<2x8x128xf32>
    %c0_i32_9 = arith.constant 0 : i32
    %6 = arith.index_cast %c0_i32_9 : i32 to index
    %c0_10 = arith.constant 0 : index
    %c0_11 = arith.constant 0 : index
    %c0_12 = arith.constant 0 : index
    %7 = vector.load %arg1[%6, %c0_10, %c0_11, %c0_12] : memref<8x2x8x384xf32, #tpu.memory_space<vmem>>, vector<1x2x8x384xf32>
    %8 = vector.shape_cast %7 : vector<1x2x8x384xf32> to vector<2x8x384xf32>
    %9 = arith.index_cast %c0_i32_9 : i32 to index
    %c0_13 = arith.constant 0 : index
    %c0_14 = arith.constant 0 : index
    %c0_15 = arith.constant 0 : index
    %10 = vector.load %arg2[%9, %c0_13, %c0_14, %c0_15] : memref<8x1x8x1xf32, #tpu.memory_space<vmem>>, vector<1x1x8x1xf32>
    %11 = vector.shape_cast %10 : vector<1x1x8x1xf32> to vector<1x8x1xf32>
    %12 = arith.truncf %5 : vector<2x8x128xf32> to vector<2x8x128xbf16>
    "tpu.trace_start"() <{level = 10 : i32, message = "dbh,dhk->dbk"}> : () -> ()
    %cst = arith.constant dense<0.000000e+00> : vector<2x8x384xf32>
    %13 = tpu.matmul %12, %3, %cst {dimension_numbers = #tpu.dot_dimension_numbers<[2], [1], [1], [2], [0, 0, 0, 1, 1, 2], [0], [0]>} : vector<2x8x128xbf16>, vector<2x128x384xbf16>, vector<2x8x384xf32> -> vector<2x8x384xf32>
    "tpu.trace_stop"() : () -> ()
    %14 = vector.broadcast %4 : vector<2x1x384xf32> to vector<2x8x384xf32>
    %15 = arith.addf %13, %14 : vector<2x8x384xf32>
    %16 = vector.extract_strided_slice %8 {offsets = [0, 0, 0], sizes = [2, 8, 128], strides = [1, 1, 1]} : vector<2x8x384xf32> to vector<2x8x128xf32>
    %17 = vector.extract_strided_slice %8 {offsets = [0, 0, 128], sizes = [2, 8, 128], strides = [1, 1, 1]} : vector<2x8x384xf32> to vector<2x8x128xf32>
    %18 = vector.extract_strided_slice %8 {offsets = [0, 0, 256], sizes = [2, 8, 128], strides = [1, 1, 1]} : vector<2x8x384xf32> to vector<2x8x128xf32>
    %19 = vector.extract_strided_slice %15 {offsets = [0, 0, 0], sizes = [2, 8, 128], strides = [1, 1, 1]} : vector<2x8x384xf32> to vector<2x8x128xf32>
    %20 = vector.extract_strided_slice %15 {offsets = [0, 0, 128], sizes = [2, 8, 128], strides = [1, 1, 1]} : vector<2x8x384xf32> to vector<2x8x128xf32>
    %21 = vector.extract_strided_slice %15 {offsets = [0, 0, 256], sizes = [2, 8, 128], strides = [1, 1, 1]} : vector<2x8x384xf32> to vector<2x8x128xf32>
    %22 = arith.addf %16, %19 : vector<2x8x128xf32>
    %cst_16 = arith.constant 0.000000e+00 : f32
    %23 = vector.broadcast %cst_16 : f32 to vector<2x8x128xf32>
    %24 = arith.subf %23, %22 : vector<2x8x128xf32>
    %25 = math.exp %24 : vector<2x8x128xf32>
    %cst_17 = arith.constant 1.000000e+00 : f32
    %26 = vector.broadcast %cst_17 : f32 to vector<2x8x128xf32>
    %27 = arith.addf %26, %25 : vector<2x8x128xf32>
    %28 = tpu.reciprocal %27 {approx = true} : vector<2x8x128xf32> -> vector<2x8x128xf32>
    %29 = arith.addf %17, %20 : vector<2x8x128xf32>
    %cst_18 = arith.constant 0.000000e+00 : f32
    %30 = vector.broadcast %cst_18 : f32 to vector<2x8x128xf32>
    %31 = arith.subf %30, %29 : vector<2x8x128xf32>
    %32 = math.exp %31 : vector<2x8x128xf32>
    %cst_19 = arith.constant 1.000000e+00 : f32
    %33 = vector.broadcast %cst_19 : f32 to vector<2x8x128xf32>
    %34 = arith.addf %33, %32 : vector<2x8x128xf32>
    %35 = tpu.reciprocal %34 {approx = true} : vector<2x8x128xf32> -> vector<2x8x128xf32>
    %36 = arith.mulf %28, %21 : vector<2x8x128xf32>
    %37 = arith.addf %18, %36 : vector<2x8x128xf32>
    %38 = math.tanh %37 : vector<2x8x128xf32>
    %cst_20 = arith.constant 1.000000e+00 : f32
    %39 = vector.broadcast %cst_20 : f32 to vector<2x8x128xf32>
    %40 = arith.subf %39, %35 : vector<2x8x128xf32>
    %41 = arith.mulf %40, %38 : vector<2x8x128xf32>
    %42 = arith.mulf %35, %5 : vector<2x8x128xf32>
    %43 = arith.addf %41, %42 : vector<2x8x128xf32>
    %44 = vector.broadcast %11 : vector<1x8x1xf32> to vector<2x8x128xf32>
    %45 = arith.mulf %44, %43 : vector<2x8x128xf32>
    %46 = arith.index_cast %c0_i32_9 : i32 to index
    %c0_21 = arith.constant 0 : index
    %c0_22 = arith.constant 0 : index
    %c0_23 = arith.constant 0 : index
    %47 = vector.load %arg5[%46, %c0_21, %c0_22, %c0_23] : memref<8x2x8x128xf32, #tpu.memory_space<vmem>>, vector<1x2x8x128xf32>
    %48 = vector.shape_cast %47 : vector<1x2x8x128xf32> to vector<2x8x128xf32>
    %49 = vector.shape_cast %45 : vector<2x8x128xf32> to vector<1x2x8x128xf32>
    tpu.vector_store %arg5[%46, %c0_21, %c0_22, %c0_23], %49 {strides = array<i32>} : memref<8x2x8x128xf32, #tpu.memory_space<vmem>>, vector<1x2x8x128xf32>,
    %50 = vector.broadcast %11 : vector<1x8x1xf32> to vector<2x8x128xf32>
    %51 = arith.mulf %50, %43 : vector<2x8x128xf32>
    %cst_24 = arith.constant 1.000000e+00 : f32
    %52 = vector.broadcast %cst_24 : f32 to vector<1x8x1xf32>
    %53 = arith.subf %52, %11 : vector<1x8x1xf32>
    %54 = vector.broadcast %53 : vector<1x8x1xf32> to vector<2x8x128xf32>
    %55 = arith.mulf %54, %5 : vector<2x8x128xf32>
    %56 = arith.addf %51, %55 : vector<2x8x128xf32>
    %c1_i32 = arith.constant 1 : i32
    %57 = arith.index_cast %c1_i32 : i32 to index
    %c0_25 = arith.constant 0 : index
    %c0_26 = arith.constant 0 : index
    %c0_27 = arith.constant 0 : index
    %58 = vector.load %arg1[%57, %c0_25, %c0_26, %c0_27] : memref<8x2x8x384xf32, #tpu.memory_space<vmem>>, vector<1x2x8x384xf32>
    %59 = vector.shape_cast %58 : vector<1x2x8x384xf32> to vector<2x8x384xf32>
    %60 = arith.index_cast %c1_i32 : i32 to index
    %c0_28 = arith.constant 0 : index
    %c0_29 = arith.constant 0 : index
    %c0_30 = arith.constant 0 : index
    %61 = vector.load %arg2[%60, %c0_28, %c0_29, %c0_30] : memref<8x1x8x1xf32, #tpu.memory_space<vmem>>, vector<1x1x8x1xf32>
    %62 = vector.shape_cast %61 : vector<1x1x8x1xf32> to vector<1x8x1xf32>
    %63 = arith.truncf %56 : vector<2x8x128xf32> to vector<2x8x128xbf16>
    "tpu.trace_start"() <{level = 10 : i32, message = "dbh,dhk->dbk"}> : () -> ()
    %cst_31 = arith.constant dense<0.000000e+00> : vector<2x8x384xf32>
    %64 = tpu.matmul %63, %3, %cst_31 {dimension_numbers = #tpu.dot_dimension_numbers<[2], [1], [1], [2], [0, 0, 0, 1, 1, 2], [0], [0]>} : vector<2x8x128xbf16>, vector<2x128x384xbf16>, vector<2x8x384xf32> -> vector<2x8x384xf32>
    "tpu.trace_stop"() : () -> ()
    %65 = vector.broadcast %4 : vector<2x1x384xf32> to vector<2x8x384xf32>
    %66 = arith.addf %64, %65 : vector<2x8x384xf32>
    %67 = vector.extract_strided_slice %59 {offsets = [0, 0, 0], sizes = [2, 8, 128], strides = [1, 1, 1]} : vector<2x8x384xf32> to vector<2x8x128xf32>
    %68 = vector.extract_strided_slice %59 {offsets = [0, 0, 128], sizes = [2, 8, 128], strides = [1, 1, 1]} : vector<2x8x384xf32> to vector<2x8x128xf32>
    %69 = vector.extract_strided_slice %59 {offsets = [0, 0, 256], sizes = [2, 8, 128], strides = [1, 1, 1]} : vector<2x8x384xf32> to vector<2x8x128xf32>
    %70 = vector.extract_strided_slice %66 {offsets = [0, 0, 0], sizes = [2, 8, 128], strides = [1, 1, 1]} : vector<2x8x384xf32> to vector<2x8x128xf32>
    %71 = vector.extract_strided_slice %66 {offsets = [0, 0, 128], sizes = [2, 8, 128], strides = [1, 1, 1]} : vector<2x8x384xf32> to vector<2x8x128xf32>
    %72 = vector.extract_strided_slice %66 {offsets = [0, 0, 256], sizes = [2, 8, 128], strides = [1, 1, 1]} : vector<2x8x384xf32> to vector<2x8x128xf32>
    %73 = arith.addf %67, %70 : vector<2x8x128xf32>
    %cst_32 = arith.constant 0.000000e+00 : f32
    %74 = vector.broadcast %cst_32 : f32 to vector<2x8x128xf32>
    %75 = arith.subf %74, %73 : vector<2x8x128xf32>
    %76 = math.exp %75 : vector<2x8x128xf32>
    %cst_33 = arith.constant 1.000000e+00 : f32
    %77 = vector.broadcast %cst_33 : f32 to vector<2x8x128xf32>
    %78 = arith.addf %77, %76 : vector<2x8x128xf32>
    %79 = tpu.reciprocal %78 {approx = true} : vector<2x8x128xf32> -> vector<2x8x128xf32>
    %80 = arith.addf %68, %71 : vector<2x8x128xf32>
    %cst_34 = arith.constant 0.000000e+00 : f32
    %81 = vector.broadcast %cst_34 : f32 to vector<2x8x128xf32>
    %82 = arith.subf %81, %80 : vector<2x8x128xf32>
    %83 = math.exp %82 : vector<2x8x128xf32>
    %cst_35 = arith.constant 1.000000e+00 : f32
    %84 = vector.broadcast %cst_35 : f32 to vector<2x8x128xf32>
    %85 = arith.addf %84, %83 : vector<2x8x128xf32>
    %86 = tpu.reciprocal %85 {approx = true} : vector<2x8x128xf32> -> vector<2x8x128xf32>
    %87 = arith.mulf %79, %72 : vector<2x8x128xf32>
    %88 = arith.addf %69, %87 : vector<2x8x128xf32>
    %89 = math.tanh %88 : vector<2x8x128xf32>
    %cst_36 = arith.constant 1.000000e+00 : f32
    %90 = vector.broadcast %cst_36 : f32 to vector<2x8x128xf32>
    %91 = arith.subf %90, %86 : vector<2x8x128xf32>
    %92 = arith.mulf %91, %89 : vector<2x8x128xf32>
    %93 = arith.mulf %86, %56 : vector<2x8x128xf32>
    %94 = arith.addf %92, %93 : vector<2x8x128xf32>
    %95 = vector.broadcast %62 : vector<1x8x1xf32> to vector<2x8x128xf32>
    %96 = arith.mulf %95, %94 : vector<2x8x128xf32>
    %97 = arith.index_cast %c1_i32 : i32 to index
    %c0_37 = arith.constant 0 : index
    %c0_38 = arith.constant 0 : index
    %c0_39 = arith.constant 0 : index
    %98 = vector.load %arg5[%97, %c0_37, %c0_38, %c0_39] : memref<8x2x8x128xf32, #tpu.memory_space<vmem>>, vector<1x2x8x128xf32>
    %99 = vector.shape_cast %98 : vector<1x2x8x128xf32> to vector<2x8x128xf32>
    %100 = vector.shape_cast %96 : vector<2x8x128xf32> to vector<1x2x8x128xf32>
    tpu.vector_store %arg5[%97, %c0_37, %c0_38, %c0_39], %100 {strides = array<i32>} : memref<8x2x8x128xf32, #tpu.memory_space<vmem>>, vector<1x2x8x128xf32>,
    %101 = vector.broadcast %62 : vector<1x8x1xf32> to vector<2x8x128xf32>
    %102 = arith.mulf %101, %94 : vector<2x8x128xf32>
    %cst_40 = arith.constant 1.000000e+00 : f32
    %103 = vector.broadcast %cst_40 : f32 to vector<1x8x1xf32>
    %104 = arith.subf %103, %62 : vector<1x8x1xf32>
    %105 = vector.broadcast %104 : vector<1x8x1xf32> to vector<2x8x128xf32>
    %106 = arith.mulf %105, %56 : vector<2x8x128xf32>
    %107 = arith.addf %102, %106 : vector<2x8x128xf32>
    %c2_i32 = arith.constant 2 : i32
    %108 = arith.index_cast %c2_i32 : i32 to index
    %c0_41 = arith.constant 0 : index
    %c0_42 = arith.constant 0 : index
    %c0_43 = arith.constant 0 : index
    %109 = vector.load %arg1[%108, %c0_41, %c0_42, %c0_43] : memref<8x2x8x384xf32, #tpu.memory_space<vmem>>, vector<1x2x8x384xf32>
    %110 = vector.shape_cast %109 : vector<1x2x8x384xf32> to vector<2x8x384xf32>
    %111 = arith.index_cast %c2_i32 : i32 to index
    %c0_44 = arith.constant 0 : index
    %c0_45 = arith.constant 0 : index
    %c0_46 = arith.constant 0 : index
    %112 = vector.load %arg2[%111, %c0_44, %c0_45, %c0_46] : memref<8x1x8x1xf32, #tpu.memory_space<vmem>>, vector<1x1x8x1xf32>
    %113 = vector.shape_cast %112 : vector<1x1x8x1xf32> to vector<1x8x1xf32>
    %114 = arith.truncf %107 : vector<2x8x128xf32> to vector<2x8x128xbf16>
    "tpu.trace_start"() <{level = 10 : i32, message = "dbh,dhk->dbk"}> : () -> ()
    %cst_47 = arith.constant dense<0.000000e+00> : vector<2x8x384xf32>
    %115 = tpu.matmul %114, %3, %cst_47 {dimension_numbers = #tpu.dot_dimension_numbers<[2], [1], [1], [2], [0, 0, 0, 1, 1, 2], [0], [0]>} : vector<2x8x128xbf16>, vector<2x128x384xbf16>, vector<2x8x384xf32> -> vector<2x8x384xf32>
    "tpu.trace_stop"() : () -> ()
    %116 = vector.broadcast %4 : vector<2x1x384xf32> to vector<2x8x384xf32>
    %117 = arith.addf %115, %116 : vector<2x8x384xf32>
    %118 = vector.extract_strided_slice %110 {offsets = [0, 0, 0], sizes = [2, 8, 128], strides = [1, 1, 1]} : vector<2x8x384xf32> to vector<2x8x128xf32>
    %119 = vector.extract_strided_slice %110 {offsets = [0, 0, 128], sizes = [2, 8, 128], strides = [1, 1, 1]} : vector<2x8x384xf32> to vector<2x8x128xf32>
    %120 = vector.extract_strided_slice %110 {offsets = [0, 0, 256], sizes = [2, 8, 128], strides = [1, 1, 1]} : vector<2x8x384xf32> to vector<2x8x128xf32>
    %121 = vector.extract_strided_slice %117 {offsets = [0, 0, 0], sizes = [2, 8, 128], strides = [1, 1, 1]} : vector<2x8x384xf32> to vector<2x8x128xf32>
    %122 = vector.extract_strided_slice %117 {offsets = [0, 0, 128], sizes = [2, 8, 128], strides = [1, 1, 1]} : vector<2x8x384xf32> to vector<2x8x128xf32>
    %123 = vector.extract_strided_slice %117 {offsets = [0, 0, 256], sizes = [2, 8, 128], strides = [1, 1, 1]} : vector<2x8x384xf32> to vector<2x8x128xf32>
    %124 = arith.addf %118, %121 : vector<2x8x128xf32>
    %cst_48 = arith.constant 0.000000e+00 : f32
    %125 = vector.broadcast %cst_48 : f32 to vector<2x8x128xf32>
    %126 = arith.subf %125, %124 : vector<2x8x128xf32>
    %127 = math.exp %126 : vector<2x8x128xf32>
    %cst_49 = arith.constant 1.000000e+00 : f32
    %128 = vector.broadcast %cst_49 : f32 to vector<2x8x128xf32>
    %129 = arith.addf %128, %127 : vector<2x8x128xf32>
    %130 = tpu.reciprocal %129 {approx = true} : vector<2x8x128xf32> -> vector<2x8x128xf32>
    %131 = arith.addf %119, %122 : vector<2x8x128xf32>
    %cst_50 = arith.constant 0.000000e+00 : f32
    %132 = vector.broadcast %cst_50 : f32 to vector<2x8x128xf32>
    %133 = arith.subf %132, %131 : vector<2x8x128xf32>
    %134 = math.exp %133 : vector<2x8x128xf32>
    %cst_51 = arith.constant 1.000000e+00 : f32
    %135 = vector.broadcast %cst_51 : f32 to vector<2x8x128xf32>
    %136 = arith.addf %135, %134 : vector<2x8x128xf32>
    %137 = tpu.reciprocal %136 {approx = true} : vector<2x8x128xf32> -> vector<2x8x128xf32>
    %138 = arith.mulf %130, %123 : vector<2x8x128xf32>
    %139 = arith.addf %120, %138 : vector<2x8x128xf32>
    %140 = math.tanh %139 : vector<2x8x128xf32>
    %cst_52 = arith.constant 1.000000e+00 : f32
    %141 = vector.broadcast %cst_52 : f32 to vector<2x8x128xf32>
    %142 = arith.subf %141, %137 : vector<2x8x128xf32>
    %143 = arith.mulf %142, %140 : vector<2x8x128xf32>
    %144 = arith.mulf %137, %107 : vector<2x8x128xf32>
    %145 = arith.addf %143, %144 : vector<2x8x128xf32>
    %146 = vector.broadcast %113 : vector<1x8x1xf32> to vector<2x8x128xf32>
    %147 = arith.mulf %146, %145 : vector<2x8x128xf32>
    %148 = arith.index_cast %c2_i32 : i32 to index
    %c0_53 = arith.constant 0 : index
    %c0_54 = arith.constant 0 : index
    %c0_55 = arith.constant 0 : index
    %149 = vector.load %arg5[%148, %c0_53, %c0_54, %c0_55] : memref<8x2x8x128xf32, #tpu.memory_space<vmem>>, vector<1x2x8x128xf32>
    %150 = vector.shape_cast %149 : vector<1x2x8x128xf32> to vector<2x8x128xf32>
    %151 = vector.shape_cast %147 : vector<2x8x128xf32> to vector<1x2x8x128xf32>
    tpu.vector_store %arg5[%148, %c0_53, %c0_54, %c0_55], %151 {strides = array<i32>} : memref<8x2x8x128xf32, #tpu.memory_space<vmem>>, vector<1x2x8x128xf32>,
    %152 = vector.broadcast %113 : vector<1x8x1xf32> to vector<2x8x128xf32>
    %153 = arith.mulf %152, %145 : vector<2x8x128xf32>
    %cst_56 = arith.constant 1.000000e+00 : f32
    %154 = vector.broadcast %cst_56 : f32 to vector<1x8x1xf32>
    %155 = arith.subf %154, %113 : vector<1x8x1xf32>
    %156 = vector.broadcast %155 : vector<1x8x1xf32> to vector<2x8x128xf32>
    %157 = arith.mulf %156, %107 : vector<2x8x128xf32>
    %158 = arith.addf %153, %157 : vector<2x8x128xf32>
    %c3_i32 = arith.constant 3 : i32
    %159 = arith.index_cast %c3_i32 : i32 to index
    %c0_57 = arith.constant 0 : index
    %c0_58 = arith.constant 0 : index
    %c0_59 = arith.constant 0 : index
    %160 = vector.load %arg1[%159, %c0_57, %c0_58, %c0_59] : memref<8x2x8x384xf32, #tpu.memory_space<vmem>>, vector<1x2x8x384xf32>
    %161 = vector.shape_cast %160 : vector<1x2x8x384xf32> to vector<2x8x384xf32>
    %162 = arith.index_cast %c3_i32 : i32 to index
    %c0_60 = arith.constant 0 : index
    %c0_61 = arith.constant 0 : index
    %c0_62 = arith.constant 0 : index
    %163 = vector.load %arg2[%162, %c0_60, %c0_61, %c0_62] : memref<8x1x8x1xf32, #tpu.memory_space<vmem>>, vector<1x1x8x1xf32>
    %164 = vector.shape_cast %163 : vector<1x1x8x1xf32> to vector<1x8x1xf32>
    %165 = arith.truncf %158 : vector<2x8x128xf32> to vector<2x8x128xbf16>
    "tpu.trace_start"() <{level = 10 : i32, message = "dbh,dhk->dbk"}> : () -> ()
    %cst_63 = arith.constant dense<0.000000e+00> : vector<2x8x384xf32>
    %166 = tpu.matmul %165, %3, %cst_63 {dimension_numbers = #tpu.dot_dimension_numbers<[2], [1], [1], [2], [0, 0, 0, 1, 1, 2], [0], [0]>} : vector<2x8x128xbf16>, vector<2x128x384xbf16>, vector<2x8x384xf32> -> vector<2x8x384xf32>
    "tpu.trace_stop"() : () -> ()
    %167 = vector.broadcast %4 : vector<2x1x384xf32> to vector<2x8x384xf32>
    %168 = arith.addf %166, %167 : vector<2x8x384xf32>
    %169 = vector.extract_strided_slice %161 {offsets = [0, 0, 0], sizes = [2, 8, 128], strides = [1, 1, 1]} : vector<2x8x384xf32> to vector<2x8x128xf32>
    %170 = vector.extract_strided_slice %161 {offsets = [0, 0, 128], sizes = [2, 8, 128], strides = [1, 1, 1]} : vector<2x8x384xf32> to vector<2x8x128xf32>
    %171 = vector.extract_strided_slice %161 {offsets = [0, 0, 256], sizes = [2, 8, 128], strides = [1, 1, 1]} : vector<2x8x384xf32> to vector<2x8x128xf32>
    %172 = vector.extract_strided_slice %168 {offsets = [0, 0, 0], sizes = [2, 8, 128], strides = [1, 1, 1]} : vector<2x8x384xf32> to vector<2x8x128xf32>
    %173 = vector.extract_strided_slice %168 {offsets = [0, 0, 128], sizes = [2, 8, 128], strides = [1, 1, 1]} : vector<2x8x384xf32> to vector<2x8x128xf32>
    %174 = vector.extract_strided_slice %168 {offsets = [0, 0, 256], sizes = [2, 8, 128], strides = [1, 1, 1]} : vector<2x8x384xf32> to vector<2x8x128xf32>
    %175 = arith.addf %169, %172 : vector<2x8x128xf32>
    %cst_64 = arith.constant 0.000000e+00 : f32
    %176 = vector.broadcast %cst_64 : f32 to vector<2x8x128xf32>
    %177 = arith.subf %176, %175 : vector<2x8x128xf32>
    %178 = math.exp %177 : vector<2x8x128xf32>
    %cst_65 = arith.constant 1.000000e+00 : f32
    %179 = vector.broadcast %cst_65 : f32 to vector<2x8x128xf32>
    %180 = arith.addf %179, %178 : vector<2x8x128xf32>
    %181 = tpu.reciprocal %180 {approx = true} : vector<2x8x128xf32> -> vector<2x8x128xf32>
    %182 = arith.addf %170, %173 : vector<2x8x128xf32>
    %cst_66 = arith.constant 0.000000e+00 : f32
    %183 = vector.broadcast %cst_66 : f32 to vector<2x8x128xf32>
    %184 = arith.subf %183, %182 : vector<2x8x128xf32>
    %185 = math.exp %184 : vector<2x8x128xf32>
    %cst_67 = arith.constant 1.000000e+00 : f32
    %186 = vector.broadcast %cst_67 : f32 to vector<2x8x128xf32>
    %187 = arith.addf %186, %185 : vector<2x8x128xf32>
    %188 = tpu.reciprocal %187 {approx = true} : vector<2x8x128xf32> -> vector<2x8x128xf32>
    %189 = arith.mulf %181, %174 : vector<2x8x128xf32>
    %190 = arith.addf %171, %189 : vector<2x8x128xf32>
    %191 = math.tanh %190 : vector<2x8x128xf32>
    %cst_68 = arith.constant 1.000000e+00 : f32
    %192 = vector.broadcast %cst_68 : f32 to vector<2x8x128xf32>
    %193 = arith.subf %192, %188 : vector<2x8x128xf32>
    %194 = arith.mulf %193, %191 : vector<2x8x128xf32>
    %195 = arith.mulf %188, %158 : vector<2x8x128xf32>
    %196 = arith.addf %194, %195 : vector<2x8x128xf32>
    %197 = vector.broadcast %164 : vector<1x8x1xf32> to vector<2x8x128xf32>
    %198 = arith.mulf %197, %196 : vector<2x8x128xf32>
    %199 = arith.index_cast %c3_i32 : i32 to index
    %c0_69 = arith.constant 0 : index
    %c0_70 = arith.constant 0 : index
    %c0_71 = arith.constant 0 : index
    %200 = vector.load %arg5[%199, %c0_69, %c0_70, %c0_71] : memref<8x2x8x128xf32, #tpu.memory_space<vmem>>, vector<1x2x8x128xf32>
    %201 = vector.shape_cast %200 : vector<1x2x8x128xf32> to vector<2x8x128xf32>
    %202 = vector.shape_cast %198 : vector<2x8x128xf32> to vector<1x2x8x128xf32>
    tpu.vector_store %arg5[%199, %c0_69, %c0_70, %c0_71], %202 {strides = array<i32>} : memref<8x2x8x128xf32, #tpu.memory_space<vmem>>, vector<1x2x8x128xf32>,
    %203 = vector.broadcast %164 : vector<1x8x1xf32> to vector<2x8x128xf32>
    %204 = arith.mulf %203, %196 : vector<2x8x128xf32>
    %cst_72 = arith.constant 1.000000e+00 : f32
    %205 = vector.broadcast %cst_72 : f32 to vector<1x8x1xf32>
    %206 = arith.subf %205, %164 : vector<1x8x1xf32>
    %207 = vector.broadcast %206 : vector<1x8x1xf32> to vector<2x8x128xf32>
    %208 = arith.mulf %207, %158 : vector<2x8x128xf32>
    %209 = arith.addf %204, %208 : vector<2x8x128xf32>
    %c4_i32 = arith.constant 4 : i32
    %210 = arith.index_cast %c4_i32 : i32 to index
    %c0_73 = arith.constant 0 : index
    %c0_74 = arith.constant 0 : index
    %c0_75 = arith.constant 0 : index
    %211 = vector.load %arg1[%210, %c0_73, %c0_74, %c0_75] : memref<8x2x8x384xf32, #tpu.memory_space<vmem>>, vector<1x2x8x384xf32>
    %212 = vector.shape_cast %211 : vector<1x2x8x384xf32> to vector<2x8x384xf32>
    %213 = arith.index_cast %c4_i32 : i32 to index
    %c0_76 = arith.constant 0 : index
    %c0_77 = arith.constant 0 : index
    %c0_78 = arith.constant 0 : index
    %214 = vector.load %arg2[%213, %c0_76, %c0_77, %c0_78] : memref<8x1x8x1xf32, #tpu.memory_space<vmem>>, vector<1x1x8x1xf32>
    %215 = vector.shape_cast %214 : vector<1x1x8x1xf32> to vector<1x8x1xf32>
    %216 = arith.truncf %209 : vector<2x8x128xf32> to vector<2x8x128xbf16>
    "tpu.trace_start"() <{level = 10 : i32, message = "dbh,dhk->dbk"}> : () -> ()
    %cst_79 = arith.constant dense<0.000000e+00> : vector<2x8x384xf32>
    %217 = tpu.matmul %216, %3, %cst_79 {dimension_numbers = #tpu.dot_dimension_numbers<[2], [1], [1], [2], [0, 0, 0, 1, 1, 2], [0], [0]>} : vector<2x8x128xbf16>, vector<2x128x384xbf16>, vector<2x8x384xf32> -> vector<2x8x384xf32>
    "tpu.trace_stop"() : () -> ()
    %218 = vector.broadcast %4 : vector<2x1x384xf32> to vector<2x8x384xf32>
    %219 = arith.addf %217, %218 : vector<2x8x384xf32>
    %220 = vector.extract_strided_slice %212 {offsets = [0, 0, 0], sizes = [2, 8, 128], strides = [1, 1, 1]} : vector<2x8x384xf32> to vector<2x8x128xf32>
    %221 = vector.extract_strided_slice %212 {offsets = [0, 0, 128], sizes = [2, 8, 128], strides = [1, 1, 1]} : vector<2x8x384xf32> to vector<2x8x128xf32>
    %222 = vector.extract_strided_slice %212 {offsets = [0, 0, 256], sizes = [2, 8, 128], strides = [1, 1, 1]} : vector<2x8x384xf32> to vector<2x8x128xf32>
    %223 = vector.extract_strided_slice %219 {offsets = [0, 0, 0], sizes = [2, 8, 128], strides = [1, 1, 1]} : vector<2x8x384xf32> to vector<2x8x128xf32>
    %224 = vector.extract_strided_slice %219 {offsets = [0, 0, 128], sizes = [2, 8, 128], strides = [1, 1, 1]} : vector<2x8x384xf32> to vector<2x8x128xf32>
    %225 = vector.extract_strided_slice %219 {offsets = [0, 0, 256], sizes = [2, 8, 128], strides = [1, 1, 1]} : vector<2x8x384xf32> to vector<2x8x128xf32>
    %226 = arith.addf %220, %223 : vector<2x8x128xf32>
    %cst_80 = arith.constant 0.000000e+00 : f32
    %227 = vector.broadcast %cst_80 : f32 to vector<2x8x128xf32>
    %228 = arith.subf %227, %226 : vector<2x8x128xf32>
    %229 = math.exp %228 : vector<2x8x128xf32>
    %cst_81 = arith.constant 1.000000e+00 : f32
    %230 = vector.broadcast %cst_81 : f32 to vector<2x8x128xf32>
    %231 = arith.addf %230, %229 : vector<2x8x128xf32>
    %232 = tpu.reciprocal %231 {approx = true} : vector<2x8x128xf32> -> vector<2x8x128xf32>
    %233 = arith.addf %221, %224 : vector<2x8x128xf32>
    %cst_82 = arith.constant 0.000000e+00 : f32
    %234 = vector.broadcast %cst_82 : f32 to vector<2x8x128xf32>
    %235 = arith.subf %234, %233 : vector<2x8x128xf32>
    %236 = math.exp %235 : vector<2x8x128xf32>
    %cst_83 = arith.constant 1.000000e+00 : f32
    %237 = vector.broadcast %cst_83 : f32 to vector<2x8x128xf32>
    %238 = arith.addf %237, %236 : vector<2x8x128xf32>
    %239 = tpu.reciprocal %238 {approx = true} : vector<2x8x128xf32> -> vector<2x8x128xf32>
    %240 = arith.mulf %232, %225 : vector<2x8x128xf32>
    %241 = arith.addf %222, %240 : vector<2x8x128xf32>
    %242 = math.tanh %241 : vector<2x8x128xf32>
    %cst_84 = arith.constant 1.000000e+00 : f32
    %243 = vector.broadcast %cst_84 : f32 to vector<2x8x128xf32>
    %244 = arith.subf %243, %239 : vector<2x8x128xf32>
    %245 = arith.mulf %244, %242 : vector<2x8x128xf32>
    %246 = arith.mulf %239, %209 : vector<2x8x128xf32>
    %247 = arith.addf %245, %246 : vector<2x8x128xf32>
    %248 = vector.broadcast %215 : vector<1x8x1xf32> to vector<2x8x128xf32>
    %249 = arith.mulf %248, %247 : vector<2x8x128xf32>
    %250 = arith.index_cast %c4_i32 : i32 to index
    %c0_85 = arith.constant 0 : index
    %c0_86 = arith.constant 0 : index
    %c0_87 = arith.constant 0 : index
    %251 = vector.load %arg5[%250, %c0_85, %c0_86, %c0_87] : memref<8x2x8x128xf32, #tpu.memory_space<vmem>>, vector<1x2x8x128xf32>
    %252 = vector.shape_cast %251 : vector<1x2x8x128xf32> to vector<2x8x128xf32>
    %253 = vector.shape_cast %249 : vector<2x8x128xf32> to vector<1x2x8x128xf32>
    tpu.vector_store %arg5[%250, %c0_85, %c0_86, %c0_87], %253 {strides = array<i32>} : memref<8x2x8x128xf32, #tpu.memory_space<vmem>>, vector<1x2x8x128xf32>,
    %254 = vector.broadcast %215 : vector<1x8x1xf32> to vector<2x8x128xf32>
    %255 = arith.mulf %254, %247 : vector<2x8x128xf32>
    %cst_88 = arith.constant 1.000000e+00 : f32
    %256 = vector.broadcast %cst_88 : f32 to vector<1x8x1xf32>
    %257 = arith.subf %256, %215 : vector<1x8x1xf32>
    %258 = vector.broadcast %257 : vector<1x8x1xf32> to vector<2x8x128xf32>
    %259 = arith.mulf %258, %209 : vector<2x8x128xf32>
    %260 = arith.addf %255, %259 : vector<2x8x128xf32>
    %c5_i32 = arith.constant 5 : i32
    %261 = arith.index_cast %c5_i32 : i32 to index
    %c0_89 = arith.constant 0 : index
    %c0_90 = arith.constant 0 : index
    %c0_91 = arith.constant 0 : index
    %262 = vector.load %arg1[%261, %c0_89, %c0_90, %c0_91] : memref<8x2x8x384xf32, #tpu.memory_space<vmem>>, vector<1x2x8x384xf32>
    %263 = vector.shape_cast %262 : vector<1x2x8x384xf32> to vector<2x8x384xf32>
    %264 = arith.index_cast %c5_i32 : i32 to index
    %c0_92 = arith.constant 0 : index
    %c0_93 = arith.constant 0 : index
    %c0_94 = arith.constant 0 : index
    %265 = vector.load %arg2[%264, %c0_92, %c0_93, %c0_94] : memref<8x1x8x1xf32, #tpu.memory_space<vmem>>, vector<1x1x8x1xf32>
    %266 = vector.shape_cast %265 : vector<1x1x8x1xf32> to vector<1x8x1xf32>
    %267 = arith.truncf %260 : vector<2x8x128xf32> to vector<2x8x128xbf16>
    "tpu.trace_start"() <{level = 10 : i32, message = "dbh,dhk->dbk"}> : () -> ()
    %cst_95 = arith.constant dense<0.000000e+00> : vector<2x8x384xf32>
    %268 = tpu.matmul %267, %3, %cst_95 {dimension_numbers = #tpu.dot_dimension_numbers<[2], [1], [1], [2], [0, 0, 0, 1, 1, 2], [0], [0]>} : vector<2x8x128xbf16>, vector<2x128x384xbf16>, vector<2x8x384xf32> -> vector<2x8x384xf32>
    "tpu.trace_stop"() : () -> ()
    %269 = vector.broadcast %4 : vector<2x1x384xf32> to vector<2x8x384xf32>
    %270 = arith.addf %268, %269 : vector<2x8x384xf32>
    %271 = vector.extract_strided_slice %263 {offsets = [0, 0, 0], sizes = [2, 8, 128], strides = [1, 1, 1]} : vector<2x8x384xf32> to vector<2x8x128xf32>
    %272 = vector.extract_strided_slice %263 {offsets = [0, 0, 128], sizes = [2, 8, 128], strides = [1, 1, 1]} : vector<2x8x384xf32> to vector<2x8x128xf32>
    %273 = vector.extract_strided_slice %263 {offsets = [0, 0, 256], sizes = [2, 8, 128], strides = [1, 1, 1]} : vector<2x8x384xf32> to vector<2x8x128xf32>
    %274 = vector.extract_strided_slice %270 {offsets = [0, 0, 0], sizes = [2, 8, 128], strides = [1, 1, 1]} : vector<2x8x384xf32> to vector<2x8x128xf32>
    %275 = vector.extract_strided_slice %270 {offsets = [0, 0, 128], sizes = [2, 8, 128], strides = [1, 1, 1]} : vector<2x8x384xf32> to vector<2x8x128xf32>
    %276 = vector.extract_strided_slice %270 {offsets = [0, 0, 256], sizes = [2, 8, 128], strides = [1, 1, 1]} : vector<2x8x384xf32> to vector<2x8x128xf32>
    %277 = arith.addf %271, %274 : vector<2x8x128xf32>
    %cst_96 = arith.constant 0.000000e+00 : f32
    %278 = vector.broadcast %cst_96 : f32 to vector<2x8x128xf32>
    %279 = arith.subf %278, %277 : vector<2x8x128xf32>
    %280 = math.exp %279 : vector<2x8x128xf32>
    %cst_97 = arith.constant 1.000000e+00 : f32
    %281 = vector.broadcast %cst_97 : f32 to vector<2x8x128xf32>
    %282 = arith.addf %281, %280 : vector<2x8x128xf32>
    %283 = tpu.reciprocal %282 {approx = true} : vector<2x8x128xf32> -> vector<2x8x128xf32>
    %284 = arith.addf %272, %275 : vector<2x8x128xf32>
    %cst_98 = arith.constant 0.000000e+00 : f32
    %285 = vector.broadcast %cst_98 : f32 to vector<2x8x128xf32>
    %286 = arith.subf %285, %284 : vector<2x8x128xf32>
    %287 = math.exp %286 : vector<2x8x128xf32>
    %cst_99 = arith.constant 1.000000e+00 : f32
    %288 = vector.broadcast %cst_99 : f32 to vector<2x8x128xf32>
    %289 = arith.addf %288, %287 : vector<2x8x128xf32>
    %290 = tpu.reciprocal %289 {approx = true} : vector<2x8x128xf32> -> vector<2x8x128xf32>
    %291 = arith.mulf %283, %276 : vector<2x8x128xf32>
    %292 = arith.addf %273, %291 : vector<2x8x128xf32>
    %293 = math.tanh %292 : vector<2x8x128xf32>
    %cst_100 = arith.constant 1.000000e+00 : f32
    %294 = vector.broadcast %cst_100 : f32 to vector<2x8x128xf32>
    %295 = arith.subf %294, %290 : vector<2x8x128xf32>
    %296 = arith.mulf %295, %293 : vector<2x8x128xf32>
    %297 = arith.mulf %290, %260 : vector<2x8x128xf32>
    %298 = arith.addf %296, %297 : vector<2x8x128xf32>
    %299 = vector.broadcast %266 : vector<1x8x1xf32> to vector<2x8x128xf32>
    %300 = arith.mulf %299, %298 : vector<2x8x128xf32>
    %301 = arith.index_cast %c5_i32 : i32 to index
    %c0_101 = arith.constant 0 : index
    %c0_102 = arith.constant 0 : index
    %c0_103 = arith.constant 0 : index
    %302 = vector.load %arg5[%301, %c0_101, %c0_102, %c0_103] : memref<8x2x8x128xf32, #tpu.memory_space<vmem>>, vector<1x2x8x128xf32>
    %303 = vector.shape_cast %302 : vector<1x2x8x128xf32> to vector<2x8x128xf32>
    %304 = vector.shape_cast %300 : vector<2x8x128xf32> to vector<1x2x8x128xf32>
    tpu.vector_store %arg5[%301, %c0_101, %c0_102, %c0_103], %304 {strides = array<i32>} : memref<8x2x8x128xf32, #tpu.memory_space<vmem>>, vector<1x2x8x128xf32>,
    %305 = vector.broadcast %266 : vector<1x8x1xf32> to vector<2x8x128xf32>
    %306 = arith.mulf %305, %298 : vector<2x8x128xf32>
    %cst_104 = arith.constant 1.000000e+00 : f32
    %307 = vector.broadcast %cst_104 : f32 to vector<1x8x1xf32>
    %308 = arith.subf %307, %266 : vector<1x8x1xf32>
    %309 = vector.broadcast %308 : vector<1x8x1xf32> to vector<2x8x128xf32>
    %310 = arith.mulf %309, %260 : vector<2x8x128xf32>
    %311 = arith.addf %306, %310 : vector<2x8x128xf32>
    %c6_i32 = arith.constant 6 : i32
    %312 = arith.index_cast %c6_i32 : i32 to index
    %c0_105 = arith.constant 0 : index
    %c0_106 = arith.constant 0 : index
    %c0_107 = arith.constant 0 : index
    %313 = vector.load %arg1[%312, %c0_105, %c0_106, %c0_107] : memref<8x2x8x384xf32, #tpu.memory_space<vmem>>, vector<1x2x8x384xf32>
    %314 = vector.shape_cast %313 : vector<1x2x8x384xf32> to vector<2x8x384xf32>
    %315 = arith.index_cast %c6_i32 : i32 to index
    %c0_108 = arith.constant 0 : index
    %c0_109 = arith.constant 0 : index
    %c0_110 = arith.constant 0 : index
    %316 = vector.load %arg2[%315, %c0_108, %c0_109, %c0_110] : memref<8x1x8x1xf32, #tpu.memory_space<vmem>>, vector<1x1x8x1xf32>
    %317 = vector.shape_cast %316 : vector<1x1x8x1xf32> to vector<1x8x1xf32>
    %318 = arith.truncf %311 : vector<2x8x128xf32> to vector<2x8x128xbf16>
    "tpu.trace_start"() <{level = 10 : i32, message = "dbh,dhk->dbk"}> : () -> ()
    %cst_111 = arith.constant dense<0.000000e+00> : vector<2x8x384xf32>
    %319 = tpu.matmul %318, %3, %cst_111 {dimension_numbers = #tpu.dot_dimension_numbers<[2], [1], [1], [2], [0, 0, 0, 1, 1, 2], [0], [0]>} : vector<2x8x128xbf16>, vector<2x128x384xbf16>, vector<2x8x384xf32> -> vector<2x8x384xf32>
    "tpu.trace_stop"() : () -> ()
    %320 = vector.broadcast %4 : vector<2x1x384xf32> to vector<2x8x384xf32>
    %321 = arith.addf %319, %320 : vector<2x8x384xf32>
    %322 = vector.extract_strided_slice %314 {offsets = [0, 0, 0], sizes = [2, 8, 128], strides = [1, 1, 1]} : vector<2x8x384xf32> to vector<2x8x128xf32>
    %323 = vector.extract_strided_slice %314 {offsets = [0, 0, 128], sizes = [2, 8, 128], strides = [1, 1, 1]} : vector<2x8x384xf32> to vector<2x8x128xf32>
    %324 = vector.extract_strided_slice %314 {offsets = [0, 0, 256], sizes = [2, 8, 128], strides = [1, 1, 1]} : vector<2x8x384xf32> to vector<2x8x128xf32>
    %325 = vector.extract_strided_slice %321 {offsets = [0, 0, 0], sizes = [2, 8, 128], strides = [1, 1, 1]} : vector<2x8x384xf32> to vector<2x8x128xf32>
    %326 = vector.extract_strided_slice %321 {offsets = [0, 0, 128], sizes = [2, 8, 128], strides = [1, 1, 1]} : vector<2x8x384xf32> to vector<2x8x128xf32>
    %327 = vector.extract_strided_slice %321 {offsets = [0, 0, 256], sizes = [2, 8, 128], strides = [1, 1, 1]} : vector<2x8x384xf32> to vector<2x8x128xf32>
    %328 = arith.addf %322, %325 : vector<2x8x128xf32>
    %cst_112 = arith.constant 0.000000e+00 : f32
    %329 = vector.broadcast %cst_112 : f32 to vector<2x8x128xf32>
    %330 = arith.subf %329, %328 : vector<2x8x128xf32>
    %331 = math.exp %330 : vector<2x8x128xf32>
    %cst_113 = arith.constant 1.000000e+00 : f32
    %332 = vector.broadcast %cst_113 : f32 to vector<2x8x128xf32>
    %333 = arith.addf %332, %331 : vector<2x8x128xf32>
    %334 = tpu.reciprocal %333 {approx = true} : vector<2x8x128xf32> -> vector<2x8x128xf32>
    %335 = arith.addf %323, %326 : vector<2x8x128xf32>
    %cst_114 = arith.constant 0.000000e+00 : f32
    %336 = vector.broadcast %cst_114 : f32 to vector<2x8x128xf32>
    %337 = arith.subf %336, %335 : vector<2x8x128xf32>
    %338 = math.exp %337 : vector<2x8x128xf32>
    %cst_115 = arith.constant 1.000000e+00 : f32
    %339 = vector.broadcast %cst_115 : f32 to vector<2x8x128xf32>
    %340 = arith.addf %339, %338 : vector<2x8x128xf32>
    %341 = tpu.reciprocal %340 {approx = true} : vector<2x8x128xf32> -> vector<2x8x128xf32>
    %342 = arith.mulf %334, %327 : vector<2x8x128xf32>
    %343 = arith.addf %324, %342 : vector<2x8x128xf32>
    %344 = math.tanh %343 : vector<2x8x128xf32>
    %cst_116 = arith.constant 1.000000e+00 : f32
    %345 = vector.broadcast %cst_116 : f32 to vector<2x8x128xf32>
    %346 = arith.subf %345, %341 : vector<2x8x128xf32>
    %347 = arith.mulf %346, %344 : vector<2x8x128xf32>
    %348 = arith.mulf %341, %311 : vector<2x8x128xf32>
    %349 = arith.addf %347, %348 : vector<2x8x128xf32>
    %350 = vector.broadcast %317 : vector<1x8x1xf32> to vector<2x8x128xf32>
    %351 = arith.mulf %350, %349 : vector<2x8x128xf32>
    %352 = arith.index_cast %c6_i32 : i32 to index
    %c0_117 = arith.constant 0 : index
    %c0_118 = arith.constant 0 : index
    %c0_119 = arith.constant 0 : index
    %353 = vector.load %arg5[%352, %c0_117, %c0_118, %c0_119] : memref<8x2x8x128xf32, #tpu.memory_space<vmem>>, vector<1x2x8x128xf32>
    %354 = vector.shape_cast %353 : vector<1x2x8x128xf32> to vector<2x8x128xf32>
    %355 = vector.shape_cast %351 : vector<2x8x128xf32> to vector<1x2x8x128xf32>
    tpu.vector_store %arg5[%352, %c0_117, %c0_118, %c0_119], %355 {strides = array<i32>} : memref<8x2x8x128xf32, #tpu.memory_space<vmem>>, vector<1x2x8x128xf32>,
    %356 = vector.broadcast %317 : vector<1x8x1xf32> to vector<2x8x128xf32>
    %357 = arith.mulf %356, %349 : vector<2x8x128xf32>
    %cst_120 = arith.constant 1.000000e+00 : f32
    %358 = vector.broadcast %cst_120 : f32 to vector<1x8x1xf32>
    %359 = arith.subf %358, %317 : vector<1x8x1xf32>
    %360 = vector.broadcast %359 : vector<1x8x1xf32> to vector<2x8x128xf32>
    %361 = arith.mulf %360, %311 : vector<2x8x128xf32>
    %362 = arith.addf %357, %361 : vector<2x8x128xf32>
    %c7_i32 = arith.constant 7 : i32
    %363 = arith.index_cast %c7_i32 : i32 to index
    %c0_121 = arith.constant 0 : index
    %c0_122 = arith.constant 0 : index
    %c0_123 = arith.constant 0 : index
    %364 = vector.load %arg1[%363, %c0_121, %c0_122, %c0_123] : memref<8x2x8x384xf32, #tpu.memory_space<vmem>>, vector<1x2x8x384xf32>
    %365 = vector.shape_cast %364 : vector<1x2x8x384xf32> to vector<2x8x384xf32>
    %366 = arith.index_cast %c7_i32 : i32 to index
    %c0_124 = arith.constant 0 : index
    %c0_125 = arith.constant 0 : index
    %c0_126 = arith.constant 0 : index
    %367 = vector.load %arg2[%366, %c0_124, %c0_125, %c0_126] : memref<8x1x8x1xf32, #tpu.memory_space<vmem>>, vector<1x1x8x1xf32>
    %368 = vector.shape_cast %367 : vector<1x1x8x1xf32> to vector<1x8x1xf32>
    %369 = arith.truncf %362 : vector<2x8x128xf32> to vector<2x8x128xbf16>
    "tpu.trace_start"() <{level = 10 : i32, message = "dbh,dhk->dbk"}> : () -> ()
    %cst_127 = arith.constant dense<0.000000e+00> : vector<2x8x384xf32>
    %370 = tpu.matmul %369, %3, %cst_127 {dimension_numbers = #tpu.dot_dimension_numbers<[2], [1], [1], [2], [0, 0, 0, 1, 1, 2], [0], [0]>} : vector<2x8x128xbf16>, vector<2x128x384xbf16>, vector<2x8x384xf32> -> vector<2x8x384xf32>
    "tpu.trace_stop"() : () -> ()
    %371 = vector.broadcast %4 : vector<2x1x384xf32> to vector<2x8x384xf32>
    %372 = arith.addf %370, %371 : vector<2x8x384xf32>
    %373 = vector.extract_strided_slice %365 {offsets = [0, 0, 0], sizes = [2, 8, 128], strides = [1, 1, 1]} : vector<2x8x384xf32> to vector<2x8x128xf32>
    %374 = vector.extract_strided_slice %365 {offsets = [0, 0, 128], sizes = [2, 8, 128], strides = [1, 1, 1]} : vector<2x8x384xf32> to vector<2x8x128xf32>
    %375 = vector.extract_strided_slice %365 {offsets = [0, 0, 256], sizes = [2, 8, 128], strides = [1, 1, 1]} : vector<2x8x384xf32> to vector<2x8x128xf32>
    %376 = vector.extract_strided_slice %372 {offsets = [0, 0, 0], sizes = [2, 8, 128], strides = [1, 1, 1]} : vector<2x8x384xf32> to vector<2x8x128xf32>
    %377 = vector.extract_strided_slice %372 {offsets = [0, 0, 128], sizes = [2, 8, 128], strides = [1, 1, 1]} : vector<2x8x384xf32> to vector<2x8x128xf32>
    %378 = vector.extract_strided_slice %372 {offsets = [0, 0, 256], sizes = [2, 8, 128], strides = [1, 1, 1]} : vector<2x8x384xf32> to vector<2x8x128xf32>
    %379 = arith.addf %373, %376 : vector<2x8x128xf32>
    %cst_128 = arith.constant 0.000000e+00 : f32
    %380 = vector.broadcast %cst_128 : f32 to vector<2x8x128xf32>
    %381 = arith.subf %380, %379 : vector<2x8x128xf32>
    %382 = math.exp %381 : vector<2x8x128xf32>
    %cst_129 = arith.constant 1.000000e+00 : f32
    %383 = vector.broadcast %cst_129 : f32 to vector<2x8x128xf32>
    %384 = arith.addf %383, %382 : vector<2x8x128xf32>
    %385 = tpu.reciprocal %384 {approx = true} : vector<2x8x128xf32> -> vector<2x8x128xf32>
    %386 = arith.addf %374, %377 : vector<2x8x128xf32>
    %cst_130 = arith.constant 0.000000e+00 : f32
    %387 = vector.broadcast %cst_130 : f32 to vector<2x8x128xf32>
    %388 = arith.subf %387, %386 : vector<2x8x128xf32>
    %389 = math.exp %388 : vector<2x8x128xf32>
    %cst_131 = arith.constant 1.000000e+00 : f32
    %390 = vector.broadcast %cst_131 : f32 to vector<2x8x128xf32>
    %391 = arith.addf %390, %389 : vector<2x8x128xf32>
    %392 = tpu.reciprocal %391 {approx = true} : vector<2x8x128xf32> -> vector<2x8x128xf32>
    %393 = arith.mulf %385, %378 : vector<2x8x128xf32>
    %394 = arith.addf %375, %393 : vector<2x8x128xf32>
    %395 = math.tanh %394 : vector<2x8x128xf32>
    %cst_132 = arith.constant 1.000000e+00 : f32
    %396 = vector.broadcast %cst_132 : f32 to vector<2x8x128xf32>
    %397 = arith.subf %396, %392 : vector<2x8x128xf32>
    %398 = arith.mulf %397, %395 : vector<2x8x128xf32>
    %399 = arith.mulf %392, %362 : vector<2x8x128xf32>
    %400 = arith.addf %398, %399 : vector<2x8x128xf32>
    %401 = vector.broadcast %368 : vector<1x8x1xf32> to vector<2x8x128xf32>
    %402 = arith.mulf %401, %400 : vector<2x8x128xf32>
    %403 = arith.index_cast %c7_i32 : i32 to index
    %c0_133 = arith.constant 0 : index
    %c0_134 = arith.constant 0 : index
    %c0_135 = arith.constant 0 : index
    %404 = vector.load %arg5[%403, %c0_133, %c0_134, %c0_135] : memref<8x2x8x128xf32, #tpu.memory_space<vmem>>, vector<1x2x8x128xf32>
    %405 = vector.shape_cast %404 : vector<1x2x8x128xf32> to vector<2x8x128xf32>
    %406 = vector.shape_cast %402 : vector<2x8x128xf32> to vector<1x2x8x128xf32>
    tpu.vector_store %arg5[%403, %c0_133, %c0_134, %c0_135], %406 {strides = array<i32>} : memref<8x2x8x128xf32, #tpu.memory_space<vmem>>, vector<1x2x8x128xf32>,
    %407 = vector.broadcast %368 : vector<1x8x1xf32> to vector<2x8x128xf32>
    %408 = arith.mulf %407, %400 : vector<2x8x128xf32>
    %cst_136 = arith.constant 1.000000e+00 : f32
    %409 = vector.broadcast %cst_136 : f32 to vector<1x8x1xf32>
    %410 = arith.subf %409, %368 : vector<1x8x1xf32>
    %411 = vector.broadcast %410 : vector<1x8x1xf32> to vector<2x8x128xf32>
    %412 = arith.mulf %411, %362 : vector<2x8x128xf32>
    %413 = arith.addf %408, %412 : vector<2x8x128xf32>
    %c8_i32 = arith.constant 8 : i32
    %c0_137 = arith.constant 0 : index
    %c0_138 = arith.constant 0 : index
    %c0_139 = arith.constant 0 : index
    %414 = vector.load %arg6[%c0_137, %c0_138, %c0_139] : memref<2x8x128xf32, #tpu.memory_space<vmem>>, vector<2x8x128xf32>
    tpu.vector_store %arg6[%c0_137, %c0_138, %c0_139], %413 {strides = array<i32>} : memref<2x8x128xf32, #tpu.memory_space<vmem>>, vector<2x8x128xf32>,
    return
  }
  func.func @transform_0(%arg0: i32) -> (i32, i32, i32, i32) {
    %c0_i32 = arith.constant 0 : i32
    %c0_i32_0 = arith.constant 0 : i32
    %c0_i32_1 = arith.constant 0 : i32
    %c0_i32_2 = arith.constant 0 : i32
    return %arg0, %c0_i32, %c0_i32_0, %c0_i32_1 : i32, i32, i32, i32
  }
  func.func @transform_1(%arg0: i32) -> (i32, i32, i32, i32) {
    %c0_i32 = arith.constant 0 : i32
    %c0_i32_0 = arith.constant 0 : i32
    %c0_i32_1 = arith.constant 0 : i32
    %c0_i32_2 = arith.constant 0 : i32
    return %arg0, %c0_i32, %c0_i32_0, %c0_i32_1 : i32, i32, i32, i32
  }
  func.func @transform_2(%arg0: i32) -> (i32, i32, i32) {
    %c0_i32 = arith.constant 0 : i32
    %c0_i32_0 = arith.constant 0 : i32
    %c0_i32_1 = arith.constant 0 : i32
    %c0_i32_2 = arith.constant 0 : i32
    return %c0_i32, %c0_i32_0, %c0_i32_1 : i32, i32, i32
  }
  func.func @transform_3(%arg0: i32) -> (i32, i32, i32) {
    %c0_i32 = arith.constant 0 : i32
    %c0_i32_0 = arith.constant 0 : i32
    %c0_i32_1 = arith.constant 0 : i32
    %c0_i32_2 = arith.constant 0 : i32
    return %c0_i32, %c0_i32_0, %c0_i32_1 : i32, i32, i32
  }
  func.func @transform_4(%arg0: i32) -> (i32, i32, i32, i32) {
    %c0_i32 = arith.constant 0 : i32
    %c0_i32_0 = arith.constant 0 : i32
    %c0_i32_1 = arith.constant 0 : i32
    %c0_i32_2 = arith.constant 0 : i32
    return %arg0, %c0_i32, %c0_i32_0, %c0_i32_1 : i32, i32, i32, i32
  }
}

module attributes {stable_mosaic.version = 11 : i64} {
  func.func @_fc_logsoftmax_kernel(%arg0: i32, %arg1: memref<64x128xbf16, #tpu.memory_space<vmem>>, %arg2: memref<128x128xbf16, #tpu.memory_space<vmem>>, %arg3: memref<1x128xf32, #tpu.memory_space<vmem>>, %arg4: memref<64x128xf32, #tpu.memory_space<vmem>>) attributes {dimension_semantics = [#tpu.dimension_semantics<parallel>], iteration_bounds = array<i64: 1>, scalar_prefetch = 0 : i64, scratch_operands = 0 : i64, tpu.core_type = #tpu.core_type<tc>, window_params = [{transform_indices = @transform_0, window_bounds = array<i64: 64, 128>}, {pipeline_mode = #tpu.pipeline_mode<synchronous>, transform_indices = @transform_1, window_bounds = array<i64: 128, 128>}, {pipeline_mode = #tpu.pipeline_mode<synchronous>, transform_indices = @transform_2, window_bounds = array<i64: 1, 128>}, {transform_indices = @transform_3, window_bounds = array<i64: 64, 128>}]} {
    %c0 = arith.constant 0 : index
    %c0_0 = arith.constant 0 : index
    %0 = vector.load %arg1[%c0, %c0_0] : memref<64x128xbf16, #tpu.memory_space<vmem>>, vector<64x128xbf16>
    %c0_1 = arith.constant 0 : index
    %c0_2 = arith.constant 0 : index
    %1 = vector.load %arg2[%c0_1, %c0_2] : memref<128x128xbf16, #tpu.memory_space<vmem>>, vector<128x128xbf16>
    %cst = arith.constant dense<0.000000e+00> : vector<64x128xf32>
    %2 = tpu.matmul %0, %1, %cst {dimension_numbers = #tpu.dot_dimension_numbers<[1], [0], [0], [1], [0, 0, 1, 1], [], []>} : vector<64x128xbf16>, vector<128x128xbf16>, vector<64x128xf32> -> vector<64x128xf32>
    %c0_3 = arith.constant 0 : index
    %c0_4 = arith.constant 0 : index
    %3 = vector.load %arg3[%c0_3, %c0_4] : memref<1x128xf32, #tpu.memory_space<vmem>>, vector<1x128xf32>
    %4 = vector.broadcast %3 : vector<1x128xf32> to vector<64x128xf32>
    %5 = arith.addf %2, %4 : vector<64x128xf32>
    %6 = tpu.iota {dimensions = array<i32: 1>} : vector<64x128xi32>
    %c16_i32 = arith.constant 16 : i32
    %7 = vector.broadcast %c16_i32 : i32 to vector<64x128xi32>
    %8 = arith.cmpi slt, %6, %7 : vector<64x128xi32>
    %cst_5 = arith.constant -1.000000e+30 : f32
    %9 = vector.broadcast %cst_5 : f32 to vector<64x128xf32>
    %10 = arith.select %8, %5, %9 : vector<64x128xi1>, vector<64x128xf32>
    %cst_6 = arith.constant dense<0xFF800000> : vector<64xf32>
    %11 = vector.multi_reduction <maximumf>, %10, %cst_6 [1] : vector<64x128xf32> to vector<64xf32>
    %12 = vector.shape_cast %11 : vector<64xf32> to vector<64x1xf32>
    %13 = vector.broadcast %12 : vector<64x1xf32> to vector<64x128xf32>
    %14 = arith.subf %10, %13 : vector<64x128xf32>
    %15 = math.exp %14 : vector<64x128xf32>
    %cst_7 = arith.constant dense<0.000000e+00> : vector<64xf32>
    %16 = vector.multi_reduction <add>, %15, %cst_7 [1] : vector<64x128xf32> to vector<64xf32>
    %17 = vector.shape_cast %16 : vector<64xf32> to vector<64x1xf32>
    %18 = math.log %17 : vector<64x1xf32>
    %19 = vector.broadcast %18 : vector<64x1xf32> to vector<64x128xf32>
    %20 = arith.subf %14, %19 : vector<64x128xf32>
    %c0_8 = arith.constant 0 : index
    %c0_9 = arith.constant 0 : index
    %21 = vector.load %arg4[%c0_8, %c0_9] : memref<64x128xf32, #tpu.memory_space<vmem>>, vector<64x128xf32>
    tpu.vector_store %arg4[%c0_8, %c0_9], %20 {strides = array<i32>} : memref<64x128xf32, #tpu.memory_space<vmem>>, vector<64x128xf32>,
    return
  }
  func.func @transform_0(%arg0: i32) -> (i32, i32) {
    %c0_i32 = arith.constant 0 : i32
    %c0_i32_0 = arith.constant 0 : i32
    return %arg0, %c0_i32 : i32, i32
  }
  func.func @transform_1(%arg0: i32) -> (i32, i32) {
    %c0_i32 = arith.constant 0 : i32
    %c0_i32_0 = arith.constant 0 : i32
    %c0_i32_1 = arith.constant 0 : i32
    return %c0_i32, %c0_i32_0 : i32, i32
  }
  func.func @transform_2(%arg0: i32) -> (i32, i32) {
    %c0_i32 = arith.constant 0 : i32
    %c0_i32_0 = arith.constant 0 : i32
    %c0_i32_1 = arith.constant 0 : i32
    return %c0_i32, %c0_i32_0 : i32, i32
  }
  func.func @transform_3(%arg0: i32) -> (i32, i32) {
    %c0_i32 = arith.constant 0 : i32
    %c0_i32_0 = arith.constant 0 : i32
    return %arg0, %c0_i32 : i32, i32
  }
}

</mosaic_0001>

<llo_original>
// kernel: deepspeech2_forward.7
$region0: #{deepspeech2_forward.7}
  #allocation0 [shape = 'u32[]', space=smem, size = 0x4, offset = 0x4, fixed_abs, tag = 'smem constant byte address 0x4 - core index']
  #allocation1 [shape = 'u32[72,128]{1,0:T(1,128)}', space=vmem, size = 0x9000, scoped, tag = 'internal scratch']
  #allocation2 [shape = 'f32[128,128]{1,0:T(8,128)}', space=vmem, size = 0x10000, scoped, tag = 'scratch operand']
  %s0 = inlined_call_operand.vmem [shape: bf16[128,512], index: 0, kind: input, shape index: {}]
  %s1 = inlined_call_operand.vmem [shape: bf16[512,128], index: 1, kind: input, shape index: {}]
  %s2 = inlined_call_operand.vmem [shape: f32[1,128], index: 2, kind: input, shape index: {}]
  %s3 = inlined_call_operand.vmem [shape: bf16[128,128], index: 3, kind: output, shape index: {}]
  %s4 = sld [smem:[#allocation0]]
  $region30: #{deepspeech2_forward.7} parent=0
    _
  %s6 = ssub.s32 1, %s4
  %s7 = scalar_select 0, %s6, %s4
  // Predicated region
  $region2: #{deepspeech2_forward.7} parent=0 // pred_check
    _
  $region3: #{deepspeech2_forward.7} parent=0 // pred_check_branch
    %9 = sbr.rel (0) target = $region5
  $region4: #{deepspeech2_forward.7} parent=0 // pred_region
    _
  $region5: #{deepspeech2_forward.7} parent=0 // pred_fallthru
    _
  // Predicated region
  $region6: #{deepspeech2_forward.7} parent=0 // pred_check
    _
  $region7: #{deepspeech2_forward.7} parent=0 // pred_check_branch
    %11 = sbr.rel (0) target = $region9
  $region8: #{deepspeech2_forward.7} parent=0 // pred_region
    _
  $region9: #{deepspeech2_forward.7} parent=0 // pred_fallthru
    _
  // Predicated region
  $region10: #{deepspeech2_forward.7} parent=0 // pred_check
    _
  $region11: #{deepspeech2_forward.7} parent=0 // pred_check_branch
    %13 = sbr.rel (0) target = $region13
  $region12: #{deepspeech2_forward.7} parent=0 // pred_region
    _
  $region13: #{deepspeech2_forward.7} parent=0 // pred_fallthru
    _
  %p14 = scmp.eq.s32.totalorder 0, 0
  // Predicated region
  $region14: #{deepspeech2_forward.7} parent=0 // pred_check
    %p15 = pneg %p14
  $region15: #{deepspeech2_forward.7} parent=0 // pred_check_branch
    %17 = sbr.rel (%p15) target = $region17
  $region16: #{deepspeech2_forward.7} parent=0 // pred_region
    %18 = vst [vmem:[#allocation2] sm:$0xff] 0.0
    %19 = vst [vmem:[#allocation2 + $0x8] sm:$0xff] 0.0
    %20 = vst [vmem:[#allocation2 + $0x10] sm:$0xff] 0.0
    %21 = vst [vmem:[#allocation2 + $0x18] sm:$0xff] 0.0
    %22 = vst [vmem:[#allocation2 + $0x20] sm:$0xff] 0.0
    %23 = vst [vmem:[#allocation2 + $0x28] sm:$0xff] 0.0
    %24 = vst [vmem:[#allocation2 + $0x30] sm:$0xff] 0.0
    %25 = vst [vmem:[#allocation2 + $0x38] sm:$0xff] 0.0
    %26 = vst [vmem:[#allocation2 + $0x40] sm:$0xff] 0.0
    %27 = vst [vmem:[#allocation2 + $0x48] sm:$0xff] 0.0
    %28 = vst [vmem:[#allocation2 + $0x50] sm:$0xff] 0.0
    %29 = vst [vmem:[#allocation2 + $0x58] sm:$0xff] 0.0
    %30 = vst [vmem:[#allocation2 + $0x60] sm:$0xff] 0.0
    %31 = vst [vmem:[#allocation2 + $0x68] sm:$0xff] 0.0
    %32 = vst [vmem:[#allocation2 + $0x70] sm:$0xff] 0.0
    %33 = vst [vmem:[#allocation2 + $0x78] sm:$0xff] 0.0
  $region17: #{deepspeech2_forward.7} parent=0 // pred_fallthru
    _
  %v34 = vld [vmem:[#allocation2] sm:$0xff]
  %v35 = vld [vmem:[#allocation2 + $0x8] sm:$0xff]
  %v36 = vld [vmem:[#allocation2 + $0x10] sm:$0xff]
  %v37 = vld [vmem:[#allocation2 + $0x18] sm:$0xff]
  %v38 = vld [vmem:[#allocation2 + $0x20] sm:$0xff]
  %v39 = vld [vmem:[#allocation2 + $0x28] sm:$0xff]
  %v40 = vld [vmem:[#allocation2 + $0x30] sm:$0xff]
  %v41 = vld [vmem:[#allocation2 + $0x38] sm:$0xff]
  %v42 = vld [vmem:[#allocation2 + $0x40] sm:$0xff]
  %v43 = vld [vmem:[#allocation2 + $0x48] sm:$0xff]
  %v44 = vld [vmem:[#allocation2 + $0x50] sm:$0xff]
  %v45 = vld [vmem:[#allocation2 + $0x58] sm:$0xff]
  %v46 = vld [vmem:[#allocation2 + $0x60] sm:$0xff]
  %v47 = vld [vmem:[#allocation2 + $0x68] sm:$0xff]
  %v48 = vld [vmem:[#allocation2 + $0x70] sm:$0xff]
  %v49 = vld [vmem:[#allocation2 + $0x78] sm:$0xff]
  %v50 = vld [vmem:[%s0] sm:$0xff]
  %v51 = vld [vmem:[%s0 + $0x8] sm:$0xff]
  %v52 = vld [vmem:[%s0 + $0x10] sm:$0xff]
  %v53 = vld [vmem:[%s0 + $0x18] sm:$0xff]
  %v54 = vld [vmem:[%s0 + $0x20] sm:$0xff]
  %v55 = vld [vmem:[%s0 + $0x28] sm:$0xff]
  %v56 = vld [vmem:[%s0 + $0x30] sm:$0xff]
  %v57 = vld [vmem:[%s0 + $0x38] sm:$0xff]
  %v58 = vld [vmem:[%s0 + $0x40] sm:$0xff]
  %v59 = vld [vmem:[%s0 + $0x48] sm:$0xff]
  %v60 = vld [vmem:[%s0 + $0x50] sm:$0xff]
  %v61 = vld [vmem:[%s0 + $0x58] sm:$0xff]
  %v62 = vld [vmem:[%s0 + $0x60] sm:$0xff]
  %v63 = vld [vmem:[%s0 + $0x68] sm:$0xff]
  %v64 = vld [vmem:[%s0 + $0x70] sm:$0xff]
  %v65 = vld [vmem:[%s0 + $0x78] sm:$0xff]
  %v66 = vld [vmem:[%s0 + $0x80] sm:$0xff]
  %v67 = vld [vmem:[%s0 + $0x88] sm:$0xff]
  %v68 = vld [vmem:[%s0 + $0x90] sm:$0xff]
  %v69 = vld [vmem:[%s0 + $0x98] sm:$0xff]
  %v70 = vld [vmem:[%s0 + $0xa0] sm:$0xff]
  %v71 = vld [vmem:[%s0 + $0xa8] sm:$0xff]
  %v72 = vld [vmem:[%s0 + $0xb0] sm:$0xff]
  %v73 = vld [vmem:[%s0 + $0xb8] sm:$0xff]
  %v74 = vld [vmem:[%s0 + $0xc0] sm:$0xff]
  %v75 = vld [vmem:[%s0 + $0xc8] sm:$0xff]
  %v76 = vld [vmem:[%s0 + $0xd0] sm:$0xff]
  %v77 = vld [vmem:[%s0 + $0xd8] sm:$0xff]
  %v78 = vld [vmem:[%s0 + $0xe0] sm:$0xff]
  %v79 = vld [vmem:[%s0 + $0xe8] sm:$0xff]
  %v80 = vld [vmem:[%s0 + $0xf0] sm:$0xff]
  %v81 = vld [vmem:[%s0 + $0xf8] sm:$0xff]
  %v82 = vld [vmem:[%s1] sm:$0xf]
  %v83 = vld [vmem:[%s1 + $0x4] sm:$0xf]
  %v84 = vld [vmem:[%s1 + $0x8] sm:$0xf]
  %v85 = vld [vmem:[%s1 + $0xc] sm:$0xf]
  %v86 = vld [vmem:[%s1 + $0x10] sm:$0xf]
  %v87 = vld [vmem:[%s1 + $0x14] sm:$0xf]
  %v88 = vld [vmem:[%s1 + $0x18] sm:$0xf]
  %v89 = vld [vmem:[%s1 + $0x1c] sm:$0xf]
  %v90 = vld [vmem:[%s1 + $0x20] sm:$0xf]
  %v91 = vld [vmem:[%s1 + $0x24] sm:$0xf]
  %v92 = vld [vmem:[%s1 + $0x28] sm:$0xf]
  %v93 = vld [vmem:[%s1 + $0x2c] sm:$0xf]
  %v94 = vld [vmem:[%s1 + $0x30] sm:$0xf]
  %v95 = vld [vmem:[%s1 + $0x34] sm:$0xf]
  %v96 = vld [vmem:[%s1 + $0x38] sm:$0xf]
  %v97 = vld [vmem:[%s1 + $0x3c] sm:$0xf]
  %v98 = vld [vmem:[%s1 + $0x40] sm:$0xf]
  %v99 = vld [vmem:[%s1 + $0x44] sm:$0xf]
  %v100 = vld [vmem:[%s1 + $0x48] sm:$0xf]
  %v101 = vld [vmem:[%s1 + $0x4c] sm:$0xf]
  %v102 = vld [vmem:[%s1 + $0x50] sm:$0xf]
  %v103 = vld [vmem:[%s1 + $0x54] sm:$0xf]
  %v104 = vld [vmem:[%s1 + $0x58] sm:$0xf]
  %v105 = vld [vmem:[%s1 + $0x5c] sm:$0xf]
  %v106 = vld [vmem:[%s1 + $0x60] sm:$0xf]
  %v107 = vld [vmem:[%s1 + $0x64] sm:$0xf]
  %v108 = vld [vmem:[%s1 + $0x68] sm:$0xf]
  %v109 = vld [vmem:[%s1 + $0x6c] sm:$0xf]
  %v110 = vld [vmem:[%s1 + $0x70] sm:$0xf]
  %v111 = vld [vmem:[%s1 + $0x74] sm:$0xf]
  %v112 = vld [vmem:[%s1 + $0x78] sm:$0xf]
  %v113 = vld [vmem:[%s1 + $0x7c] sm:$0xf]
  %v114 = vld [vmem:[%s1 + $0x80] sm:$0xf]
  %v115 = vld [vmem:[%s1 + $0x84] sm:$0xf]
  %v116 = vld [vmem:[%s1 + $0x88] sm:$0xf]
  %v117 = vld [vmem:[%s1 + $0x8c] sm:$0xf]
  %v118 = vld [vmem:[%s1 + $0x90] sm:$0xf]
  %v119 = vld [vmem:[%s1 + $0x94] sm:$0xf]
  %v120 = vld [vmem:[%s1 + $0x98] sm:$0xf]
  %v121 = vld [vmem:[%s1 + $0x9c] sm:$0xf]
  %v122 = vld [vmem:[%s1 + $0xa0] sm:$0xf]
  %v123 = vld [vmem:[%s1 + $0xa4] sm:$0xf]
  %v124 = vld [vmem:[%s1 + $0xa8] sm:$0xf]
  %v125 = vld [vmem:[%s1 + $0xac] sm:$0xf]
  %v126 = vld [vmem:[%s1 + $0xb0] sm:$0xf]
  %v127 = vld [vmem:[%s1 + $0xb4] sm:$0xf]
  %v128 = vld [vmem:[%s1 + $0xb8] sm:$0xf]
  %v129 = vld [vmem:[%s1 + $0xbc] sm:$0xf]
  %v130 = vld [vmem:[%s1 + $0xc0] sm:$0xf]
  %v131 = vld [vmem:[%s1 + $0xc4] sm:$0xf]
  %v132 = vld [vmem:[%s1 + $0xc8] sm:$0xf]
  %v133 = vld [vmem:[%s1 + $0xcc] sm:$0xf]
  %v134 = vld [vmem:[%s1 + $0xd0] sm:$0xf]
  %v135 = vld [vmem:[%s1 + $0xd4] sm:$0xf]
  %v136 = vld [vmem:[%s1 + $0xd8] sm:$0xf]
  %v137 = vld [vmem:[%s1 + $0xdc] sm:$0xf]
  %v138 = vld [vmem:[%s1 + $0xe0] sm:$0xf]
  %v139 = vld [vmem:[%s1 + $0xe4] sm:$0xf]
  %v140 = vld [vmem:[%s1 + $0xe8] sm:$0xf]
  %v141 = vld [vmem:[%s1 + $0xec] sm:$0xf]
  %v142 = vld [vmem:[%s1 + $0xf0] sm:$0xf]
  %v143 = vld [vmem:[%s1 + $0xf4] sm:$0xf]
  %v144 = vld [vmem:[%s1 + $0xf8] sm:$0xf]
  %v145 = vld [vmem:[%s1 + $0xfc] sm:$0xf]
  %v178 = vunpack.c.l.b16 %v50
  %v179 = vunpack.c.h.b16 %v50
  %v180 = vunpack.c.l.b16 %v51
  %v181 = vunpack.c.h.b16 %v51
  %v182 = vunpack.c.l.b16 %v52
  %v183 = vunpack.c.h.b16 %v52
  %v184 = vunpack.c.l.b16 %v53
  %v185 = vunpack.c.h.b16 %v53
  %v186 = vunpack.c.l.b16 %v54
  %v187 = vunpack.c.h.b16 %v54
  %v188 = vunpack.c.l.b16 %v55
  %v189 = vunpack.c.h.b16 %v55
  %v190 = vunpack.c.l.b16 %v56
  %v191 = vunpack.c.h.b16 %v56
  %v192 = vunpack.c.l.b16 %v57
  %v193 = vunpack.c.h.b16 %v57
  %v194 = vunpack.c.l.b16 %v58
  %v195 = vunpack.c.h.b16 %v58
  %v196 = vunpack.c.l.b16 %v59
  %v197 = vunpack.c.h.b16 %v59
  %v198 = vunpack.c.l.b16 %v60
  %v199 = vunpack.c.h.b16 %v60
  %v200 = vunpack.c.l.b16 %v61
  %v201 = vunpack.c.h.b16 %v61
  %v202 = vunpack.c.l.b16 %v62
  %v203 = vunpack.c.h.b16 %v62
  %v204 = vunpack.c.l.b16 %v63
  %v205 = vunpack.c.h.b16 %v63
  %v206 = vunpack.c.l.b16 %v64
  %v207 = vunpack.c.h.b16 %v64
  %v208 = vunpack.c.l.b16 %v65
  %v209 = vunpack.c.h.b16 %v65
  %v210 = vunpack.c.l.b16 %v66
  %v211 = vunpack.c.h.b16 %v66
  %v212 = vunpack.c.l.b16 %v67
  %v213 = vunpack.c.h.b16 %v67
  %v214 = vunpack.c.l.b16 %v68
  %v215 = vunpack.c.h.b16 %v68
  %v216 = vunpack.c.l.b16 %v69
  %v217 = vunpack.c.h.b16 %v69
  %v218 = vunpack.c.l.b16 %v70
  %v219 = vunpack.c.h.b16 %v70
  %v220 = vunpack.c.l.b16 %v71
  %v221 = vunpack.c.h.b16 %v71
  %v222 = vunpack.c.l.b16 %v72
  %v223 = vunpack.c.h.b16 %v72
  %v224 = vunpack.c.l.b16 %v73
  %v225 = vunpack.c.h.b16 %v73
  %v226 = vunpack.c.l.b16 %v74
  %v227 = vunpack.c.h.b16 %v74
  %v228 = vunpack.c.l.b16 %v75
  %v229 = vunpack.c.h.b16 %v75
  %v230 = vunpack.c.l.b16 %v76
  %v231 = vunpack.c.h.b16 %v76
  %v232 = vunpack.c.l.b16 %v77
  %v233 = vunpack.c.h.b16 %v77
  %v234 = vunpack.c.l.b16 %v78
  %v235 = vunpack.c.h.b16 %v78
  %v236 = vunpack.c.l.b16 %v79
  %v237 = vunpack.c.h.b16 %v79
  %v238 = vunpack.c.l.b16 %v80
  %v239 = vunpack.c.h.b16 %v80
  %v240 = vunpack.c.l.b16 %v81
  %v241 = vunpack.c.h.b16 %v81
  %v242 = vpack.c.b16 %v182, %v178
  %v243 = vpack.c.b16 %v183, %v179
  %v244 = vpack.c.b16 %v184, %v180
  %v245 = vpack.c.b16 %v185, %v181
  %v246 = vpack.c.b16 %v190, %v186
  %v247 = vpack.c.b16 %v191, %v187
  %v248 = vpack.c.b16 %v192, %v188
  %v249 = vpack.c.b16 %v193, %v189
  %v250 = vpack.c.b16 %v198, %v194
  %v251 = vpack.c.b16 %v199, %v195
  %v252 = vpack.c.b16 %v200, %v196
  %v253 = vpack.c.b16 %v201, %v197
  %v254 = vpack.c.b16 %v206, %v202
  %v255 = vpack.c.b16 %v207, %v203
  %v256 = vpack.c.b16 %v208, %v204
  %v257 = vpack.c.b16 %v209, %v205
  %v258 = vpack.c.b16 %v214, %v210
  %v259 = vpack.c.b16 %v215, %v211
  %v260 = vpack.c.b16 %v216, %v212
  %v261 = vpack.c.b16 %v217, %v213
  %v262 = vpack.c.b16 %v222, %v218
  %v263 = vpack.c.b16 %v223, %v219
  %v264 = vpack.c.b16 %v224, %v220
  %v265 = vpack.c.b16 %v225, %v221
  %v266 = vpack.c.b16 %v230, %v226
  %v267 = vpack.c.b16 %v231, %v227
  %v268 = vpack.c.b16 %v232, %v228
  %v269 = vpack.c.b16 %v233, %v229
  %v270 = vpack.c.b16 %v238, %v234
  %v271 = vpack.c.b16 %v239, %v235
  %v272 = vpack.c.b16 %v240, %v236
  %v273 = vpack.c.b16 %v241, %v237
  %v370 = vunpack.c.l.b16 %v82
  %v371 = vunpack.c.l.b16 %v83
  %v372 = vunpack.c.l.b16 %v84
  %v373 = vunpack.c.l.b16 %v85
  %v374 = vunpack.c.l.b16 %v86
  %v375 = vunpack.c.l.b16 %v87
  %v376 = vunpack.c.l.b16 %v88
  %v377 = vunpack.c.l.b16 %v89
  %v378 = vunpack.c.l.b16 %v90
  %v379 = vunpack.c.l.b16 %v91
  %v380 = vunpack.c.l.b16 %v92
  %v381 = vunpack.c.l.b16 %v93
  %v382 = vunpack.c.l.b16 %v94
  %v383 = vunpack.c.l.b16 %v95
  %v384 = vunpack.c.l.b16 %v96
  %v385 = vunpack.c.l.b16 %v97
  %v386 = vunpack.c.l.b16 %v98
  %v387 = vunpack.c.l.b16 %v99
  %v388 = vunpack.c.l.b16 %v100
  %v389 = vunpack.c.l.b16 %v101
  %v390 = vunpack.c.l.b16 %v102
  %v391 = vunpack.c.l.b16 %v103
  %v392 = vunpack.c.l.b16 %v104
  %v393 = vunpack.c.l.b16 %v105
  %v394 = vunpack.c.l.b16 %v106
  %v395 = vunpack.c.l.b16 %v107
  %v396 = vunpack.c.l.b16 %v108
  %v397 = vunpack.c.l.b16 %v109
  %v398 = vunpack.c.l.b16 %v110
  %v399 = vunpack.c.l.b16 %v111
  %v400 = vunpack.c.l.b16 %v112
  %v401 = vunpack.c.l.b16 %v113
  %v402 = vunpack.c.l.b16 %v114
  %v403 = vunpack.c.l.b16 %v115
  %v404 = vunpack.c.l.b16 %v116
  %v405 = vunpack.c.l.b16 %v117
  %v406 = vunpack.c.l.b16 %v118
  %v407 = vunpack.c.l.b16 %v119
  %v408 = vunpack.c.l.b16 %v120
  %v409 = vunpack.c.l.b16 %v121
  %v410 = vunpack.c.l.b16 %v122
  %v411 = vunpack.c.l.b16 %v123
  %v412 = vunpack.c.l.b16 %v124
  %v413 = vunpack.c.l.b16 %v125
  %v414 = vunpack.c.l.b16 %v126
  %v415 = vunpack.c.l.b16 %v127
  %v416 = vunpack.c.l.b16 %v128
  %v417 = vunpack.c.l.b16 %v129
  %v418 = vunpack.c.l.b16 %v130
  %v419 = vunpack.c.l.b16 %v131
  %v420 = vunpack.c.l.b16 %v132
  %v421 = vunpack.c.l.b16 %v133
  %v422 = vunpack.c.l.b16 %v134
  %v423 = vunpack.c.l.b16 %v135
  %v424 = vunpack.c.l.b16 %v136
  %v425 = vunpack.c.l.b16 %v137
  %v426 = vunpack.c.l.b16 %v138
  %v427 = vunpack.c.l.b16 %v139
  %v428 = vunpack.c.l.b16 %v140
  %v429 = vunpack.c.l.b16 %v141
  %v430 = vunpack.c.l.b16 %v142
  %v431 = vunpack.c.l.b16 %v143
  %v432 = vunpack.c.l.b16 %v144
  %v433 = vunpack.c.l.b16 %v145
  %v434 = vpack.c.b16 %v371, %v370
  %v435 = vpack.c.b16 %v373, %v372
  %v436 = vpack.c.b16 %v375, %v374
  %v437 = vpack.c.b16 %v377, %v376
  %v438 = vpack.c.b16 %v379, %v378
  %v439 = vpack.c.b16 %v381, %v380
  %v440 = vpack.c.b16 %v383, %v382
  %v441 = vpack.c.b16 %v385, %v384
  %v442 = vpack.c.b16 %v387, %v386
  %v443 = vpack.c.b16 %v389, %v388
  %v444 = vpack.c.b16 %v391, %v390
  %v445 = vpack.c.b16 %v393, %v392
  %v446 = vpack.c.b16 %v395, %v394
  %v447 = vpack.c.b16 %v397, %v396
  %v448 = vpack.c.b16 %v399, %v398
  %v449 = vpack.c.b16 %v401, %v400
  %v450 = vpack.c.b16 %v403, %v402
  %v451 = vpack.c.b16 %v405, %v404
  %v452 = vpack.c.b16 %v407, %v406
  %v453 = vpack.c.b16 %v409, %v408
  %v454 = vpack.c.b16 %v411, %v410
  %v455 = vpack.c.b16 %v413, %v412
  %v456 = vpack.c.b16 %v415, %v414
  %v457 = vpack.c.b16 %v417, %v416
  %v458 = vpack.c.b16 %v419, %v418
  %v459 = vpack.c.b16 %v421, %v420
  %v460 = vpack.c.b16 %v423, %v422
  %v461 = vpack.c.b16 %v425, %v424
  %v462 = vpack.c.b16 %v427, %v426
  %v463 = vpack.c.b16 %v429, %v428
  %v464 = vpack.c.b16 %v431, %v430
  %v465 = vpack.c.b16 %v433, %v432
  %498 = vmatpush.bf16.msra.mxu0 %v441
  %499 = vmatpush.bf16.msra.mxu0 %v440
  %500 = vmatpush.bf16.msra.mxu0 %v439
  %501 = vmatpush.bf16.msra.mxu0 %v438
  %502 = vmatpush.bf16.msra.mxu0 %v437
  %503 = vmatpush.bf16.msra.mxu0 %v436
  %504 = vmatpush.bf16.msra.mxu0 %v435
  %505 = vmatpush.bf16.msra.mxu0 %v434
  %506 = vmatmul.bf16.gmra.mxu0 %v242
  %v507 = vpop.f32.mrf.mxu0
  %v508 = vadd.f32 0.0, %v507
  %v509 = vpop.f32.mrf.mxu0
  %v510 = vadd.f32 0.0, %v509
  %511 = vmatmul.bf16.gmra.mxu0 %v246
  %v512 = vpop.f32.mrf.mxu0
  %v513 = vadd.f32 0.0, %v512
  %v514 = vpop.f32.mrf.mxu0
  %v515 = vadd.f32 0.0, %v514
  %516 = vmatmul.bf16.gmra.mxu0 %v250
  %v517 = vpop.f32.mrf.mxu0
  %v518 = vadd.f32 0.0, %v517
  %v519 = vpop.f32.mrf.mxu0
  %v520 = vadd.f32 0.0, %v519
  %521 = vmatmul.bf16.gmra.mxu0 %v254
  %v522 = vpop.f32.mrf.mxu0
  %v523 = vadd.f32 0.0, %v522
  %v524 = vpop.f32.mrf.mxu0
  %v525 = vadd.f32 0.0, %v524
  %526 = vmatmul.bf16.gmra.mxu0 %v258
  %v527 = vpop.f32.mrf.mxu0
  %v528 = vadd.f32 0.0, %v527
  %v529 = vpop.f32.mrf.mxu0
  %v530 = vadd.f32 0.0, %v529
  %531 = vmatmul.bf16.gmra.mxu0 %v262
  %v532 = vpop.f32.mrf.mxu0
  %v533 = vadd.f32 0.0, %v532
  %v534 = vpop.f32.mrf.mxu0
  %v535 = vadd.f32 0.0, %v534
  %536 = vmatmul.bf16.gmra.mxu0 %v266
  %v537 = vpop.f32.mrf.mxu0
  %v538 = vadd.f32 0.0, %v537
  %v539 = vpop.f32.mrf.mxu0
  %v540 = vadd.f32 0.0, %v539
  %541 = vmatmul.bf16.gmra.mxu0 %v270
  %v542 = vpop.f32.mrf.mxu0
  %v543 = vadd.f32 0.0, %v542
  %v544 = vpop.f32.mrf.mxu0
  %v545 = vadd.f32 0.0, %v544
  %546 = vdwg.mxu0
  %547 = vmatpush.bf16.msra.mxu0 %v449
  %548 = vmatpush.bf16.msra.mxu0 %v448
  %549 = vmatpush.bf16.msra.mxu0 %v447
  %550 = vmatpush.bf16.msra.mxu0 %v446
  %551 = vmatpush.bf16.msra.mxu0 %v445
  %552 = vmatpush.bf16.msra.mxu0 %v444
  %553 = vmatpush.bf16.msra.mxu0 %v443
  %554 = vmatpush.bf16.msra.mxu0 %v442
  %555 = vmatmul.bf16.gmra.mxu0 %v243
  %v556 = vpop.f32.mrf.mxu0
  %v557 = vadd.f32 %v508, %v556
  %v558 = vpop.f32.mrf.mxu0
  %v559 = vadd.f32 %v510, %v558
  %560 = vmatmul.bf16.gmra.mxu0 %v247
  %v561 = vpop.f32.mrf.mxu0
  %v562 = vadd.f32 %v513, %v561
  %v563 = vpop.f32.mrf.mxu0
  %v564 = vadd.f32 %v515, %v563
  %565 = vmatmul.bf16.gmra.mxu0 %v251
  %v566 = vpop.f32.mrf.mxu0
  %v567 = vadd.f32 %v518, %v566
  %v568 = vpop.f32.mrf.mxu0
  %v569 = vadd.f32 %v520, %v568
  %570 = vmatmul.bf16.gmra.mxu0 %v255
  %v571 = vpop.f32.mrf.mxu0
  %v572 = vadd.f32 %v523, %v571
  %v573 = vpop.f32.mrf.mxu0
  %v574 = vadd.f32 %v525, %v573
  %575 = vmatmul.bf16.gmra.mxu0 %v259
  %v576 = vpop.f32.mrf.mxu0
  %v577 = vadd.f32 %v528, %v576
  %v578 = vpop.f32.mrf.mxu0
  %v579 = vadd.f32 %v530, %v578
  %580 = vmatmul.bf16.gmra.mxu0 %v263
  %v581 = vpop.f32.mrf.mxu0
  %v582 = vadd.f32 %v533, %v581
  %v583 = vpop.f32.mrf.mxu0
  %v584 = vadd.f32 %v535, %v583
  %585 = vmatmul.bf16.gmra.mxu0 %v267
  %v586 = vpop.f32.mrf.mxu0
  %v587 = vadd.f32 %v538, %v586
  %v588 = vpop.f32.mrf.mxu0
  %v589 = vadd.f32 %v540, %v588
  %590 = vmatmul.bf16.gmra.mxu0 %v271
  %v591 = vpop.f32.mrf.mxu0
  %v592 = vadd.f32 %v543, %v591
  %v593 = vpop.f32.mrf.mxu0
  %v594 = vadd.f32 %v545, %v593
  %595 = vdwg.mxu0
  %596 = vmatpush.bf16.msra.mxu0 %v457
  %597 = vmatpush.bf16.msra.mxu0 %v456
  %598 = vmatpush.bf16.msra.mxu0 %v455
  %599 = vmatpush.bf16.msra.mxu0 %v454
  %600 = vmatpush.bf16.msra.mxu0 %v453
  %601 = vmatpush.bf16.msra.mxu0 %v452
  %602 = vmatpush.bf16.msra.mxu0 %v451
  %603 = vmatpush.bf16.msra.mxu0 %v450
  %604 = vmatmul.bf16.gmra.mxu0 %v244
  %v605 = vpop.f32.mrf.mxu0
  %v606 = vadd.f32 %v557, %v605
  %v607 = vpop.f32.mrf.mxu0
  %v608 = vadd.f32 %v559, %v607
  %609 = vmatmul.bf16.gmra.mxu0 %v248
  %v610 = vpop.f32.mrf.mxu0
  %v611 = vadd.f32 %v562, %v610
  %v612 = vpop.f32.mrf.mxu0
  %v613 = vadd.f32 %v564, %v612
  %614 = vmatmul.bf16.gmra.mxu0 %v252
  %v615 = vpop.f32.mrf.mxu0
  %v616 = vadd.f32 %v567, %v615
  %v617 = vpop.f32.mrf.mxu0
  %v618 = vadd.f32 %v569, %v617
  %619 = vmatmul.bf16.gmra.mxu0 %v256
  %v620 = vpop.f32.mrf.mxu0
  %v621 = vadd.f32 %v572, %v620
  %v622 = vpop.f32.mrf.mxu0
  %v623 = vadd.f32 %v574, %v622
  %624 = vmatmul.bf16.gmra.mxu0 %v260
  %v625 = vpop.f32.mrf.mxu0
  %v626 = vadd.f32 %v577, %v625
  %v627 = vpop.f32.mrf.mxu0
  %v628 = vadd.f32 %v579, %v627
  %629 = vmatmul.bf16.gmra.mxu0 %v264
  %v630 = vpop.f32.mrf.mxu0
  %v631 = vadd.f32 %v582, %v630
  %v632 = vpop.f32.mrf.mxu0
  %v633 = vadd.f32 %v584, %v632
  %634 = vmatmul.bf16.gmra.mxu0 %v268
  %v635 = vpop.f32.mrf.mxu0
  %v636 = vadd.f32 %v587, %v635
  %v637 = vpop.f32.mrf.mxu0
  %v638 = vadd.f32 %v589, %v637
  %639 = vmatmul.bf16.gmra.mxu0 %v272
  %v640 = vpop.f32.mrf.mxu0
  %v641 = vadd.f32 %v592, %v640
  %v642 = vpop.f32.mrf.mxu0
  %v643 = vadd.f32 %v594, %v642
  %644 = vdwg.mxu0
  %645 = vmatpush.bf16.msra.mxu0 %v465
  %646 = vmatpush.bf16.msra.mxu0 %v464
  %647 = vmatpush.bf16.msra.mxu0 %v463
  %648 = vmatpush.bf16.msra.mxu0 %v462
  %649 = vmatpush.bf16.msra.mxu0 %v461
  %650 = vmatpush.bf16.msra.mxu0 %v460
  %651 = vmatpush.bf16.msra.mxu0 %v459
  %652 = vmatpush.bf16.msra.mxu0 %v458
  %653 = vmatmul.bf16.gmra.mxu0 %v245
  %v654 = vpop.f32.mrf.mxu0
  %v655 = vadd.f32 %v606, %v654
  %v656 = vpop.f32.mrf.mxu0
  %v657 = vadd.f32 %v608, %v656
  %658 = vmatmul.bf16.gmra.mxu0 %v249
  %v659 = vpop.f32.mrf.mxu0
  %v660 = vadd.f32 %v611, %v659
  %v661 = vpop.f32.mrf.mxu0
  %v662 = vadd.f32 %v613, %v661
  %663 = vmatmul.bf16.gmra.mxu0 %v253
  %v664 = vpop.f32.mrf.mxu0
  %v665 = vadd.f32 %v616, %v664
  %v666 = vpop.f32.mrf.mxu0
  %v667 = vadd.f32 %v618, %v666
  %668 = vmatmul.bf16.gmra.mxu0 %v257
  %v669 = vpop.f32.mrf.mxu0
  %v670 = vadd.f32 %v621, %v669
  %v671 = vpop.f32.mrf.mxu0
  %v672 = vadd.f32 %v623, %v671
  %673 = vmatmul.bf16.gmra.mxu0 %v261
  %v674 = vpop.f32.mrf.mxu0
  %v675 = vadd.f32 %v626, %v674
  %v676 = vpop.f32.mrf.mxu0
  %v677 = vadd.f32 %v628, %v676
  %678 = vmatmul.bf16.gmra.mxu0 %v265
  %v679 = vpop.f32.mrf.mxu0
  %v680 = vadd.f32 %v631, %v679
  %v681 = vpop.f32.mrf.mxu0
  %v682 = vadd.f32 %v633, %v681
  %683 = vmatmul.bf16.gmra.mxu0 %v269
  %v684 = vpop.f32.mrf.mxu0
  %v685 = vadd.f32 %v636, %v684
  %v686 = vpop.f32.mrf.mxu0
  %v687 = vadd.f32 %v638, %v686
  %688 = vmatmul.bf16.gmra.mxu0 %v273
  %v689 = vpop.f32.mrf.mxu0
  %v690 = vadd.f32 %v641, %v689
  %v691 = vpop.f32.mrf.mxu0
  %v692 = vadd.f32 %v643, %v691
  %693 = vdwg.mxu0
  %v694 = vadd.f32 %v34, %v655
  %v695 = vadd.f32 %v35, %v657
  %v696 = vadd.f32 %v36, %v660
  %v697 = vadd.f32 %v37, %v662
  %v698 = vadd.f32 %v38, %v665
  %v699 = vadd.f32 %v39, %v667
  %v700 = vadd.f32 %v40, %v670
  %v701 = vadd.f32 %v41, %v672
  %v702 = vadd.f32 %v42, %v675
  %v703 = vadd.f32 %v43, %v677
  %v704 = vadd.f32 %v44, %v680
  %v705 = vadd.f32 %v45, %v682
  %v706 = vadd.f32 %v46, %v685
  %v707 = vadd.f32 %v47, %v687
  %v708 = vadd.f32 %v48, %v690
  %v709 = vadd.f32 %v49, %v692
  %710 = vst [vmem:[#allocation2] sm:$0xff] %v694
  %711 = vst [vmem:[#allocation2 + $0x8] sm:$0xff] %v695
  %712 = vst [vmem:[#allocation2 + $0x10] sm:$0xff] %v696
  %713 = vst [vmem:[#allocation2 + $0x18] sm:$0xff] %v697
  %714 = vst [vmem:[#allocation2 + $0x20] sm:$0xff] %v698
  %715 = vst [vmem:[#allocation2 + $0x28] sm:$0xff] %v699
  %716 = vst [vmem:[#allocation2 + $0x30] sm:$0xff] %v700
  %717 = vst [vmem:[#allocation2 + $0x38] sm:$0xff] %v701
  %718 = vst [vmem:[#allocation2 + $0x40] sm:$0xff] %v702
  %719 = vst [vmem:[#allocation2 + $0x48] sm:$0xff] %v703
  %720 = vst [vmem:[#allocation2 + $0x50] sm:$0xff] %v704
  %721 = vst [vmem:[#allocation2 + $0x58] sm:$0xff] %v705
  %722 = vst [vmem:[#allocation2 + $0x60] sm:$0xff] %v706
  %723 = vst [vmem:[#allocation2 + $0x68] sm:$0xff] %v707
  %724 = vst [vmem:[#allocation2 + $0x70] sm:$0xff] %v708
  %725 = vst [vmem:[#allocation2 + $0x78] sm:$0xff] %v709
  // Predicated region
  $region18: #{deepspeech2_forward.7} parent=0 // pred_check
    %p726 = pneg %p14
  $region19: #{deepspeech2_forward.7} parent=0 // pred_check_branch
    %728 = sbr.rel (%p726) target = $region21
  $region20: #{deepspeech2_forward.7} parent=0 // pred_region
    %v729 = vld [vmem:[#allocation2] sm:$0xff]
    %v730 = vld [vmem:[#allocation2 + $0x8] sm:$0xff]
    %v731 = vld [vmem:[#allocation2 + $0x10] sm:$0xff]
    %v732 = vld [vmem:[#allocation2 + $0x18] sm:$0xff]
    %v733 = vld [vmem:[#allocation2 + $0x20] sm:$0xff]
    %v734 = vld [vmem:[#allocation2 + $0x28] sm:$0xff]
    %v735 = vld [vmem:[#allocation2 + $0x30] sm:$0xff]
    %v736 = vld [vmem:[#allocation2 + $0x38] sm:$0xff]
    %v737 = vld [vmem:[#allocation2 + $0x40] sm:$0xff]
    %v738 = vld [vmem:[#allocation2 + $0x48] sm:$0xff]
    %v739 = vld [vmem:[#allocation2 + $0x50] sm:$0xff]
    %v740 = vld [vmem:[#allocation2 + $0x58] sm:$0xff]
    %v741 = vld [vmem:[#allocation2 + $0x60] sm:$0xff]
    %v742 = vld [vmem:[#allocation2 + $0x68] sm:$0xff]
    %v743 = vld [vmem:[#allocation2 + $0x70] sm:$0xff]
    %v744 = vld [vmem:[#allocation2 + $0x78] sm:$0xff]
    %v745 = vld [vmem:[%s2] sm:$0x1]
    %v747 = vperm.slane %v745, 0
    %v749 = vadd.f32 %v729, %v747
    %v750 = vadd.f32 %v730, %v747
    %v751 = vadd.f32 %v731, %v747
    %v752 = vadd.f32 %v732, %v747
    %v753 = vadd.f32 %v733, %v747
    %v754 = vadd.f32 %v734, %v747
    %v755 = vadd.f32 %v735, %v747
    %v756 = vadd.f32 %v736, %v747
    %v757 = vadd.f32 %v737, %v747
    %v758 = vadd.f32 %v738, %v747
    %v759 = vadd.f32 %v739, %v747
    %v760 = vadd.f32 %v740, %v747
    %v761 = vadd.f32 %v741, %v747
    %v762 = vadd.f32 %v742, %v747
    %v763 = vadd.f32 %v743, %v747
    %v764 = vadd.f32 %v744, %v747
    %v765 = vmax.f32 %v749, 0.0
    %v766 = vmax.f32 %v750, 0.0
    %v767 = vmax.f32 %v751, 0.0
    %v768 = vmax.f32 %v752, 0.0
    %v769 = vmax.f32 %v753, 0.0
    %v770 = vmax.f32 %v754, 0.0
    %v771 = vmax.f32 %v755, 0.0
    %v772 = vmax.f32 %v756, 0.0
    %v773 = vmax.f32 %v757, 0.0
    %v774 = vmax.f32 %v758, 0.0
    %v775 = vmax.f32 %v759, 0.0
    %v776 = vmax.f32 %v760, 0.0
    %v777 = vmax.f32 %v761, 0.0
    %v778 = vmax.f32 %v762, 0.0
    %v779 = vmax.f32 %v763, 0.0
    %v780 = vmax.f32 %v764, 0.0
    %v781 = vmin.f32 %v765, 20.0
    %v782 = vmin.f32 %v766, 20.0
    %v783 = vmin.f32 %v767, 20.0
    %v784 = vmin.f32 %v768, 20.0
    %v785 = vmin.f32 %v769, 20.0
    %v786 = vmin.f32 %v770, 20.0
    %v787 = vmin.f32 %v771, 20.0
    %v788 = vmin.f32 %v772, 20.0
    %v789 = vmin.f32 %v773, 20.0
    %v790 = vmin.f32 %v774, 20.0
    %v791 = vmin.f32 %v775, 20.0
    %v792 = vmin.f32 %v776, 20.0
    %v793 = vmin.f32 %v777, 20.0
    %v794 = vmin.f32 %v778, 20.0
    %v795 = vmin.f32 %v779, 20.0
    %v796 = vmin.f32 %v780, 20.0
    %v797 = vpack.c.bf16 %v781, %v781
    %v798 = vpack.c.bf16 %v782, %v782
    %v799 = vpack.c.bf16 %v783, %v783
    %v800 = vpack.c.bf16 %v784, %v784
    %v801 = vpack.c.bf16 %v785, %v785
    %v802 = vpack.c.bf16 %v786, %v786
    %v803 = vpack.c.bf16 %v787, %v787
    %v804 = vpack.c.bf16 %v788, %v788
    %v805 = vpack.c.bf16 %v789, %v789
    %v806 = vpack.c.bf16 %v790, %v790
    %v807 = vpack.c.bf16 %v791, %v791
    %v808 = vpack.c.bf16 %v792, %v792
    %v809 = vpack.c.bf16 %v793, %v793
    %v810 = vpack.c.bf16 %v794, %v794
    %v811 = vpack.c.bf16 %v795, %v795
    %v812 = vpack.c.bf16 %v796, %v796
    %813 = vst [vmem:[%s3] sm:$0xf] %v797
    %814 = vst [vmem:[%s3 + $0x4] sm:$0xf] %v798
    %815 = vst [vmem:[%s3 + $0x8] sm:$0xf] %v799
    %816 = vst [vmem:[%s3 + $0xc] sm:$0xf] %v800
    %817 = vst [vmem:[%s3 + $0x10] sm:$0xf] %v801
    %818 = vst [vmem:[%s3 + $0x14] sm:$0xf] %v802
    %819 = vst [vmem:[%s3 + $0x18] sm:$0xf] %v803
    %820 = vst [vmem:[%s3 + $0x1c] sm:$0xf] %v804
    %821 = vst [vmem:[%s3 + $0x20] sm:$0xf] %v805
    %822 = vst [vmem:[%s3 + $0x24] sm:$0xf] %v806
    %823 = vst [vmem:[%s3 + $0x28] sm:$0xf] %v807
    %824 = vst [vmem:[%s3 + $0x2c] sm:$0xf] %v808
    %825 = vst [vmem:[%s3 + $0x30] sm:$0xf] %v809
    %826 = vst [vmem:[%s3 + $0x34] sm:$0xf] %v810
    %827 = vst [vmem:[%s3 + $0x38] sm:$0xf] %v811
    %828 = vst [vmem:[%s3 + $0x3c] sm:$0xf] %v812
  $region21: #{deepspeech2_forward.7} parent=0 // pred_fallthru
    _
  // Predicated region
  $region22: #{deepspeech2_forward.7} parent=0 // pred_check
    _
  $region23: #{deepspeech2_forward.7} parent=0 // pred_check_branch
    %830 = sbr.rel (0) target = $region25
  $region24: #{deepspeech2_forward.7} parent=0 // pred_region
    _
  $region25: #{deepspeech2_forward.7} parent=0 // pred_fallthru
    _
  // Predicated region
  $region26: #{deepspeech2_forward.7} parent=0 // pred_check
    _
  $region27: #{deepspeech2_forward.7} parent=0 // pred_check_branch
    %832 = sbr.rel (0) target = $region29
  $region28: #{deepspeech2_forward.7} parent=0 // pred_region
    _
  $region29: #{deepspeech2_forward.7} parent=0 // pred_fallthru
    _

// kernel: deepspeech2_forward.8
$region0: #{deepspeech2_forward.8}
  #allocation0 [shape = 'u32[]', space=smem, size = 0x4, offset = 0x4, fixed_abs, tag = 'smem constant byte address 0x4 - core index']
  #allocation1 [shape = 'u32[72,128]{1,0:T(1,128)}', space=vmem, size = 0x9000, scoped, tag = 'internal scratch']
  #allocation2 [shape = 'f32[64,128]{1,0:T(8,128)}', space=vmem, size = 0x8000, scoped, tag = 'scratch operand']
  %s0 = inlined_call_operand.vmem [shape: bf16[64,8192], index: 0, kind: input, shape index: {}]
  %s1 = inlined_call_operand.vmem [shape: bf16[8192,128], index: 1, kind: input, shape index: {}]
  %s2 = inlined_call_operand.vmem [shape: f32[1,128], index: 2, kind: input, shape index: {}]
  %s3 = inlined_call_operand.vmem [shape: bf16[64,128], index: 3, kind: output, shape index: {}]
  %s4 = sld [smem:[#allocation0]]
  $region76: #{deepspeech2_forward.8} parent=0
    _
  %s6 = ssub.s32 1, %s4
  %s7 = scalar_select 0, %s6, %s4
  $region1: #{deepspeech2_forward.8} parent=0
    #allocation3 [shape = 'u8[262144]{0}', space=vmem, size = 0x40000, scoped, tag = 'input window, operand 0']
    loop: start=0, step=1, limit=10
    $region2: #{deepspeech2_forward.8} parent=1 // loop_pre_header
      _
    $region3: #{deepspeech2_forward.8} parent=1 // loop_header
      %s9 = sphi 0, %s13
      %p10 = scmp.ge.s32.totalorder %s9, 10
      %s16 = sphi 0, %s35
      %s17 = sphi 0, %s31
      %s18 = sphi 0, %s27
      %s19 = sphi 0, %s16
      %s20 = sphi 0, %s17
      %s21 = sphi 0, %s18
      %s22 = sphi 0, %s19
      %s23 = sphi 0, %s20
      %s24 = sphi 0, %s21
      %s40 = sphi 0, %s42
      %s43 = sphi 0, %s40
      %s44 = sphi 0, %s43
      %s60 = sphi 0, %s44
      %s68 = sphi 0, %s70
      %s71 = sphi 0, %s68
      %s72 = sphi 0, %s71
      %s88 = sphi 0, %s72
      %s94 = sphi 0, %s96
      %s97 = sphi 0, %s94
      %s98 = sphi 0, %s97
      %s114 = sphi 0, %s98
      %s122 = sphi 0, %s124
      %s125 = sphi 0, %s122
      %s126 = sphi 0, %s125
      %s142 = sphi 0, %s126
    $region4: #{deepspeech2_forward.8} parent=1 // loop_header_branch
      %12 = sbr.rel (%p10) target = $region8
    $region5: #{deepspeech2_forward.8} parent=1 // loop_body
      %s14 = ssub.s32 %s9, 1
      %s15 = ssub.s32 %s9, 2
      %s25 = sadd.s32 1, %s18
      %p26 = scmp.ge.s32.totalorder %s25, 8
      %s27 = scalar_select %p26, 0, %s25
      %s28 = sadd.s32 1, %s17
      %s29 = scalar_select %p26, %s28, %s17
      %p30 = scmp.ge.s32.totalorder %s29, 1
      %s31 = scalar_select %p30, 0, %s29
      %s32 = sadd.s32 1, %s16
      %s33 = scalar_select %p30, %s32, %s16
      %p34 = scmp.ge.s32.totalorder %s33, 1
      %s35 = scalar_select %p34, 0, %s33
      %s36 = ssub.s32 %s16, %s35
      %s37 = ssub.s32 %s18, %s27
      %s38 = sor.u32 %s36, %s37
      %p39 = scmp.eq.s32.totalorder %s38, 0
      %s41 = sadd.s32 %s40, 1
      %s42 = scalar_select %p39, %s40, %s41
      %p45 = pneg %p39
      %p46 = scmp.eq.s32.totalorder %s9, 7
      %p47 = por %p45, %p46
      %p48 = scmp.ne.s32.totalorder %s40, %s43
      %p49 = scmp.eq.s32.totalorder %s9, 0
      %p50 = por %p48, %p49
      %p51 = scmp.ne.s32.totalorder %s40, %s43
      %p52 = scmp.eq.s32.totalorder %s14, 7
      %p53 = por %p51, %p52
      %p54 = scmp.ne.s32.totalorder %s43, %s44
      %p55 = scmp.eq.s32.totalorder %s14, 0
      %p56 = por %p54, %p55
      %p57 = scmp.ne.s32.totalorder %s43, %s44
      %p58 = scmp.eq.s32.totalorder %s15, 7
      %p59 = por %p57, %p58
      %p61 = scmp.ne.s32.totalorder %s44, %s60
      %p62 = scmp.eq.s32.totalorder %s15, 0
      %p63 = por %p61, %p62
      %s64 = ssub.s32 %s18, %s27
      %s65 = ssub.s32 %s17, %s31
      %s66 = sor.u32 %s64, %s65
      %p67 = scmp.eq.s32.totalorder %s66, 0
      %s69 = sadd.s32 %s68, 1
      %s70 = scalar_select %p67, %s68, %s69
      %p73 = pneg %p67
      %p74 = scmp.eq.s32.totalorder %s9, 7
      %p75 = por %p73, %p74
      %p76 = scmp.ne.s32.totalorder %s68, %s71
      %p77 = scmp.eq.s32.totalorder %s9, 0
      %p78 = por %p76, %p77
      %p79 = scmp.ne.s32.totalorder %s68, %s71
      %p80 = scmp.eq.s32.totalorder %s14, 7
      %p81 = por %p79, %p80
      %p82 = scmp.ne.s32.totalorder %s71, %s72
      %p83 = scmp.eq.s32.totalorder %s14, 0
      %p84 = por %p82, %p83
      %p85 = scmp.ne.s32.totalorder %s71, %s72
      %p86 = scmp.eq.s32.totalorder %s15, 7
      %p87 = por %p85, %p86
      %p89 = scmp.ne.s32.totalorder %s72, %s88
      %p90 = scmp.eq.s32.totalorder %s15, 0
      %p91 = por %p89, %p90
      %s92 = ssub.s32 %s17, %s31
      %p93 = scmp.eq.s32.totalorder %s92, 0
      %s95 = sadd.s32 %s94, 1
      %s96 = scalar_select %p93, %s94, %s95
      %p99 = pneg %p93
      %p100 = scmp.eq.s32.totalorder %s9, 7
      %p101 = por %p99, %p100
      %p102 = scmp.ne.s32.totalorder %s94, %s97
      %p103 = scmp.eq.s32.totalorder %s9, 0
      %p104 = por %p102, %p103
      %p105 = scmp.ne.s32.totalorder %s94, %s97
      %p106 = scmp.eq.s32.totalorder %s14, 7
      %p107 = por %p105, %p106
      %p108 = scmp.ne.s32.totalorder %s97, %s98
      %p109 = scmp.eq.s32.totalorder %s14, 0
      %p110 = por %p108, %p109
      %p111 = scmp.ne.s32.totalorder %s97, %s98
      %p112 = scmp.eq.s32.totalorder %s15, 7
      %p113 = por %p111, %p112
      %p115 = scmp.ne.s32.totalorder %s98, %s114
      %p116 = scmp.eq.s32.totalorder %s15, 0
      %p117 = por %p115, %p116
      %s118 = ssub.s32 %s16, %s35
      %s119 = ssub.s32 %s17, %s31
      %s120 = sor.u32 %s118, %s119
      %p121 = scmp.eq.s32.totalorder %s120, 0
      %s123 = sadd.s32 %s122, 1
      %s124 = scalar_select %p121, %s122, %s123
      %p127 = pneg %p121
      %p128 = scmp.eq.s32.totalorder %s9, 7
      %p129 = por %p127, %p128
      %p130 = scmp.ne.s32.totalorder %s122, %s125
      %p131 = scmp.eq.s32.totalorder %s9, 0
      %p132 = por %p130, %p131
      %p133 = scmp.ne.s32.totalorder %s122, %s125
      %p134 = scmp.eq.s32.totalorder %s14, 7
      %p135 = por %p133, %p134
      %p136 = scmp.ne.s32.totalorder %s125, %s126
      %p137 = scmp.eq.s32.totalorder %s14, 0
      %p138 = por %p136, %p137
      %p139 = scmp.ne.s32.totalorder %s125, %s126
      %p140 = scmp.eq.s32.totalorder %s15, 7
      %p141 = por %p139, %p140
      %p143 = scmp.ne.s32.totalorder %s126, %s142
      %p144 = scmp.eq.s32.totalorder %s15, 0
      %p145 = por %p143, %p144
      %p146 = scmp.le.s32.totalorder 1, %s9
      %p147 = scmp.lt.s32.totalorder %s9, 9
      %p148 = pnand %p146, %p147
      %p149 = pneg %p148
      // Predicated region
      $region9: #{deepspeech2_forward.8} parent=5 // pred_check
        _
      $region10: #{deepspeech2_forward.8} parent=5 // pred_check_branch
        %151 = sbr.rel (%p148) target = $region12
      $region11: #{deepspeech2_forward.8} parent=5 // pred_region
        %s152 = ssub.s32 %s9, 1
        // Predicated region
        $region13: #{deepspeech2_forward.8} parent=11 // pred_check
          %p153 = pneg %p110
        $region14: #{deepspeech2_forward.8} parent=11 // pred_check_branch
          %155 = sbr.rel (%p153) target = $region16
        $region15: #{deepspeech2_forward.8} parent=11 // pred_region
          %p156 = scmp.lt.s32.totalorder %s20, 0
          %s157 = scalar_select %p156, %s20, 0
          %s158 = scalar_lea.vmem %s2, %s157
        $region16: #{deepspeech2_forward.8} parent=11 // pred_fallthru
          _
      $region12: #{deepspeech2_forward.8} parent=5 // pred_fallthru
        _
      %p159 = scmp.lt.s32.totalorder %s9, 8
      // Predicated region
      $region17: #{deepspeech2_forward.8} parent=5 // pred_check
        %p160 = pneg %p159
      $region18: #{deepspeech2_forward.8} parent=5 // pred_check_branch
        %162 = sbr.rel (%p160) target = $region20
      $region19: #{deepspeech2_forward.8} parent=5 // pred_region
        // Predicated region
        $region21: #{deepspeech2_forward.8} parent=19 // pred_check
          %p163 = pneg %p50
        $region22: #{deepspeech2_forward.8} parent=19 // pred_check_branch
          %165 = sbr.rel (%p163) target = $region24
        $region23: #{deepspeech2_forward.8} parent=19 // pred_region
          %s166 = sand.u32 %s40, 1
          %s167 = sand.u32 %s40, 1
          %s168 = smul.addr %s167, 256
          %s169 = scalar_lea.vmem [#allocation3], %s168
          %s170 = smul.u32 8, %s16
          %s171 = smul.u32 8, %s18
          %s172 = smul.addr %s170, 64
          %s173 = sadd.s32 %s171, %s172
          %s174 = smul.addr %s173, 4
          %s175 = scalar_lea.vmem %s0, %s174
          // Predicated region
          $region25: #{deepspeech2_forward.8} parent=23 // pred_check
            _
          $region26: #{deepspeech2_forward.8} parent=23 // pred_check_branch
            %177 = sbr.rel (0) target = $region28
          $region27: #{deepspeech2_forward.8} parent=23 // pred_region
            // Predicated region
            $region29: #{deepspeech2_forward.8} parent=27 // pred_check
              _
            $region30: #{deepspeech2_forward.8} parent=27 // pred_check_branch
              %179 = sbr.rel (0) target = $region32
            $region31: #{deepspeech2_forward.8} parent=27 // pred_region
              loop: start=0, step=1, limit=1
              $region33: #{deepspeech2_forward.8} parent=31 // loop_pre_header
                _
              $region34: #{deepspeech2_forward.8} parent=31 // loop_header
                %s181 = sphi 0, %s185
                %p182 = scmp.ge.s32.totalorder %s181, 1
                %s186 = sphi %s175, %s175
                %s187 = sphi %s169, %s169
              $region35: #{deepspeech2_forward.8} parent=31 // loop_header_branch
                %184 = sbr.rel (%p182) target = $region39
              $region36: #{deepspeech2_forward.8} parent=31 // loop_body
                %v188 = vld [vmem:[%s186] sm:$0xff]
                %189 = vst [vmem:[%s187] sm:$0xff] %v188
                %v190 = vld [vmem:[%s186 + $0x8] sm:$0xff]
                %191 = vst [vmem:[%s187 + $0x8] sm:$0xff] %v190
                %v192 = vld [vmem:[%s186 + $0x10] sm:$0xff]
                %193 = vst [vmem:[%s187 + $0x10] sm:$0xff] %v192
                %v194 = vld [vmem:[%s186 + $0x18] sm:$0xff]
                %195 = vst [vmem:[%s187 + $0x18] sm:$0xff] %v194
                %v196 = vld [vmem:[%s186 + $0x100] sm:$0xff]
                %197 = vst [vmem:[%s187 + $0x20] sm:$0xff] %v196
                %v198 = vld [vmem:[%s186 + $0x108] sm:$0xff]
                %199 = vst [vmem:[%s187 + $0x28] sm:$0xff] %v198
                %v200 = vld [vmem:[%s186 + $0x110] sm:$0xff]
                %201 = vst [vmem:[%s187 + $0x30] sm:$0xff] %v200
                %v202 = vld [vmem:[%s186 + $0x118] sm:$0xff]
                %203 = vst [vmem:[%s187 + $0x38] sm:$0xff] %v202
                %v204 = vld [vmem:[%s186 + $0x200] sm:$0xff]
                %205 = vst [vmem:[%s187 + $0x40] sm:$0xff] %v204
                %v206 = vld [vmem:[%s186 + $0x208] sm:$0xff]
                %207 = vst [vmem:[%s187 + $0x48] sm:$0xff] %v206
                %v208 = vld [vmem:[%s186 + $0x210] sm:$0xff]
                %209 = vst [vmem:[%s187 + $0x50] sm:$0xff] %v208
                %v210 = vld [vmem:[%s186 + $0x218] sm:$0xff]
                %211 = vst [vmem:[%s187 + $0x58] sm:$0xff] %v210
                %v212 = vld [vmem:[%s186 + $0x300] sm:$0xff]
                %213 = vst [vmem:[%s187 + $0x60] sm:$0xff] %v212
                %v214 = vld [vmem:[%s186 + $0x308] sm:$0xff]
                %215 = vst [vmem:[%s187 + $0x68] sm:$0xff] %v214
                %v216 = vld [vmem:[%s186 + $0x310] sm:$0xff]
                %217 = vst [vmem:[%s187 + $0x70] sm:$0xff] %v216
                %v218 = vld [vmem:[%s186 + $0x318] sm:$0xff]
                %219 = vst [vmem:[%s187 + $0x78] sm:$0xff] %v218
                %v220 = vld [vmem:[%s186 + $0x400] sm:$0xff]
                %221 = vst [vmem:[%s187 + $0x80] sm:$0xff] %v220
                %v222 = vld [vmem:[%s186 + $0x408] sm:$0xff]
                %223 = vst [vmem:[%s187 + $0x88] sm:$0xff] %v222
                %v224 = vld [vmem:[%s186 + $0x410] sm:$0xff]
                %225 = vst [vmem:[%s187 + $0x90] sm:$0xff] %v224
                %v226 = vld [vmem:[%s186 + $0x418] sm:$0xff]
                %227 = vst [vmem:[%s187 + $0x98] sm:$0xff] %v226
                %v228 = vld [vmem:[%s186 + $0x500] sm:$0xff]
                %229 = vst [vmem:[%s187 + $0xa0] sm:$0xff] %v228
                %v230 = vld [vmem:[%s186 + $0x508] sm:$0xff]
                %231 = vst [vmem:[%s187 + $0xa8] sm:$0xff] %v230
                %v232 = vld [vmem:[%s186 + $0x510] sm:$0xff]
                %233 = vst [vmem:[%s187 + $0xb0] sm:$0xff] %v232
                %v234 = vld [vmem:[%s186 + $0x518] sm:$0xff]
                %235 = vst [vmem:[%s187 + $0xb8] sm:$0xff] %v234
                %v236 = vld [vmem:[%s186 + $0x600] sm:$0xff]
                %237 = vst [vmem:[%s187 + $0xc0] sm:$0xff] %v236
                %v238 = vld [vmem:[%s186 + $0x608] sm:$0xff]
                %239 = vst [vmem:[%s187 + $0xc8] sm:$0xff] %v238
                %v240 = vld [vmem:[%s186 + $0x610] sm:$0xff]
                %241 = vst [vmem:[%s187 + $0xd0] sm:$0xff] %v240
                %v242 = vld [vmem:[%s186 + $0x618] sm:$0xff]
                %243 = vst [vmem:[%s187 + $0xd8] sm:$0xff] %v242
                %v244 = vld [vmem:[%s186 + $0x700] sm:$0xff]
                %245 = vst [vmem:[%s187 + $0xe0] sm:$0xff] %v244
                %v246 = vld [vmem:[%s186 + $0x708] sm:$0xff]
                %247 = vst [vmem:[%s187 + $0xe8] sm:$0xff] %v246
                %v248 = vld [vmem:[%s186 + $0x710] sm:$0xff]
                %249 = vst [vmem:[%s187 + $0xf0] sm:$0xff] %v248
                %v250 = vld [vmem:[%s186 + $0x718] sm:$0xff]
                %251 = vst [vmem:[%s187 + $0xf8] sm:$0xff] %v250
              $region37: #{deepspeech2_forward.8} parent=31 // loop_footer
                %s185 = sadd.s32 1, %s181
              $region38: #{deepspeech2_forward.8} parent=31 // loop_footer_branch
                %180 = sbr.rel target = $region34
              $region39: #{deepspeech2_forward.8} parent=31 // loop_exit
                _
            $region32: #{deepspeech2_forward.8} parent=27 // pred_fallthru
              _
            // Predicated region
            $region40: #{deepspeech2_forward.8} parent=27 // pred_check
              _
            $region41: #{deepspeech2_forward.8} parent=27 // pred_check_branch
              %253 = sbr.rel target = $region43
            $region42: #{deepspeech2_forward.8} parent=27 // pred_region
              _
            $region43: #{deepspeech2_forward.8} parent=27 // pred_fallthru
              _
          $region28: #{deepspeech2_forward.8} parent=23 // pred_fallthru
            _
          %254 = vnop
        $region24: #{deepspeech2_forward.8} parent=19 // pred_fallthru
          _
        // Predicated region
        $region44: #{deepspeech2_forward.8} parent=19 // pred_check
          %p255 = pneg %p78
        $region45: #{deepspeech2_forward.8} parent=19 // pred_check_branch
          %257 = sbr.rel (%p255) target = $region47
        $region46: #{deepspeech2_forward.8} parent=19 // pred_region
          %s258 = smul.u32 128, %s18
          %p259 = scmp.lt.s32.totalorder %s258, 1023
          %s260 = scalar_select %p259, %s258, 1023
          %p261 = scmp.lt.s32.totalorder %s17, 0
          %s262 = scalar_select %p261, %s17, 0
          %s263 = sadd.s32 %s262, %s260
          %s264 = smul.addr %s263, 4
          %s265 = scalar_lea.vmem %s1, %s264
          %s266 = smul.u32 128, %s18
        $region47: #{deepspeech2_forward.8} parent=19 // pred_fallthru
          _
      $region20: #{deepspeech2_forward.8} parent=5 // pred_fallthru
        _
      %p267 = scmp.le.s32.totalorder 1, %s9
      %p268 = scmp.lt.s32.totalorder %s9, 9
      %p269 = pnand %p267, %p268
      %p270 = pneg %p269
      // Predicated region
      $region48: #{deepspeech2_forward.8} parent=5 // pred_check
        _
      $region49: #{deepspeech2_forward.8} parent=5 // pred_check_branch
        %272 = sbr.rel (%p269) target = $region51
      $region50: #{deepspeech2_forward.8} parent=5 // pred_region
        %s273 = ssub.s32 %s9, 1
        %s274 = sand.u32 %s43, 1
        %s275 = sand.u32 %s43, 1
        %s276 = smul.addr %s275, 256
        %s277 = scalar_lea.vmem [#allocation3], %s276
        // Predicated region
        $region52: #{deepspeech2_forward.8} parent=50 // pred_check
          %p278 = pneg %p56
        $region53: #{deepspeech2_forward.8} parent=50 // pred_check_branch
          %280 = sbr.rel (%p278) target = $region55
        $region54: #{deepspeech2_forward.8} parent=50 // pred_region
          _
        $region55: #{deepspeech2_forward.8} parent=50 // pred_fallthru
          _
        %s281 = sand.u32 %s43, 1
        %s282 = sand.u32 %s43, 1
        %s283 = smul.addr %s282, 256
        %s284 = scalar_lea.vmem [#allocation3], %s283
        %p285 = pneg %p56
        %p286 = pneg %p53
        %s287 = smul.u32 128, %s21
        %p288 = scmp.lt.s32.totalorder %s287, 1023
        %s289 = scalar_select %p288, %s287, 1023
        %p290 = scmp.lt.s32.totalorder %s20, 0
        %s291 = scalar_select %p290, %s20, 0
        %s292 = sadd.s32 %s291, %s289
        %s293 = smul.addr %s292, 4
        %s294 = scalar_lea.vmem %s1, %s293
        %p295 = pneg %p84
        %p296 = pneg %p81
        %p297 = scmp.lt.s32.totalorder %s20, 0
        %s298 = scalar_select %p297, %s20, 0
        %s299 = scalar_lea.vmem %s2, %s298
        %p300 = pneg %p110
        %p301 = pneg %p107
        %p302 = pneg %p138
        %p303 = pneg %p135
        %s304 = smul.u32 8, %s19
        %p305 = scmp.lt.s32.totalorder %s304, 7
        %s306 = scalar_select %p305, %s304, 7
        %p307 = scmp.lt.s32.totalorder %s20, 0
        %s308 = scalar_select %p307, %s20, 0
        %s309 = sadd.s32 %s308, %s306
        %s310 = smul.addr %s309, 4
        %s311 = scalar_lea.vmem %s3, %s310
        %s312 = smul.u32 8, %s19
        %s313 = smul.u32 8, %s21
        %s314 = smul.u32 128, %s21
        %p315 = scmp.lt.s32.totalorder %s314, 1023
        %s316 = scalar_select %p315, %s314, 1023
        %p317 = scmp.lt.s32.totalorder %s20, 0
        %s318 = scalar_select %p317, %s20, 0
        %s319 = sadd.s32 %s318, %s316
        %s320 = smul.addr %s319, 4
        %s321 = scalar_lea.vmem %s1, %s320
        %s322 = smul.u32 128, %s21
        %p323 = scmp.lt.s32.totalorder %s20, 0
        %s324 = scalar_select %p323, %s20, 0
        %s325 = scalar_lea.vmem %s2, %s324
        %s326 = smul.u32 8, %s19
        %p327 = scmp.lt.s32.totalorder %s326, 7
        %s328 = scalar_select %p327, %s326, 7
        %p329 = scmp.lt.s32.totalorder %s20, 0
        %s330 = scalar_select %p329, %s20, 0
        %s331 = sadd.s32 %s330, %s328
        %s332 = smul.addr %s331, 4
        %s333 = scalar_lea.vmem %s3, %s332
        %s334 = smul.u32 8, %s19
        %p335 = scmp.eq.s32.totalorder %s21, 0
        // Predicated region
        $region56: #{deepspeech2_forward.8} parent=50 // pred_check
          %p336 = pneg %p335
        $region57: #{deepspeech2_forward.8} parent=50 // pred_check_branch
          %338 = sbr.rel (%p336) target = $region59
        $region58: #{deepspeech2_forward.8} parent=50 // pred_region
          %339 = vst [vmem:[#allocation2] sm:$0xff] 0.0
          %340 = vst [vmem:[#allocation2 + $0x8] sm:$0xff] 0.0
          %341 = vst [vmem:[#allocation2 + $0x10] sm:$0xff] 0.0
          %342 = vst [vmem:[#allocation2 + $0x18] sm:$0xff] 0.0
          %343 = vst [vmem:[#allocation2 + $0x20] sm:$0xff] 0.0
          %344 = vst [vmem:[#allocation2 + $0x28] sm:$0xff] 0.0
          %345 = vst [vmem:[#allocation2 + $0x30] sm:$0xff] 0.0
          %346 = vst [vmem:[#allocation2 + $0x38] sm:$0xff] 0.0
        $region59: #{deepspeech2_forward.8} parent=50 // pred_fallthru
          _
        %v347 = vld [vmem:[#allocation2] sm:$0xff]
        %v348 = vld [vmem:[#allocation2 + $0x8] sm:$0xff]
        %v349 = vld [vmem:[#allocation2 + $0x10] sm:$0xff]
        %v350 = vld [vmem:[#allocation2 + $0x18] sm:$0xff]
        %v351 = vld [vmem:[#allocation2 + $0x20] sm:$0xff]
        %v352 = vld [vmem:[#allocation2 + $0x28] sm:$0xff]
        %v353 = vld [vmem:[#allocation2 + $0x30] sm:$0xff]
        %v354 = vld [vmem:[#allocation2 + $0x38] sm:$0xff]
        %v355 = vld [vmem:[%s277] sm:$0xff]
        %v356 = vld [vmem:[%s277 + $0x8] sm:$0xff]
        %v357 = vld [vmem:[%s277 + $0x10] sm:$0xff]
        %v358 = vld [vmem:[%s277 + $0x18] sm:$0xff]
        %v359 = vld [vmem:[%s277 + $0x20] sm:$0xff]
        %v360 = vld [vmem:[%s277 + $0x28] sm:$0xff]
        %v361 = vld [vmem:[%s277 + $0x30] sm:$0xff]
        %v362 = vld [vmem:[%s277 + $0x38] sm:$0xff]
        %v363 = vld [vmem:[%s277 + $0x40] sm:$0xff]
        %v364 = vld [vmem:[%s277 + $0x48] sm:$0xff]
        %v365 = vld [vmem:[%s277 + $0x50] sm:$0xff]
        %v366 = vld [vmem:[%s277 + $0x58] sm:$0xff]
        %v367 = vld [vmem:[%s277 + $0x60] sm:$0xff]
        %v368 = vld [vmem:[%s277 + $0x68] sm:$0xff]
        %v369 = vld [vmem:[%s277 + $0x70] sm:$0xff]
        %v370 = vld [vmem:[%s277 + $0x78] sm:$0xff]
        %v371 = vld [vmem:[%s277 + $0x80] sm:$0xff]
        %v372 = vld [vmem:[%s277 + $0x88] sm:$0xff]
        %v373 = vld [vmem:[%s277 + $0x90] sm:$0xff]
        %v374 = vld [vmem:[%s277 + $0x98] sm:$0xff]
        %v375 = vld [vmem:[%s277 + $0xa0] sm:$0xff]
        %v376 = vld [vmem:[%s277 + $0xa8] sm:$0xff]
        %v377 = vld [vmem:[%s277 + $0xb0] sm:$0xff]
        %v378 = vld [vmem:[%s277 + $0xb8] sm:$0xff]
        %v379 = vld [vmem:[%s277 + $0xc0] sm:$0xff]
        %v380 = vld [vmem:[%s277 + $0xc8] sm:$0xff]
        %v381 = vld [vmem:[%s277 + $0xd0] sm:$0xff]
        %v382 = vld [vmem:[%s277 + $0xd8] sm:$0xff]
        %v383 = vld [vmem:[%s277 + $0xe0] sm:$0xff]
        %v384 = vld [vmem:[%s277 + $0xe8] sm:$0xff]
        %v385 = vld [vmem:[%s277 + $0xf0] sm:$0xff]
        %v386 = vld [vmem:[%s277 + $0xf8] sm:$0xff]
        %v387 = vld [vmem:[%s321] sm:$0xf]
        %v388 = vld [vmem:[%s321 + $0x4] sm:$0xf]
        %v389 = vld [vmem:[%s321 + $0x8] sm:$0xf]
        %v390 = vld [vmem:[%s321 + $0xc] sm:$0xf]
        %v391 = vld [vmem:[%s321 + $0x10] sm:$0xf]
        %v392 = vld [vmem:[%s321 + $0x14] sm:$0xf]
        %v393 = vld [vmem:[%s321 + $0x18] sm:$0xf]
        %v394 = vld [vmem:[%s321 + $0x1c] sm:$0xf]
        %v395 = vld [vmem:[%s321 + $0x20] sm:$0xf]
        %v396 = vld [vmem:[%s321 + $0x24] sm:$0xf]
        %v397 = vld [vmem:[%s321 + $0x28] sm:$0xf]
        %v398 = vld [vmem:[%s321 + $0x2c] sm:$0xf]
        %v399 = vld [vmem:[%s321 + $0x30] sm:$0xf]
        %v400 = vld [vmem:[%s321 + $0x34] sm:$0xf]
        %v401 = vld [vmem:[%s321 + $0x38] sm:$0xf]
        %v402 = vld [vmem:[%s321 + $0x3c] sm:$0xf]
        %v403 = vld [vmem:[%s321 + $0x40] sm:$0xf]
        %v404 = vld [vmem:[%s321 + $0x44] sm:$0xf]
        %v405 = vld [vmem:[%s321 + $0x48] sm:$0xf]
        %v406 = vld [vmem:[%s321 + $0x4c] sm:$0xf]
        %v407 = vld [vmem:[%s321 + $0x50] sm:$0xf]
        %v408 = vld [vmem:[%s321 + $0x54] sm:$0xf]
        %v409 = vld [vmem:[%s321 + $0x58] sm:$0xf]
        %v410 = vld [vmem:[%s321 + $0x5c] sm:$0xf]
        %v411 = vld [vmem:[%s321 + $0x60] sm:$0xf]
        %v412 = vld [vmem:[%s321 + $0x64] sm:$0xf]
        %v413 = vld [vmem:[%s321 + $0x68] sm:$0xf]
        %v414 = vld [vmem:[%s321 + $0x6c] sm:$0xf]
        %v415 = vld [vmem:[%s321 + $0x70] sm:$0xf]
        %v416 = vld [vmem:[%s321 + $0x74] sm:$0xf]
        %v417 = vld [vmem:[%s321 + $0x78] sm:$0xf]
        %v418 = vld [vmem:[%s321 + $0x7c] sm:$0xf]
        %v419 = vld [vmem:[%s321 + $0x80] sm:$0xf]
        %v420 = vld [vmem:[%s321 + $0x84] sm:$0xf]
        %v421 = vld [vmem:[%s321 + $0x88] sm:$0xf]
        %v422 = vld [vmem:[%s321 + $0x8c] sm:$0xf]
        %v423 = vld [vmem:[%s321 + $0x90] sm:$0xf]
        %v424 = vld [vmem:[%s321 + $0x94] sm:$0xf]
        %v425 = vld [vmem:[%s321 + $0x98] sm:$0xf]
        %v426 = vld [vmem:[%s321 + $0x9c] sm:$0xf]
        %v427 = vld [vmem:[%s321 + $0xa0] sm:$0xf]
        %v428 = vld [vmem:[%s321 + $0xa4] sm:$0xf]
        %v429 = vld [vmem:[%s321 + $0xa8] sm:$0xf]
        %v430 = vld [vmem:[%s321 + $0xac] sm:$0xf]
        %v431 = vld [vmem:[%s321 + $0xb0] sm:$0xf]
        %v432 = vld [vmem:[%s321 + $0xb4] sm:$0xf]
        %v433 = vld [vmem:[%s321 + $0xb8] sm:$0xf]
        %v434 = vld [vmem:[%s321 + $0xbc] sm:$0xf]
        %v435 = vld [vmem:[%s321 + $0xc0] sm:$0xf]
        %v436 = vld [vmem:[%s321 + $0xc4] sm:$0xf]
        %v437 = vld [vmem:[%s321 + $0xc8] sm:$0xf]
        %v438 = vld [vmem:[%s321 + $0xcc] sm:$0xf]
        %v439 = vld [vmem:[%s321 + $0xd0] sm:$0xf]
        %v440 = vld [vmem:[%s321 + $0xd4] sm:$0xf]
        %v441 = vld [vmem:[%s321 + $0xd8] sm:$0xf]
        %v442 = vld [vmem:[%s321 + $0xdc] sm:$0xf]
        %v443 = vld [vmem:[%s321 + $0xe0] sm:$0xf]
        %v444 = vld [vmem:[%s321 + $0xe4] sm:$0xf]
        %v445 = vld [vmem:[%s321 + $0xe8] sm:$0xf]
        %v446 = vld [vmem:[%s321 + $0xec] sm:$0xf]
        %v447 = vld [vmem:[%s321 + $0xf0] sm:$0xf]
        %v448 = vld [vmem:[%s321 + $0xf4] sm:$0xf]
        %v449 = vld [vmem:[%s321 + $0xf8] sm:$0xf]
        %v450 = vld [vmem:[%s321 + $0xfc] sm:$0xf]
        %v451 = vld [vmem:[%s321 + $0x100] sm:$0xf]
        %v452 = vld [vmem:[%s321 + $0x104] sm:$0xf]
        %v453 = vld [vmem:[%s321 + $0x108] sm:$0xf]
        %v454 = vld [vmem:[%s321 + $0x10c] sm:$0xf]
        %v455 = vld [vmem:[%s321 + $0x110] sm:$0xf]
        %v456 = vld [vmem:[%s321 + $0x114] sm:$0xf]
        %v457 = vld [vmem:[%s321 + $0x118] sm:$0xf]
        %v458 = vld [vmem:[%s321 + $0x11c] sm:$0xf]
        %v459 = vld [vmem:[%s321 + $0x120] sm:$0xf]
        %v460 = vld [vmem:[%s321 + $0x124] sm:$0xf]
        %v461 = vld [vmem:[%s321 + $0x128] sm:$0xf]
        %v462 = vld [vmem:[%s321 + $0x12c] sm:$0xf]
        %v463 = vld [vmem:[%s321 + $0x130] sm:$0xf]
        %v464 = vld [vmem:[%s321 + $0x134] sm:$0xf]
        %v465 = vld [vmem:[%s321 + $0x138] sm:$0xf]
        %v466 = vld [vmem:[%s321 + $0x13c] sm:$0xf]
        %v467 = vld [vmem:[%s321 + $0x140] sm:$0xf]
        %v468 = vld [vmem:[%s321 + $0x144] sm:$0xf]
        %v469 = vld [vmem:[%s321 + $0x148] sm:$0xf]
        %v470 = vld [vmem:[%s321 + $0x14c] sm:$0xf]
        %v471 = vld [vmem:[%s321 + $0x150] sm:$0xf]
        %v472 = vld [vmem:[%s321 + $0x154] sm:$0xf]
        %v473 = vld [vmem:[%s321 + $0x158] sm:$0xf]
        %v474 = vld [vmem:[%s321 + $0x15c] sm:$0xf]
        %v475 = vld [vmem:[%s321 + $0x160] sm:$0xf]
        %v476 = vld [vmem:[%s321 + $0x164] sm:$0xf]
        %v477 = vld [vmem:[%s321 + $0x168] sm:$0xf]
        %v478 = vld [vmem:[%s321 + $0x16c] sm:$0xf]
        %v479 = vld [vmem:[%s321 + $0x170] sm:$0xf]
        %v480 = vld [vmem:[%s321 + $0x174] sm:$0xf]
        %v481 = vld [vmem:[%s321 + $0x178] sm:$0xf]
        %v482 = vld [vmem:[%s321 + $0x17c] sm:$0xf]
        %v483 = vld [vmem:[%s321 + $0x180] sm:$0xf]
        %v484 = vld [vmem:[%s321 + $0x184] sm:$0xf]
        %v485 = vld [vmem:[%s321 + $0x188] sm:$0xf]
        %v486 = vld [vmem:[%s321 + $0x18c] sm:$0xf]
        %v487 = vld [vmem:[%s321 + $0x190] sm:$0xf]
        %v488 = vld [vmem:[%s321 + $0x194] sm:$0xf]
        %v489 = vld [vmem:[%s321 + $0x198] sm:$0xf]
        %v490 = vld [vmem:[%s321 + $0x19c] sm:$0xf]
        %v491 = vld [vmem:[%s321 + $0x1a0] sm:$0xf]
        %v492 = vld [vmem:[%s321 + $0x1a4] sm:$0xf]
        %v493 = vld [vmem:[%s321 + $0x1a8] sm:$0xf]
        %v494 = vld [vmem:[%s321 + $0x1ac] sm:$0xf]
        %v495 = vld [vmem:[%s321 + $0x1b0] sm:$0xf]
        %v496 = vld [vmem:[%s321 + $0x1b4] sm:$0xf]
        %v497 = vld [vmem:[%s321 + $0x1b8] sm:$0xf]
        %v498 = vld [vmem:[%s321 + $0x1bc] sm:$0xf]
        %v499 = vld [vmem:[%s321 + $0x1c0] sm:$0xf]
        %v500 = vld [vmem:[%s321 + $0x1c4] sm:$0xf]
        %v501 = vld [vmem:[%s321 + $0x1c8] sm:$0xf]
        %v502 = vld [vmem:[%s321 + $0x1cc] sm:$0xf]
        %v503 = vld [vmem:[%s321 + $0x1d0] sm:$0xf]
        %v504 = vld [vmem:[%s321 + $0x1d4] sm:$0xf]
        %v505 = vld [vmem:[%s321 + $0x1d8] sm:$0xf]
        %v506 = vld [vmem:[%s321 + $0x1dc] sm:$0xf]
        %v507 = vld [vmem:[%s321 + $0x1e0] sm:$0xf]
        %v508 = vld [vmem:[%s321 + $0x1e4] sm:$0xf]
        %v509 = vld [vmem:[%s321 + $0x1e8] sm:$0xf]
        %v510 = vld [vmem:[%s321 + $0x1ec] sm:$0xf]
        %v511 = vld [vmem:[%s321 + $0x1f0] sm:$0xf]
        %v512 = vld [vmem:[%s321 + $0x1f4] sm:$0xf]
        %v513 = vld [vmem:[%s321 + $0x1f8] sm:$0xf]
        %v514 = vld [vmem:[%s321 + $0x1fc] sm:$0xf]
        %v547 = vunpack.c.l.b16 %v355
        %v548 = vunpack.c.h.b16 %v355
        %v549 = vunpack.c.l.b16 %v356
        %v550 = vunpack.c.h.b16 %v356
        %v551 = vunpack.c.l.b16 %v357
        %v552 = vunpack.c.h.b16 %v357
        %v553 = vunpack.c.l.b16 %v358
        %v554 = vunpack.c.h.b16 %v358
        %v555 = vunpack.c.l.b16 %v359
        %v556 = vunpack.c.h.b16 %v359
        %v557 = vunpack.c.l.b16 %v360
        %v558 = vunpack.c.h.b16 %v360
        %v559 = vunpack.c.l.b16 %v361
        %v560 = vunpack.c.h.b16 %v361
        %v561 = vunpack.c.l.b16 %v362
        %v562 = vunpack.c.h.b16 %v362
        %v563 = vunpack.c.l.b16 %v363
        %v564 = vunpack.c.h.b16 %v363
        %v565 = vunpack.c.l.b16 %v364
        %v566 = vunpack.c.h.b16 %v364
        %v567 = vunpack.c.l.b16 %v365
        %v568 = vunpack.c.h.b16 %v365
        %v569 = vunpack.c.l.b16 %v366
        %v570 = vunpack.c.h.b16 %v366
        %v571 = vunpack.c.l.b16 %v367
        %v572 = vunpack.c.h.b16 %v367
        %v573 = vunpack.c.l.b16 %v368
        %v574 = vunpack.c.h.b16 %v368
        %v575 = vunpack.c.l.b16 %v369
        %v576 = vunpack.c.h.b16 %v369
        %v577 = vunpack.c.l.b16 %v370
        %v578 = vunpack.c.h.b16 %v370
        %v579 = vunpack.c.l.b16 %v371
        %v580 = vunpack.c.h.b16 %v371
        %v581 = vunpack.c.l.b16 %v372
        %v582 = vunpack.c.h.b16 %v372
        %v583 = vunpack.c.l.b16 %v373
        %v584 = vunpack.c.h.b16 %v373
        %v585 = vunpack.c.l.b16 %v374
        %v586 = vunpack.c.h.b16 %v374
        %v587 = vunpack.c.l.b16 %v375
        %v588 = vunpack.c.h.b16 %v375
        %v589 = vunpack.c.l.b16 %v376
        %v590 = vunpack.c.h.b16 %v376
        %v591 = vunpack.c.l.b16 %v377
        %v592 = vunpack.c.h.b16 %v377
        %v593 = vunpack.c.l.b16 %v378
        %v594 = vunpack.c.h.b16 %v378
        %v595 = vunpack.c.l.b16 %v379
        %v596 = vunpack.c.h.b16 %v379
        %v597 = vunpack.c.l.b16 %v380
        %v598 = vunpack.c.h.b16 %v380
        %v599 = vunpack.c.l.b16 %v381
        %v600 = vunpack.c.h.b16 %v381
        %v601 = vunpack.c.l.b16 %v382
        %v602 = vunpack.c.h.b16 %v382
        %v603 = vunpack.c.l.b16 %v383
        %v604 = vunpack.c.h.b16 %v383
        %v605 = vunpack.c.l.b16 %v384
        %v606 = vunpack.c.h.b16 %v384
        %v607 = vunpack.c.l.b16 %v385
        %v608 = vunpack.c.h.b16 %v385
        %v609 = vunpack.c.l.b16 %v386
        %v610 = vunpack.c.h.b16 %v386
        %v611 = vpack.c.b16 %v555, %v547
        %v612 = vpack.c.b16 %v556, %v548
        %v613 = vpack.c.b16 %v557, %v549
        %v614 = vpack.c.b16 %v558, %v550
        %v615 = vpack.c.b16 %v559, %v551
        %v616 = vpack.c.b16 %v560, %v552
        %v617 = vpack.c.b16 %v561, %v553
        %v618 = vpack.c.b16 %v562, %v554
        %v619 = vpack.c.b16 %v571, %v563
        %v620 = vpack.c.b16 %v572, %v564
        %v621 = vpack.c.b16 %v573, %v565
        %v622 = vpack.c.b16 %v574, %v566
        %v623 = vpack.c.b16 %v575, %v567
        %v624 = vpack.c.b16 %v576, %v568
        %v625 = vpack.c.b16 %v577, %v569
        %v626 = vpack.c.b16 %v578, %v570
        %v627 = vpack.c.b16 %v587, %v579
        %v628 = vpack.c.b16 %v588, %v580
        %v629 = vpack.c.b16 %v589, %v581
        %v630 = vpack.c.b16 %v590, %v582
        %v631 = vpack.c.b16 %v591, %v583
        %v632 = vpack.c.b16 %v592, %v584
        %v633 = vpack.c.b16 %v593, %v585
        %v634 = vpack.c.b16 %v594, %v586
        %v635 = vpack.c.b16 %v603, %v595
        %v636 = vpack.c.b16 %v604, %v596
        %v637 = vpack.c.b16 %v605, %v597
        %v638 = vpack.c.b16 %v606, %v598
        %v639 = vpack.c.b16 %v607, %v599
        %v640 = vpack.c.b16 %v608, %v600
        %v641 = vpack.c.b16 %v609, %v601
        %v642 = vpack.c.b16 %v610, %v602
        %v803 = vunpack.c.l.b16 %v387
        %v804 = vunpack.c.l.b16 %v388
        %v805 = vunpack.c.l.b16 %v389
        %v806 = vunpack.c.l.b16 %v390
        %v807 = vunpack.c.l.b16 %v391
        %v808 = vunpack.c.l.b16 %v392
        %v809 = vunpack.c.l.b16 %v393
        %v810 = vunpack.c.l.b16 %v394
        %v811 = vunpack.c.l.b16 %v395
        %v812 = vunpack.c.l.b16 %v396
        %v813 = vunpack.c.l.b16 %v397
        %v814 = vunpack.c.l.b16 %v398
        %v815 = vunpack.c.l.b16 %v399
        %v816 = vunpack.c.l.b16 %v400
        %v817 = vunpack.c.l.b16 %v401
        %v818 = vunpack.c.l.b16 %v402
        %v819 = vunpack.c.l.b16 %v403
        %v820 = vunpack.c.l.b16 %v404
        %v821 = vunpack.c.l.b16 %v405
        %v822 = vunpack.c.l.b16 %v406
        %v823 = vunpack.c.l.b16 %v407
        %v824 = vunpack.c.l.b16 %v408
        %v825 = vunpack.c.l.b16 %v409
        %v826 = vunpack.c.l.b16 %v410
        %v827 = vunpack.c.l.b16 %v411
        %v828 = vunpack.c.l.b16 %v412
        %v829 = vunpack.c.l.b16 %v413
        %v830 = vunpack.c.l.b16 %v414
        %v831 = vunpack.c.l.b16 %v415
        %v832 = vunpack.c.l.b16 %v416
        %v833 = vunpack.c.l.b16 %v417
        %v834 = vunpack.c.l.b16 %v418
        %v835 = vunpack.c.l.b16 %v419
        %v836 = vunpack.c.l.b16 %v420
        %v837 = vunpack.c.l.b16 %v421
        %v838 = vunpack.c.l.b16 %v422
        %v839 = vunpack.c.l.b16 %v423
        %v840 = vunpack.c.l.b16 %v424
        %v841 = vunpack.c.l.b16 %v425
        %v842 = vunpack.c.l.b16 %v426
        %v843 = vunpack.c.l.b16 %v427
        %v844 = vunpack.c.l.b16 %v428
        %v845 = vunpack.c.l.b16 %v429
        %v846 = vunpack.c.l.b16 %v430
        %v847 = vunpack.c.l.b16 %v431
        %v848 = vunpack.c.l.b16 %v432
        %v849 = vunpack.c.l.b16 %v433
        %v850 = vunpack.c.l.b16 %v434
        %v851 = vunpack.c.l.b16 %v435
        %v852 = vunpack.c.l.b16 %v436
        %v853 = vunpack.c.l.b16 %v437
        %v854 = vunpack.c.l.b16 %v438
        %v855 = vunpack.c.l.b16 %v439
        %v856 = vunpack.c.l.b16 %v440
        %v857 = vunpack.c.l.b16 %v441
        %v858 = vunpack.c.l.b16 %v442
        %v859 = vunpack.c.l.b16 %v443
        %v860 = vunpack.c.l.b16 %v444
        %v861 = vunpack.c.l.b16 %v445
        %v862 = vunpack.c.l.b16 %v446
        %v863 = vunpack.c.l.b16 %v447
        %v864 = vunpack.c.l.b16 %v448
        %v865 = vunpack.c.l.b16 %v449
        %v866 = vunpack.c.l.b16 %v450
        %v867 = vunpack.c.l.b16 %v451
        %v868 = vunpack.c.l.b16 %v452
        %v869 = vunpack.c.l.b16 %v453
        %v870 = vunpack.c.l.b16 %v454
        %v871 = vunpack.c.l.b16 %v455
        %v872 = vunpack.c.l.b16 %v456
        %v873 = vunpack.c.l.b16 %v457
        %v874 = vunpack.c.l.b16 %v458
        %v875 = vunpack.c.l.b16 %v459
        %v876 = vunpack.c.l.b16 %v460
        %v877 = vunpack.c.l.b16 %v461
        %v878 = vunpack.c.l.b16 %v462
        %v879 = vunpack.c.l.b16 %v463
        %v880 = vunpack.c.l.b16 %v464
        %v881 = vunpack.c.l.b16 %v465
        %v882 = vunpack.c.l.b16 %v466
        %v883 = vunpack.c.l.b16 %v467
        %v884 = vunpack.c.l.b16 %v468
        %v885 = vunpack.c.l.b16 %v469
        %v886 = vunpack.c.l.b16 %v470
        %v887 = vunpack.c.l.b16 %v471
        %v888 = vunpack.c.l.b16 %v472
        %v889 = vunpack.c.l.b16 %v473
        %v890 = vunpack.c.l.b16 %v474
        %v891 = vunpack.c.l.b16 %v475
        %v892 = vunpack.c.l.b16 %v476
        %v893 = vunpack.c.l.b16 %v477
        %v894 = vunpack.c.l.b16 %v478
        %v895 = vunpack.c.l.b16 %v479
        %v896 = vunpack.c.l.b16 %v480
        %v897 = vunpack.c.l.b16 %v481
        %v898 = vunpack.c.l.b16 %v482
        %v899 = vunpack.c.l.b16 %v483
        %v900 = vunpack.c.l.b16 %v484
        %v901 = vunpack.c.l.b16 %v485
        %v902 = vunpack.c.l.b16 %v486
        %v903 = vunpack.c.l.b16 %v487
        %v904 = vunpack.c.l.b16 %v488
        %v905 = vunpack.c.l.b16 %v489
        %v906 = vunpack.c.l.b16 %v490
        %v907 = vunpack.c.l.b16 %v491
        %v908 = vunpack.c.l.b16 %v492
        %v909 = vunpack.c.l.b16 %v493
        %v910 = vunpack.c.l.b16 %v494
        %v911 = vunpack.c.l.b16 %v495
        %v912 = vunpack.c.l.b16 %v496
        %v913 = vunpack.c.l.b16 %v497
        %v914 = vunpack.c.l.b16 %v498
        %v915 = vunpack.c.l.b16 %v499
        %v916 = vunpack.c.l.b16 %v500
        %v917 = vunpack.c.l.b16 %v501
        %v918 = vunpack.c.l.b16 %v502
        %v919 = vunpack.c.l.b16 %v503
        %v920 = vunpack.c.l.b16 %v504
        %v921 = vunpack.c.l.b16 %v505
        %v922 = vunpack.c.l.b16 %v506
        %v923 = vunpack.c.l.b16 %v507
        %v924 = vunpack.c.l.b16 %v508
        %v925 = vunpack.c.l.b16 %v509
        %v926 = vunpack.c.l.b16 %v510
        %v927 = vunpack.c.l.b16 %v511
        %v928 = vunpack.c.l.b16 %v512
        %v929 = vunpack.c.l.b16 %v513
        %v930 = vunpack.c.l.b16 %v514
        %v931 = vpack.c.b16 %v804, %v803
        %v932 = vpack.c.b16 %v806, %v805
        %v933 = vpack.c.b16 %v808, %v807
        %v934 = vpack.c.b16 %v810, %v809
        %v935 = vpack.c.b16 %v812, %v811
        %v936 = vpack.c.b16 %v814, %v813
        %v937 = vpack.c.b16 %v816, %v815
        %v938 = vpack.c.b16 %v818, %v817
        %v939 = vpack.c.b16 %v820, %v819
        %v940 = vpack.c.b16 %v822, %v821
        %v941 = vpack.c.b16 %v824, %v823
        %v942 = vpack.c.b16 %v826, %v825
        %v943 = vpack.c.b16 %v828, %v827
        %v944 = vpack.c.b16 %v830, %v829
        %v945 = vpack.c.b16 %v832, %v831
        %v946 = vpack.c.b16 %v834, %v833
        %v947 = vpack.c.b16 %v836, %v835
        %v948 = vpack.c.b16 %v838, %v837
        %v949 = vpack.c.b16 %v840, %v839
        %v950 = vpack.c.b16 %v842, %v841
        %v951 = vpack.c.b16 %v844, %v843
        %v952 = vpack.c.b16 %v846, %v845
        %v953 = vpack.c.b16 %v848, %v847
        %v954 = vpack.c.b16 %v850, %v849
        %v955 = vpack.c.b16 %v852, %v851
        %v956 = vpack.c.b16 %v854, %v853
        %v957 = vpack.c.b16 %v856, %v855
        %v958 = vpack.c.b16 %v858, %v857
        %v959 = vpack.c.b16 %v860, %v859
        %v960 = vpack.c.b16 %v862, %v861
        %v961 = vpack.c.b16 %v864, %v863
        %v962 = vpack.c.b16 %v866, %v865
        %v963 = vpack.c.b16 %v868, %v867
        %v964 = vpack.c.b16 %v870, %v869
        %v965 = vpack.c.b16 %v872, %v871
        %v966 = vpack.c.b16 %v874, %v873
        %v967 = vpack.c.b16 %v876, %v875
        %v968 = vpack.c.b16 %v878, %v877
        %v969 = vpack.c.b16 %v880, %v879
        %v970 = vpack.c.b16 %v882, %v881
        %v971 = vpack.c.b16 %v884, %v883
        %v972 = vpack.c.b16 %v886, %v885
        %v973 = vpack.c.b16 %v888, %v887
        %v974 = vpack.c.b16 %v890, %v889
        %v975 = vpack.c.b16 %v892, %v891
        %v976 = vpack.c.b16 %v894, %v893
        %v977 = vpack.c.b16 %v896, %v895
        %v978 = vpack.c.b16 %v898, %v897
        %v979 = vpack.c.b16 %v900, %v899
        %v980 = vpack.c.b16 %v902, %v901
        %v981 = vpack.c.b16 %v904, %v903
        %v982 = vpack.c.b16 %v906, %v905
        %v983 = vpack.c.b16 %v908, %v907
        %v984 = vpack.c.b16 %v910, %v909
        %v985 = vpack.c.b16 %v912, %v911
        %v986 = vpack.c.b16 %v914, %v913
        %v987 = vpack.c.b16 %v916, %v915
        %v988 = vpack.c.b16 %v918, %v917
        %v989 = vpack.c.b16 %v920, %v919
        %v990 = vpack.c.b16 %v922, %v921
        %v991 = vpack.c.b16 %v924, %v923
        %v992 = vpack.c.b16 %v926, %v925
        %v993 = vpack.c.b16 %v928, %v927
        %v994 = vpack.c.b16 %v930, %v929
        %1059 = vmatpush.bf16.msra.mxu0 %v938
        %1060 = vmatpush.bf16.msra.mxu0 %v937
        %1061 = vmatpush.bf16.msra.mxu0 %v936
        %1062 = vmatpush.bf16.msra.mxu0 %v935
        %1063 = vmatpush.bf16.msra.mxu0 %v934
        %1064 = vmatpush.bf16.msra.mxu0 %v933
        %1065 = vmatpush.bf16.msra.mxu0 %v932
        %1066 = vmatpush.bf16.msra.mxu0 %v931
        %1067 = vmatmul.bf16.gmra.mxu0 %v611
        %v1068 = vpop.f32.mrf.mxu0
        %v1069 = vadd.f32 0.0, %v1068
        %v1070 = vpop.f32.mrf.mxu0
        %v1071 = vadd.f32 0.0, %v1070
        %1072 = vmatmul.bf16.gmra.mxu0 %v619
        %v1073 = vpop.f32.mrf.mxu0
        %v1074 = vadd.f32 0.0, %v1073
        %v1075 = vpop.f32.mrf.mxu0
        %v1076 = vadd.f32 0.0, %v1075
        %1077 = vmatmul.bf16.gmra.mxu0 %v627
        %v1078 = vpop.f32.mrf.mxu0
        %v1079 = vadd.f32 0.0, %v1078
        %v1080 = vpop.f32.mrf.mxu0
        %v1081 = vadd.f32 0.0, %v1080
        %1082 = vmatmul.bf16.gmra.mxu0 %v635
        %v1083 = vpop.f32.mrf.mxu0
        %v1084 = vadd.f32 0.0, %v1083
        %v1085 = vpop.f32.mrf.mxu0
        %v1086 = vadd.f32 0.0, %v1085
        %1087 = vdwg.mxu0
        %1088 = vmatpush.bf16.msra.mxu0 %v946
        %1089 = vmatpush.bf16.msra.mxu0 %v945
        %1090 = vmatpush.bf16.msra.mxu0 %v944
        %1091 = vmatpush.bf16.msra.mxu0 %v943
        %1092 = vmatpush.bf16.msra.mxu0 %v942
        %1093 = vmatpush.bf16.msra.mxu0 %v941
        %1094 = vmatpush.bf16.msra.mxu0 %v940
        %1095 = vmatpush.bf16.msra.mxu0 %v939
        %1096 = vmatmul.bf16.gmra.mxu0 %v612
        %v1097 = vpop.f32.mrf.mxu0
        %v1098 = vadd.f32 %v1069, %v1097
        %v1099 = vpop.f32.mrf.mxu0
        %v1100 = vadd.f32 %v1071, %v1099
        %1101 = vmatmul.bf16.gmra.mxu0 %v620
        %v1102 = vpop.f32.mrf.mxu0
        %v1103 = vadd.f32 %v1074, %v1102
        %v1104 = vpop.f32.mrf.mxu0
        %v1105 = vadd.f32 %v1076, %v1104
        %1106 = vmatmul.bf16.gmra.mxu0 %v628
        %v1107 = vpop.f32.mrf.mxu0
        %v1108 = vadd.f32 %v1079, %v1107
        %v1109 = vpop.f32.mrf.mxu0
        %v1110 = vadd.f32 %v1081, %v1109
        %1111 = vmatmul.bf16.gmra.mxu0 %v636
        %v1112 = vpop.f32.mrf.mxu0
        %v1113 = vadd.f32 %v1084, %v1112
        %v1114 = vpop.f32.mrf.mxu0
        %v1115 = vadd.f32 %v1086, %v1114
        %1116 = vdwg.mxu0
        %1117 = vmatpush.bf16.msra.mxu0 %v954
        %1118 = vmatpush.bf16.msra.mxu0 %v953
        %1119 = vmatpush.bf16.msra.mxu0 %v952
        %1120 = vmatpush.bf16.msra.mxu0 %v951
        %1121 = vmatpush.bf16.msra.mxu0 %v950
        %1122 = vmatpush.bf16.msra.mxu0 %v949
        %1123 = vmatpush.bf16.msra.mxu0 %v948
        %1124 = vmatpush.bf16.msra.mxu0 %v947
        %1125 = vmatmul.bf16.gmra.mxu0 %v613
        %v1126 = vpop.f32.mrf.mxu0
        %v1127 = vadd.f32 %v1098, %v1126
        %v1128 = vpop.f32.mrf.mxu0
        %v1129 = vadd.f32 %v1100, %v1128
        %1130 = vmatmul.bf16.gmra.mxu0 %v621
        %v1131 = vpop.f32.mrf.mxu0
        %v1132 = vadd.f32 %v1103, %v1131
        %v1133 = vpop.f32.mrf.mxu0
        %v1134 = vadd.f32 %v1105, %v1133
        %1135 = vmatmul.bf16.gmra.mxu0 %v629
        %v1136 = vpop.f32.mrf.mxu0
        %v1137 = vadd.f32 %v1108, %v1136
        %v1138 = vpop.f32.mrf.mxu0
        %v1139 = vadd.f32 %v1110, %v1138
        %1140 = vmatmul.bf16.gmra.mxu0 %v637
        %v1141 = vpop.f32.mrf.mxu0
        %v1142 = vadd.f32 %v1113, %v1141
        %v1143 = vpop.f32.mrf.mxu0
        %v1144 = vadd.f32 %v1115, %v1143
        %1145 = vdwg.mxu0
        %1146 = vmatpush.bf16.msra.mxu0 %v962
        %1147 = vmatpush.bf16.msra.mxu0 %v961
        %1148 = vmatpush.bf16.msra.mxu0 %v960
        %1149 = vmatpush.bf16.msra.mxu0 %v959
        %1150 = vmatpush.bf16.msra.mxu0 %v958
        %1151 = vmatpush.bf16.msra.mxu0 %v957
        %1152 = vmatpush.bf16.msra.mxu0 %v956
        %1153 = vmatpush.bf16.msra.mxu0 %v955
        %1154 = vmatmul.bf16.gmra.mxu0 %v614
        %v1155 = vpop.f32.mrf.mxu0
        %v1156 = vadd.f32 %v1127, %v1155
        %v1157 = vpop.f32.mrf.mxu0
        %v1158 = vadd.f32 %v1129, %v1157
        %1159 = vmatmul.bf16.gmra.mxu0 %v622
        %v1160 = vpop.f32.mrf.mxu0
        %v1161 = vadd.f32 %v1132, %v1160
        %v1162 = vpop.f32.mrf.mxu0
        %v1163 = vadd.f32 %v1134, %v1162
        %1164 = vmatmul.bf16.gmra.mxu0 %v630
        %v1165 = vpop.f32.mrf.mxu0
        %v1166 = vadd.f32 %v1137, %v1165
        %v1167 = vpop.f32.mrf.mxu0
        %v1168 = vadd.f32 %v1139, %v1167
        %1169 = vmatmul.bf16.gmra.mxu0 %v638
        %v1170 = vpop.f32.mrf.mxu0
        %v1171 = vadd.f32 %v1142, %v1170
        %v1172 = vpop.f32.mrf.mxu0
        %v1173 = vadd.f32 %v1144, %v1172
        %1174 = vdwg.mxu0
        %1175 = vmatpush.bf16.msra.mxu0 %v970
        %1176 = vmatpush.bf16.msra.mxu0 %v969
        %1177 = vmatpush.bf16.msra.mxu0 %v968
        %1178 = vmatpush.bf16.msra.mxu0 %v967
        %1179 = vmatpush.bf16.msra.mxu0 %v966
        %1180 = vmatpush.bf16.msra.mxu0 %v965
        %1181 = vmatpush.bf16.msra.mxu0 %v964
        %1182 = vmatpush.bf16.msra.mxu0 %v963
        %1183 = vmatmul.bf16.gmra.mxu0 %v615
        %v1184 = vpop.f32.mrf.mxu0
        %v1185 = vadd.f32 %v1156, %v1184
        %v1186 = vpop.f32.mrf.mxu0
        %v1187 = vadd.f32 %v1158, %v1186
        %1188 = vmatmul.bf16.gmra.mxu0 %v623
        %v1189 = vpop.f32.mrf.mxu0
        %v1190 = vadd.f32 %v1161, %v1189
        %v1191 = vpop.f32.mrf.mxu0
        %v1192 = vadd.f32 %v1163, %v1191
        %1193 = vmatmul.bf16.gmra.mxu0 %v631
        %v1194 = vpop.f32.mrf.mxu0
        %v1195 = vadd.f32 %v1166, %v1194
        %v1196 = vpop.f32.mrf.mxu0
        %v1197 = vadd.f32 %v1168, %v1196
        %1198 = vmatmul.bf16.gmra.mxu0 %v639
        %v1199 = vpop.f32.mrf.mxu0
        %v1200 = vadd.f32 %v1171, %v1199
        %v1201 = vpop.f32.mrf.mxu0
        %v1202 = vadd.f32 %v1173, %v1201
        %1203 = vdwg.mxu0
        %1204 = vmatpush.bf16.msra.mxu0 %v978
        %1205 = vmatpush.bf16.msra.mxu0 %v977
        %1206 = vmatpush.bf16.msra.mxu0 %v976
        %1207 = vmatpush.bf16.msra.mxu0 %v975
        %1208 = vmatpush.bf16.msra.mxu0 %v974
        %1209 = vmatpush.bf16.msra.mxu0 %v973
        %1210 = vmatpush.bf16.msra.mxu0 %v972
        %1211 = vmatpush.bf16.msra.mxu0 %v971
        %1212 = vmatmul.bf16.gmra.mxu0 %v616
        %v1213 = vpop.f32.mrf.mxu0
        %v1214 = vadd.f32 %v1185, %v1213
        %v1215 = vpop.f32.mrf.mxu0
        %v1216 = vadd.f32 %v1187, %v1215
        %1217 = vmatmul.bf16.gmra.mxu0 %v624
        %v1218 = vpop.f32.mrf.mxu0
        %v1219 = vadd.f32 %v1190, %v1218
        %v1220 = vpop.f32.mrf.mxu0
        %v1221 = vadd.f32 %v1192, %v1220
        %1222 = vmatmul.bf16.gmra.mxu0 %v632
        %v1223 = vpop.f32.mrf.mxu0
        %v1224 = vadd.f32 %v1195, %v1223
        %v1225 = vpop.f32.mrf.mxu0
        %v1226 = vadd.f32 %v1197, %v1225
        %1227 = vmatmul.bf16.gmra.mxu0 %v640
        %v1228 = vpop.f32.mrf.mxu0
        %v1229 = vadd.f32 %v1200, %v1228
        %v1230 = vpop.f32.mrf.mxu0
        %v1231 = vadd.f32 %v1202, %v1230
        %1232 = vdwg.mxu0
        %1233 = vmatpush.bf16.msra.mxu0 %v986
        %1234 = vmatpush.bf16.msra.mxu0 %v985
        %1235 = vmatpush.bf16.msra.mxu0 %v984
        %1236 = vmatpush.bf16.msra.mxu0 %v983
        %1237 = vmatpush.bf16.msra.mxu0 %v982
        %1238 = vmatpush.bf16.msra.mxu0 %v981
        %1239 = vmatpush.bf16.msra.mxu0 %v980
        %1240 = vmatpush.bf16.msra.mxu0 %v979
        %1241 = vmatmul.bf16.gmra.mxu0 %v617
        %v1242 = vpop.f32.mrf.mxu0
        %v1243 = vadd.f32 %v1214, %v1242
        %v1244 = vpop.f32.mrf.mxu0
        %v1245 = vadd.f32 %v1216, %v1244
        %1246 = vmatmul.bf16.gmra.mxu0 %v625
        %v1247 = vpop.f32.mrf.mxu0
        %v1248 = vadd.f32 %v1219, %v1247
        %v1249 = vpop.f32.mrf.mxu0
        %v1250 = vadd.f32 %v1221, %v1249
        %1251 = vmatmul.bf16.gmra.mxu0 %v633
        %v1252 = vpop.f32.mrf.mxu0
        %v1253 = vadd.f32 %v1224, %v1252
        %v1254 = vpop.f32.mrf.mxu0
        %v1255 = vadd.f32 %v1226, %v1254
        %1256 = vmatmul.bf16.gmra.mxu0 %v641
        %v1257 = vpop.f32.mrf.mxu0
        %v1258 = vadd.f32 %v1229, %v1257
        %v1259 = vpop.f32.mrf.mxu0
        %v1260 = vadd.f32 %v1231, %v1259
        %1261 = vdwg.mxu0
        %1262 = vmatpush.bf16.msra.mxu0 %v994
        %1263 = vmatpush.bf16.msra.mxu0 %v993
        %1264 = vmatpush.bf16.msra.mxu0 %v992
        %1265 = vmatpush.bf16.msra.mxu0 %v991
        %1266 = vmatpush.bf16.msra.mxu0 %v990
        %1267 = vmatpush.bf16.msra.mxu0 %v989
        %1268 = vmatpush.bf16.msra.mxu0 %v988
        %1269 = vmatpush.bf16.msra.mxu0 %v987
        %1270 = vmatmul.bf16.gmra.mxu0 %v618
        %v1271 = vpop.f32.mrf.mxu0
        %v1272 = vadd.f32 %v1243, %v1271
        %v1273 = vpop.f32.mrf.mxu0
        %v1274 = vadd.f32 %v1245, %v1273
        %1275 = vmatmul.bf16.gmra.mxu0 %v626
        %v1276 = vpop.f32.mrf.mxu0
        %v1277 = vadd.f32 %v1248, %v1276
        %v1278 = vpop.f32.mrf.mxu0
        %v1279 = vadd.f32 %v1250, %v1278
        %1280 = vmatmul.bf16.gmra.mxu0 %v634
        %v1281 = vpop.f32.mrf.mxu0
        %v1282 = vadd.f32 %v1253, %v1281
        %v1283 = vpop.f32.mrf.mxu0
        %v1284 = vadd.f32 %v1255, %v1283
        %1285 = vmatmul.bf16.gmra.mxu0 %v642
        %v1286 = vpop.f32.mrf.mxu0
        %v1287 = vadd.f32 %v1258, %v1286
        %v1288 = vpop.f32.mrf.mxu0
        %v1289 = vadd.f32 %v1260, %v1288
        %1290 = vdwg.mxu0
        %v1291 = vadd.f32 %v347, %v1272
        %v1292 = vadd.f32 %v348, %v1274
        %v1293 = vadd.f32 %v349, %v1277
        %v1294 = vadd.f32 %v350, %v1279
        %v1295 = vadd.f32 %v351, %v1282
        %v1296 = vadd.f32 %v352, %v1284
        %v1297 = vadd.f32 %v353, %v1287
        %v1298 = vadd.f32 %v354, %v1289
        %1299 = vst [vmem:[#allocation2] sm:$0xff] %v1291
        %1300 = vst [vmem:[#allocation2 + $0x8] sm:$0xff] %v1292
        %1301 = vst [vmem:[#allocation2 + $0x10] sm:$0xff] %v1293
        %1302 = vst [vmem:[#allocation2 + $0x18] sm:$0xff] %v1294
        %1303 = vst [vmem:[#allocation2 + $0x20] sm:$0xff] %v1295
        %1304 = vst [vmem:[#allocation2 + $0x28] sm:$0xff] %v1296
        %1305 = vst [vmem:[#allocation2 + $0x30] sm:$0xff] %v1297
        %1306 = vst [vmem:[#allocation2 + $0x38] sm:$0xff] %v1298
        %p1307 = scmp.eq.s32.totalorder %s21, 7
        // Predicated region
        $region60: #{deepspeech2_forward.8} parent=50 // pred_check
          %p1308 = pneg %p1307
        $region61: #{deepspeech2_forward.8} parent=50 // pred_check_branch
          %1310 = sbr.rel (%p1308) target = $region63
        $region62: #{deepspeech2_forward.8} parent=50 // pred_region
          %v1311 = vld [vmem:[#allocation2] sm:$0xff]
          %v1312 = vld [vmem:[#allocation2 + $0x8] sm:$0xff]
          %v1313 = vld [vmem:[#allocation2 + $0x10] sm:$0xff]
          %v1314 = vld [vmem:[#allocation2 + $0x18] sm:$0xff]
          %v1315 = vld [vmem:[#allocation2 + $0x20] sm:$0xff]
          %v1316 = vld [vmem:[#allocation2 + $0x28] sm:$0xff]
          %v1317 = vld [vmem:[#allocation2 + $0x30] sm:$0xff]
          %v1318 = vld [vmem:[#allocation2 + $0x38] sm:$0xff]
          %v1319 = vld [vmem:[%s325] sm:$0x1]
          %v1321 = vperm.slane %v1319, 0
          %v1323 = vadd.f32 %v1311, %v1321
          %v1324 = vadd.f32 %v1312, %v1321
          %v1325 = vadd.f32 %v1313, %v1321
          %v1326 = vadd.f32 %v1314, %v1321
          %v1327 = vadd.f32 %v1315, %v1321
          %v1328 = vadd.f32 %v1316, %v1321
          %v1329 = vadd.f32 %v1317, %v1321
          %v1330 = vadd.f32 %v1318, %v1321
          %v1331 = vmax.f32 %v1323, 0.0
          %v1332 = vmax.f32 %v1324, 0.0
          %v1333 = vmax.f32 %v1325, 0.0
          %v1334 = vmax.f32 %v1326, 0.0
          %v1335 = vmax.f32 %v1327, 0.0
          %v1336 = vmax.f32 %v1328, 0.0
          %v1337 = vmax.f32 %v1329, 0.0
          %v1338 = vmax.f32 %v1330, 0.0
          %v1339 = vmin.f32 %v1331, 20.0
          %v1340 = vmin.f32 %v1332, 20.0
          %v1341 = vmin.f32 %v1333, 20.0
          %v1342 = vmin.f32 %v1334, 20.0
          %v1343 = vmin.f32 %v1335, 20.0
          %v1344 = vmin.f32 %v1336, 20.0
          %v1345 = vmin.f32 %v1337, 20.0
          %v1346 = vmin.f32 %v1338, 20.0
          %v1347 = vpack.c.bf16 %v1339, %v1339
          %v1348 = vpack.c.bf16 %v1340, %v1340
          %v1349 = vpack.c.bf16 %v1341, %v1341
          %v1350 = vpack.c.bf16 %v1342, %v1342
          %v1351 = vpack.c.bf16 %v1343, %v1343
          %v1352 = vpack.c.bf16 %v1344, %v1344
          %v1353 = vpack.c.bf16 %v1345, %v1345
          %v1354 = vpack.c.bf16 %v1346, %v1346
          %1355 = vst [vmem:[%s333] sm:$0xf] %v1347
          %1356 = vst [vmem:[%s333 + $0x4] sm:$0xf] %v1348
          %1357 = vst [vmem:[%s333 + $0x8] sm:$0xf] %v1349
          %1358 = vst [vmem:[%s333 + $0xc] sm:$0xf] %v1350
          %1359 = vst [vmem:[%s333 + $0x10] sm:$0xf] %v1351
          %1360 = vst [vmem:[%s333 + $0x14] sm:$0xf] %v1352
          %1361 = vst [vmem:[%s333 + $0x18] sm:$0xf] %v1353
          %1362 = vst [vmem:[%s333 + $0x1c] sm:$0xf] %v1354
        $region63: #{deepspeech2_forward.8} parent=50 // pred_fallthru
          _
        %s1363 = smul.u32 8, %s19
        %p1364 = scmp.lt.s32.totalorder %s1363, 7
        %s1365 = scalar_select %p1364, %s1363, 7
        %p1366 = scmp.lt.s32.totalorder %s20, 0
        %s1367 = scalar_select %p1366, %s20, 0
        %s1368 = sadd.s32 %s1367, %s1365
        %s1369 = smul.addr %s1368, 4
        %s1370 = scalar_lea.vmem %s3, %s1369
        // Predicated region
        $region64: #{deepspeech2_forward.8} parent=50 // pred_check
          %p1371 = pneg %p135
        $region65: #{deepspeech2_forward.8} parent=50 // pred_check_branch
          %1373 = sbr.rel (%p1371) target = $region67
        $region66: #{deepspeech2_forward.8} parent=50 // pred_region
          %s1374 = smul.u32 8, %s19
        $region67: #{deepspeech2_forward.8} parent=50 // pred_fallthru
          _
        // Predicated region
        $region68: #{deepspeech2_forward.8} parent=50 // pred_check
          %p1375 = pneg %p135
        $region69: #{deepspeech2_forward.8} parent=50 // pred_check_branch
          %1377 = sbr.rel (%p1375) target = $region71
        $region70: #{deepspeech2_forward.8} parent=50 // pred_region
          %s1378 = smul.u32 8, %s19
          %p1379 = scmp.lt.s32.totalorder %s1378, 7
          %s1380 = scalar_select %p1379, %s1378, 7
          %p1381 = scmp.lt.s32.totalorder %s20, 0
          %s1382 = scalar_select %p1381, %s20, 0
          %s1383 = sadd.s32 %s1382, %s1380
          %s1384 = smul.addr %s1383, 4
          %s1385 = scalar_lea.vmem %s3, %s1384
        $region71: #{deepspeech2_forward.8} parent=50 // pred_fallthru
          _
      $region51: #{deepspeech2_forward.8} parent=5 // pred_fallthru
        _
      %p1386 = scmp.le.s32.totalorder 2, %s9
      // Predicated region
      $region72: #{deepspeech2_forward.8} parent=5 // pred_check
        %p1387 = pneg %p1386
      $region73: #{deepspeech2_forward.8} parent=5 // pred_check_branch
        %1389 = sbr.rel (%p1387) target = $region75
      $region74: #{deepspeech2_forward.8} parent=5 // pred_region
        %s1390 = ssub.s32 %s9, 2
      $region75: #{deepspeech2_forward.8} parent=5 // pred_fallthru
        _
    $region6: #{deepspeech2_forward.8} parent=1 // loop_footer
      %s13 = sadd.s32 1, %s9
    $region7: #{deepspeech2_forward.8} parent=1 // loop_footer_branch
      %8 = sbr.rel target = $region3
    $region8: #{deepspeech2_forward.8} parent=1 // loop_exit
      _

// kernel: deepspeech2_forward.9
$region0: #{deepspeech2_forward.9}
  #allocation0 [shape = 'u32[]', space=smem, size = 0x4, offset = 0x4, fixed_abs, tag = 'smem constant byte address 0x4 - core index']
  #allocation1 [shape = 'u32[72,128]{1,0:T(1,128)}', space=vmem, size = 0x9000, scoped, tag = 'internal scratch']
  #allocation2 [shape = 'f32[64,256]{1,0:T(8,128)}', space=vmem, size = 0x10000, scoped, tag = 'scratch operand']
  %s0 = inlined_call_operand.vmem [shape: bf16[64,128], index: 0, kind: input, shape index: {}]
  %s1 = inlined_call_operand.vmem [shape: bf16[128,768], index: 1, kind: input, shape index: {}]
  %s2 = inlined_call_operand.vmem [shape: f32[1,768], index: 2, kind: input, shape index: {}]
  %s3 = inlined_call_operand.vmem [shape: f32[64,768], index: 3, kind: output, shape index: {}]
  %s4 = sld [smem:[#allocation0]]
  $region110: #{deepspeech2_forward.9} parent=0
    _
  %s6 = ssub.s32 1, %s4
  %s7 = scalar_select 0, %s6, %s4
  $region1: #{deepspeech2_forward.9} parent=0
    #allocation3 [shape = 'u8[131072]{0}', space=vmem, size = 0x20000, scoped, tag = 'input window, operand 1']
    #allocation4 [shape = 'u8[131072]{0}', space=vmem, size = 0x20000, scoped, tag = 'output window, operand 0']
    loop: start=0, step=1, limit=5
    $region2: #{deepspeech2_forward.9} parent=1 // loop_pre_header
      _
    $region3: #{deepspeech2_forward.9} parent=1 // loop_header
      %s9 = sphi 0, %s13
      %p10 = scmp.ge.s32.totalorder %s9, 5
      %s16 = sphi 0, %s35
      %s17 = sphi 0, %s31
      %s18 = sphi 0, %s27
      %s19 = sphi 0, %s16
      %s20 = sphi 0, %s17
      %s21 = sphi 0, %s18
      %s22 = sphi 0, %s19
      %s23 = sphi 0, %s20
      %s24 = sphi 0, %s21
      %s40 = sphi 0, %s42
      %s43 = sphi 0, %s40
      %s44 = sphi 0, %s43
      %s60 = sphi 0, %s44
      %s68 = sphi 0, %s70
      %s71 = sphi 0, %s68
      %s72 = sphi 0, %s71
      %s88 = sphi 0, %s72
      %s94 = sphi 0, %s96
      %s97 = sphi 0, %s94
      %s98 = sphi 0, %s97
      %s114 = sphi 0, %s98
      %s122 = sphi 0, %s124
      %s125 = sphi 0, %s122
      %s126 = sphi 0, %s125
      %s142 = sphi 0, %s126
    $region4: #{deepspeech2_forward.9} parent=1 // loop_header_branch
      %12 = sbr.rel (%p10) target = $region8
    $region5: #{deepspeech2_forward.9} parent=1 // loop_body
      %s14 = ssub.s32 %s9, 1
      %s15 = ssub.s32 %s9, 2
      %s25 = sadd.s32 1, %s18
      %p26 = scmp.ge.s32.totalorder %s25, 1
      %s27 = scalar_select %p26, 0, %s25
      %s28 = sadd.s32 1, %s17
      %s29 = scalar_select %p26, %s28, %s17
      %p30 = scmp.ge.s32.totalorder %s29, 3
      %s31 = scalar_select %p30, 0, %s29
      %s32 = sadd.s32 1, %s16
      %s33 = scalar_select %p30, %s32, %s16
      %p34 = scmp.ge.s32.totalorder %s33, 1
      %s35 = scalar_select %p34, 0, %s33
      %s36 = ssub.s32 %s16, %s35
      %s37 = ssub.s32 %s18, %s27
      %s38 = sor.u32 %s36, %s37
      %p39 = scmp.eq.s32.totalorder %s38, 0
      %s41 = sadd.s32 %s40, 1
      %s42 = scalar_select %p39, %s40, %s41
      %p45 = pneg %p39
      %p46 = scmp.eq.s32.totalorder %s9, 2
      %p47 = por %p45, %p46
      %p48 = scmp.ne.s32.totalorder %s40, %s43
      %p49 = scmp.eq.s32.totalorder %s9, 0
      %p50 = por %p48, %p49
      %p51 = scmp.ne.s32.totalorder %s40, %s43
      %p52 = scmp.eq.s32.totalorder %s14, 2
      %p53 = por %p51, %p52
      %p54 = scmp.ne.s32.totalorder %s43, %s44
      %p55 = scmp.eq.s32.totalorder %s14, 0
      %p56 = por %p54, %p55
      %p57 = scmp.ne.s32.totalorder %s43, %s44
      %p58 = scmp.eq.s32.totalorder %s15, 2
      %p59 = por %p57, %p58
      %p61 = scmp.ne.s32.totalorder %s44, %s60
      %p62 = scmp.eq.s32.totalorder %s15, 0
      %p63 = por %p61, %p62
      %s64 = ssub.s32 %s18, %s27
      %s65 = ssub.s32 %s17, %s31
      %s66 = sor.u32 %s64, %s65
      %p67 = scmp.eq.s32.totalorder %s66, 0
      %s69 = sadd.s32 %s68, 1
      %s70 = scalar_select %p67, %s68, %s69
      %p73 = pneg %p67
      %p74 = scmp.eq.s32.totalorder %s9, 2
      %p75 = por %p73, %p74
      %p76 = scmp.ne.s32.totalorder %s68, %s71
      %p77 = scmp.eq.s32.totalorder %s9, 0
      %p78 = por %p76, %p77
      %p79 = scmp.ne.s32.totalorder %s68, %s71
      %p80 = scmp.eq.s32.totalorder %s14, 2
      %p81 = por %p79, %p80
      %p82 = scmp.ne.s32.totalorder %s71, %s72
      %p83 = scmp.eq.s32.totalorder %s14, 0
      %p84 = por %p82, %p83
      %p85 = scmp.ne.s32.totalorder %s71, %s72
      %p86 = scmp.eq.s32.totalorder %s15, 2
      %p87 = por %p85, %p86
      %p89 = scmp.ne.s32.totalorder %s72, %s88
      %p90 = scmp.eq.s32.totalorder %s15, 0
      %p91 = por %p89, %p90
      %s92 = ssub.s32 %s17, %s31
      %p93 = scmp.eq.s32.totalorder %s92, 0
      %s95 = sadd.s32 %s94, 1
      %s96 = scalar_select %p93, %s94, %s95
      %p99 = pneg %p93
      %p100 = scmp.eq.s32.totalorder %s9, 2
      %p101 = por %p99, %p100
      %p102 = scmp.ne.s32.totalorder %s94, %s97
      %p103 = scmp.eq.s32.totalorder %s9, 0
      %p104 = por %p102, %p103
      %p105 = scmp.ne.s32.totalorder %s94, %s97
      %p106 = scmp.eq.s32.totalorder %s14, 2
      %p107 = por %p105, %p106
      %p108 = scmp.ne.s32.totalorder %s97, %s98
      %p109 = scmp.eq.s32.totalorder %s14, 0
      %p110 = por %p108, %p109
      %p111 = scmp.ne.s32.totalorder %s97, %s98
      %p112 = scmp.eq.s32.totalorder %s15, 2
      %p113 = por %p111, %p112
      %p115 = scmp.ne.s32.totalorder %s98, %s114
      %p116 = scmp.eq.s32.totalorder %s15, 0
      %p117 = por %p115, %p116
      %s118 = ssub.s32 %s16, %s35
      %s119 = ssub.s32 %s17, %s31
      %s120 = sor.u32 %s118, %s119
      %p121 = scmp.eq.s32.totalorder %s120, 0
      %s123 = sadd.s32 %s122, 1
      %s124 = scalar_select %p121, %s122, %s123
      %p127 = pneg %p121
      %p128 = scmp.eq.s32.totalorder %s9, 2
      %p129 = por %p127, %p128
      %p130 = scmp.ne.s32.totalorder %s122, %s125
      %p131 = scmp.eq.s32.totalorder %s9, 0
      %p132 = por %p130, %p131
      %p133 = scmp.ne.s32.totalorder %s122, %s125
      %p134 = scmp.eq.s32.totalorder %s14, 2
      %p135 = por %p133, %p134
      %p136 = scmp.ne.s32.totalorder %s125, %s126
      %p137 = scmp.eq.s32.totalorder %s14, 0
      %p138 = por %p136, %p137
      %p139 = scmp.ne.s32.totalorder %s125, %s126
      %p140 = scmp.eq.s32.totalorder %s15, 2
      %p141 = por %p139, %p140
      %p143 = scmp.ne.s32.totalorder %s126, %s142
      %p144 = scmp.eq.s32.totalorder %s15, 0
      %p145 = por %p143, %p144
      %p146 = scmp.le.s32.totalorder 1, %s9
      %p147 = scmp.lt.s32.totalorder %s9, 4
      %p148 = pnand %p146, %p147
      %p149 = pneg %p148
      // Predicated region
      $region9: #{deepspeech2_forward.9} parent=5 // pred_check
        _
      $region10: #{deepspeech2_forward.9} parent=5 // pred_check_branch
        %151 = sbr.rel (%p148) target = $region12
      $region11: #{deepspeech2_forward.9} parent=5 // pred_region
        %s152 = ssub.s32 %s9, 1
        // Predicated region
        $region13: #{deepspeech2_forward.9} parent=11 // pred_check
          %p153 = pneg %p56
        $region14: #{deepspeech2_forward.9} parent=11 // pred_check_branch
          %155 = sbr.rel (%p153) target = $region16
        $region15: #{deepspeech2_forward.9} parent=11 // pred_region
          %s156 = smul.u32 8, %s19
          %p157 = scmp.lt.s32.totalorder %s156, 7
          %s158 = scalar_select %p157, %s156, 7
          %p159 = scmp.lt.s32.totalorder %s21, 0
          %s160 = scalar_select %p159, %s21, 0
          %s161 = sadd.s32 %s160, %s158
          %s162 = smul.addr %s161, 4
          %s163 = scalar_lea.vmem %s0, %s162
          %s164 = smul.u32 8, %s19
        $region16: #{deepspeech2_forward.9} parent=11 // pred_fallthru
          _
      $region12: #{deepspeech2_forward.9} parent=5 // pred_fallthru
        _
      %p165 = scmp.lt.s32.totalorder %s9, 3
      // Predicated region
      $region17: #{deepspeech2_forward.9} parent=5 // pred_check
        %p166 = pneg %p165
      $region18: #{deepspeech2_forward.9} parent=5 // pred_check_branch
        %168 = sbr.rel (%p166) target = $region20
      $region19: #{deepspeech2_forward.9} parent=5 // pred_region
        // Predicated region
        $region21: #{deepspeech2_forward.9} parent=19 // pred_check
          %p169 = pneg %p78
        $region22: #{deepspeech2_forward.9} parent=19 // pred_check_branch
          %171 = sbr.rel (%p169) target = $region24
        $region23: #{deepspeech2_forward.9} parent=19 // pred_region
          %s172 = sand.u32 %s68, 1
          %s173 = sand.u32 %s68, 1
          %s174 = smul.addr %s173, 128
          %s175 = scalar_lea.vmem [#allocation3], %s174
          %s176 = smul.u32 16, %s18
          %s177 = smul.u32 2, %s17
          %s178 = smul.addr %s176, 6
          %s179 = sadd.s32 %s177, %s178
          %s180 = smul.addr %s179, 4
          %s181 = scalar_lea.vmem %s1, %s180
          // Predicated region
          $region25: #{deepspeech2_forward.9} parent=23 // pred_check
            _
          $region26: #{deepspeech2_forward.9} parent=23 // pred_check_branch
            %183 = sbr.rel (0) target = $region28
          $region27: #{deepspeech2_forward.9} parent=23 // pred_region
            // Predicated region
            $region29: #{deepspeech2_forward.9} parent=27 // pred_check
              _
            $region30: #{deepspeech2_forward.9} parent=27 // pred_check_branch
              %185 = sbr.rel (0) target = $region32
            $region31: #{deepspeech2_forward.9} parent=27 // pred_region
              // Predicated region
              $region44: #{deepspeech2_forward.9} parent=31 // pred_check
                _
              $region45: #{deepspeech2_forward.9} parent=31 // pred_check_branch
                %231 = sbr.rel (0) target = $region47
              $region46: #{deepspeech2_forward.9} parent=31 // pred_region
                loop: start=0, step=1, limit=1
                $region48: #{deepspeech2_forward.9} parent=46 // loop_pre_header
                  _
                $region49: #{deepspeech2_forward.9} parent=46 // loop_header
                  %s233 = sphi 0, %s237
                  %p234 = scmp.ge.s32.totalorder %s233, 1
                  %s238 = sphi %s181, %s181
                  %s239 = sphi %s175, %s175
                $region50: #{deepspeech2_forward.9} parent=46 // loop_header_branch
                  %236 = sbr.rel (%p234) target = $region54
                $region51: #{deepspeech2_forward.9} parent=46 // loop_body
                  %v240 = vld [vmem:[%s238] sm:$0xff]
                  %241 = vst [vmem:[%s239] sm:$0xff] %v240
                  %v242 = vld [vmem:[%s238 + $0x18] sm:$0xff]
                  %243 = vst [vmem:[%s239 + $0x8] sm:$0xff] %v242
                  %v244 = vld [vmem:[%s238 + $0x30] sm:$0xff]
                  %245 = vst [vmem:[%s239 + $0x10] sm:$0xff] %v244
                  %v246 = vld [vmem:[%s238 + $0x48] sm:$0xff]
                  %247 = vst [vmem:[%s239 + $0x18] sm:$0xff] %v246
                  %v248 = vld [vmem:[%s238 + $0x60] sm:$0xff]
                  %249 = vst [vmem:[%s239 + $0x20] sm:$0xff] %v248
                  %v250 = vld [vmem:[%s238 + $0x78] sm:$0xff]
                  %251 = vst [vmem:[%s239 + $0x28] sm:$0xff] %v250
                  %v252 = vld [vmem:[%s238 + $0x90] sm:$0xff]
                  %253 = vst [vmem:[%s239 + $0x30] sm:$0xff] %v252
                  %v254 = vld [vmem:[%s238 + $0xa8] sm:$0xff]
                  %255 = vst [vmem:[%s239 + $0x38] sm:$0xff] %v254
                  %v256 = vld [vmem:[%s238 + $0xc0] sm:$0xff]
                  %257 = vst [vmem:[%s239 + $0x40] sm:$0xff] %v256
                  %v258 = vld [vmem:[%s238 + $0xd8] sm:$0xff]
                  %259 = vst [vmem:[%s239 + $0x48] sm:$0xff] %v258
                  %v260 = vld [vmem:[%s238 + $0xf0] sm:$0xff]
                  %261 = vst [vmem:[%s239 + $0x50] sm:$0xff] %v260
                  %v262 = vld [vmem:[%s238 + $0x108] sm:$0xff]
                  %263 = vst [vmem:[%s239 + $0x58] sm:$0xff] %v262
                  %v264 = vld [vmem:[%s238 + $0x120] sm:$0xff]
                  %265 = vst [vmem:[%s239 + $0x60] sm:$0xff] %v264
                  %v266 = vld [vmem:[%s238 + $0x138] sm:$0xff]
                  %267 = vst [vmem:[%s239 + $0x68] sm:$0xff] %v266
                  %v268 = vld [vmem:[%s238 + $0x150] sm:$0xff]
                  %269 = vst [vmem:[%s239 + $0x70] sm:$0xff] %v268
                  %v270 = vld [vmem:[%s238 + $0x168] sm:$0xff]
                  %271 = vst [vmem:[%s239 + $0x78] sm:$0xff] %v270
                $region52: #{deepspeech2_forward.9} parent=46 // loop_footer
                  %s237 = sadd.s32 1, %s233
                $region53: #{deepspeech2_forward.9} parent=46 // loop_footer_branch
                  %232 = sbr.rel target = $region49
                $region54: #{deepspeech2_forward.9} parent=46 // loop_exit
                  _
              $region47: #{deepspeech2_forward.9} parent=31 // pred_fallthru
                _
              // Predicated region
              $region55: #{deepspeech2_forward.9} parent=31 // pred_check
                _
              $region56: #{deepspeech2_forward.9} parent=31 // pred_check_branch
                %273 = sbr.rel target = $region58
              $region57: #{deepspeech2_forward.9} parent=31 // pred_region
                _
              $region58: #{deepspeech2_forward.9} parent=31 // pred_fallthru
                _
            $region32: #{deepspeech2_forward.9} parent=27 // pred_fallthru
              _
            // Predicated region
            $region33: #{deepspeech2_forward.9} parent=27 // pred_check
              _
            $region34: #{deepspeech2_forward.9} parent=27 // pred_check_branch
              %187 = sbr.rel target = $region36
            $region35: #{deepspeech2_forward.9} parent=27 // pred_region
              %s189 = ssub.s32 256, 1
              loop: start=0, step=1, limit=1
              $region37: #{deepspeech2_forward.9} parent=35 // loop_pre_header
                _
              $region38: #{deepspeech2_forward.9} parent=35 // loop_header
                %s191 = sphi 0, %s195
                %p192 = scmp.ge.s32.totalorder %s191, 1
                %s196 = sphi %s181, %s181
                %s197 = sphi %s175, %s175
              $region39: #{deepspeech2_forward.9} parent=35 // loop_header_branch
                %194 = sbr.rel (%p192) target = $region43
              $region40: #{deepspeech2_forward.9} parent=35 // loop_body
                %v198 = vld [vmem:[%s196] sm:%s189]
                %199 = vst [vmem:[%s197] sm:%s189] %v198
                %v200 = vld [vmem:[%s196 + $0x18] sm:%s189]
                %201 = vst [vmem:[%s197 + $0x8] sm:%s189] %v200
                %v202 = vld [vmem:[%s196 + $0x30] sm:%s189]
                %203 = vst [vmem:[%s197 + $0x10] sm:%s189] %v202
                %v204 = vld [vmem:[%s196 + $0x48] sm:%s189]
                %205 = vst [vmem:[%s197 + $0x18] sm:%s189] %v204
                %v206 = vld [vmem:[%s196 + $0x60] sm:%s189]
                %207 = vst [vmem:[%s197 + $0x20] sm:%s189] %v206
                %v208 = vld [vmem:[%s196 + $0x78] sm:%s189]
                %209 = vst [vmem:[%s197 + $0x28] sm:%s189] %v208
                %v210 = vld [vmem:[%s196 + $0x90] sm:%s189]
                %211 = vst [vmem:[%s197 + $0x30] sm:%s189] %v210
                %v212 = vld [vmem:[%s196 + $0xa8] sm:%s189]
                %213 = vst [vmem:[%s197 + $0x38] sm:%s189] %v212
                %v214 = vld [vmem:[%s196 + $0xc0] sm:%s189]
                %215 = vst [vmem:[%s197 + $0x40] sm:%s189] %v214
                %v216 = vld [vmem:[%s196 + $0xd8] sm:%s189]
                %217 = vst [vmem:[%s197 + $0x48] sm:%s189] %v216
                %v218 = vld [vmem:[%s196 + $0xf0] sm:%s189]
                %219 = vst [vmem:[%s197 + $0x50] sm:%s189] %v218
                %v220 = vld [vmem:[%s196 + $0x108] sm:%s189]
                %221 = vst [vmem:[%s197 + $0x58] sm:%s189] %v220
                %v222 = vld [vmem:[%s196 + $0x120] sm:%s189]
                %223 = vst [vmem:[%s197 + $0x60] sm:%s189] %v222
                %v224 = vld [vmem:[%s196 + $0x138] sm:%s189]
                %225 = vst [vmem:[%s197 + $0x68] sm:%s189] %v224
                %v226 = vld [vmem:[%s196 + $0x150] sm:%s189]
                %227 = vst [vmem:[%s197 + $0x70] sm:%s189] %v226
                %v228 = vld [vmem:[%s196 + $0x168] sm:%s189]
                %229 = vst [vmem:[%s197 + $0x78] sm:%s189] %v228
              $region41: #{deepspeech2_forward.9} parent=35 // loop_footer
                %s195 = sadd.s32 1, %s191
              $region42: #{deepspeech2_forward.9} parent=35 // loop_footer_branch
                %190 = sbr.rel target = $region38
              $region43: #{deepspeech2_forward.9} parent=35 // loop_exit
                _
            $region36: #{deepspeech2_forward.9} parent=27 // pred_fallthru
              _
          $region28: #{deepspeech2_forward.9} parent=23 // pred_fallthru
            _
          %274 = vnop
        $region24: #{deepspeech2_forward.9} parent=19 // pred_fallthru
          _
        // Predicated region
        $region59: #{deepspeech2_forward.9} parent=19 // pred_check
          %p275 = pneg %p104
        $region60: #{deepspeech2_forward.9} parent=19 // pred_check_branch
          %277 = sbr.rel (%p275) target = $region62
        $region61: #{deepspeech2_forward.9} parent=19 // pred_region
          %s278 = smul.u32 2, %s17
          %p279 = scmp.lt.s32.totalorder %s278, 5
          %s280 = scalar_select %p279, %s278, 5
          %s281 = scalar_lea.vmem %s2, %s280
          %s282 = smul.u32 2, %s17
        $region62: #{deepspeech2_forward.9} parent=19 // pred_fallthru
          _
      $region20: #{deepspeech2_forward.9} parent=5 // pred_fallthru
        _
      %p283 = scmp.le.s32.totalorder 1, %s9
      %p284 = scmp.lt.s32.totalorder %s9, 4
      %p285 = pnand %p283, %p284
      %p286 = pneg %p285
      // Predicated region
      $region63: #{deepspeech2_forward.9} parent=5 // pred_check
        _
      $region64: #{deepspeech2_forward.9} parent=5 // pred_check_branch
        %288 = sbr.rel (%p285) target = $region66
      $region65: #{deepspeech2_forward.9} parent=5 // pred_region
        %s289 = ssub.s32 %s9, 1
        %s290 = sand.u32 %s71, 1
        %s291 = sand.u32 %s71, 1
        %s292 = smul.addr %s291, 128
        %s293 = scalar_lea.vmem [#allocation3], %s292
        // Predicated region
        $region67: #{deepspeech2_forward.9} parent=65 // pred_check
          %p294 = pneg %p84
        $region68: #{deepspeech2_forward.9} parent=65 // pred_check_branch
          %296 = sbr.rel (%p294) target = $region70
        $region69: #{deepspeech2_forward.9} parent=65 // pred_region
          _
        $region70: #{deepspeech2_forward.9} parent=65 // pred_fallthru
          _
        %s297 = smul.u32 8, %s19
        %p298 = scmp.lt.s32.totalorder %s297, 7
        %s299 = scalar_select %p298, %s297, 7
        %p300 = scmp.lt.s32.totalorder %s21, 0
        %s301 = scalar_select %p300, %s21, 0
        %s302 = sadd.s32 %s301, %s299
        %s303 = smul.addr %s302, 4
        %s304 = scalar_lea.vmem %s0, %s303
        %p305 = pneg %p56
        %p306 = pneg %p53
        %s307 = sand.u32 %s71, 1
        %s308 = sand.u32 %s71, 1
        %s309 = smul.addr %s308, 128
        %s310 = scalar_lea.vmem [#allocation3], %s309
        %p311 = pneg %p84
        %p312 = pneg %p81
        %s313 = smul.u32 2, %s20
        %p314 = scmp.lt.s32.totalorder %s313, 5
        %s315 = scalar_select %p314, %s313, 5
        %s316 = scalar_lea.vmem %s2, %s315
        %p317 = pneg %p110
        %p318 = pneg %p107
        %p319 = pneg %p138
        %p320 = pneg %p135
        %s321 = sand.u32 %s125, 1
        %s322 = sand.u32 %s125, 1
        %s323 = smul.addr %s322, 128
        %s324 = scalar_lea.vmem [#allocation4], %s323
        %s325 = smul.u32 8, %s19
        %p326 = scmp.lt.s32.totalorder %s325, 7
        %s327 = scalar_select %p326, %s325, 7
        %p328 = scmp.lt.s32.totalorder %s21, 0
        %s329 = scalar_select %p328, %s21, 0
        %s330 = sadd.s32 %s329, %s327
        %s331 = smul.addr %s330, 4
        %s332 = scalar_lea.vmem %s0, %s331
        %s333 = smul.u32 8, %s19
        %s334 = smul.u32 16, %s21
        %s335 = smul.u32 2, %s20
        %s336 = smul.u32 2, %s20
        %p337 = scmp.lt.s32.totalorder %s336, 5
        %s338 = scalar_select %p337, %s336, 5
        %s339 = scalar_lea.vmem %s2, %s338
        %s340 = smul.u32 2, %s20
        %s341 = smul.u32 8, %s19
        %s342 = smul.u32 2, %s20
        %p343 = scmp.eq.s32.totalorder %s21, 0
        // Predicated region
        $region71: #{deepspeech2_forward.9} parent=65 // pred_check
          %p344 = pneg %p343
        $region72: #{deepspeech2_forward.9} parent=65 // pred_check_branch
          %346 = sbr.rel (%p344) target = $region74
        $region73: #{deepspeech2_forward.9} parent=65 // pred_region
          %347 = vst [vmem:[#allocation2] sm:$0xff] 0.0
          %348 = vst [vmem:[#allocation2 + $0x8] sm:$0xff] 0.0
          %349 = vst [vmem:[#allocation2 + $0x10] sm:$0xff] 0.0
          %350 = vst [vmem:[#allocation2 + $0x18] sm:$0xff] 0.0
          %351 = vst [vmem:[#allocation2 + $0x20] sm:$0xff] 0.0
          %352 = vst [vmem:[#allocation2 + $0x28] sm:$0xff] 0.0
          %353 = vst [vmem:[#allocation2 + $0x30] sm:$0xff] 0.0
          %354 = vst [vmem:[#allocation2 + $0x38] sm:$0xff] 0.0
          %355 = vst [vmem:[#allocation2 + $0x40] sm:$0xff] 0.0
          %356 = vst [vmem:[#allocation2 + $0x48] sm:$0xff] 0.0
          %357 = vst [vmem:[#allocation2 + $0x50] sm:$0xff] 0.0
          %358 = vst [vmem:[#allocation2 + $0x58] sm:$0xff] 0.0
          %359 = vst [vmem:[#allocation2 + $0x60] sm:$0xff] 0.0
          %360 = vst [vmem:[#allocation2 + $0x68] sm:$0xff] 0.0
          %361 = vst [vmem:[#allocation2 + $0x70] sm:$0xff] 0.0
          %362 = vst [vmem:[#allocation2 + $0x78] sm:$0xff] 0.0
        $region74: #{deepspeech2_forward.9} parent=65 // pred_fallthru
          _
        %v363 = vld [vmem:[#allocation2] sm:$0xff]
        %v364 = vld [vmem:[#allocation2 + $0x8] sm:$0xff]
        %v365 = vld [vmem:[#allocation2 + $0x10] sm:$0xff]
        %v366 = vld [vmem:[#allocation2 + $0x18] sm:$0xff]
        %v367 = vld [vmem:[#allocation2 + $0x20] sm:$0xff]
        %v368 = vld [vmem:[#allocation2 + $0x28] sm:$0xff]
        %v369 = vld [vmem:[#allocation2 + $0x30] sm:$0xff]
        %v370 = vld [vmem:[#allocation2 + $0x38] sm:$0xff]
        %v371 = vld [vmem:[#allocation2 + $0x40] sm:$0xff]
        %v372 = vld [vmem:[#allocation2 + $0x48] sm:$0xff]
        %v373 = vld [vmem:[#allocation2 + $0x50] sm:$0xff]
        %v374 = vld [vmem:[#allocation2 + $0x58] sm:$0xff]
        %v375 = vld [vmem:[#allocation2 + $0x60] sm:$0xff]
        %v376 = vld [vmem:[#allocation2 + $0x68] sm:$0xff]
        %v377 = vld [vmem:[#allocation2 + $0x70] sm:$0xff]
        %v378 = vld [vmem:[#allocation2 + $0x78] sm:$0xff]
        %v379 = vld [vmem:[%s332] sm:$0xf]
        %v380 = vld [vmem:[%s332 + $0x4] sm:$0xf]
        %v381 = vld [vmem:[%s332 + $0x8] sm:$0xf]
        %v382 = vld [vmem:[%s332 + $0xc] sm:$0xf]
        %v383 = vld [vmem:[%s332 + $0x10] sm:$0xf]
        %v384 = vld [vmem:[%s332 + $0x14] sm:$0xf]
        %v385 = vld [vmem:[%s332 + $0x18] sm:$0xf]
        %v386 = vld [vmem:[%s332 + $0x1c] sm:$0xf]
        %v387 = vld [vmem:[%s293] sm:$0xff]
        %v388 = vld [vmem:[%s293 + $0x8] sm:$0xff]
        %v389 = vld [vmem:[%s293 + $0x10] sm:$0xff]
        %v390 = vld [vmem:[%s293 + $0x18] sm:$0xff]
        %v391 = vld [vmem:[%s293 + $0x20] sm:$0xff]
        %v392 = vld [vmem:[%s293 + $0x28] sm:$0xff]
        %v393 = vld [vmem:[%s293 + $0x30] sm:$0xff]
        %v394 = vld [vmem:[%s293 + $0x38] sm:$0xff]
        %v395 = vld [vmem:[%s293 + $0x40] sm:$0xff]
        %v396 = vld [vmem:[%s293 + $0x48] sm:$0xff]
        %v397 = vld [vmem:[%s293 + $0x50] sm:$0xff]
        %v398 = vld [vmem:[%s293 + $0x58] sm:$0xff]
        %v399 = vld [vmem:[%s293 + $0x60] sm:$0xff]
        %v400 = vld [vmem:[%s293 + $0x68] sm:$0xff]
        %v401 = vld [vmem:[%s293 + $0x70] sm:$0xff]
        %v402 = vld [vmem:[%s293 + $0x78] sm:$0xff]
        %v411 = vunpack.c.l.b16 %v379
        %v412 = vunpack.c.l.b16 %v380
        %v413 = vunpack.c.l.b16 %v381
        %v414 = vunpack.c.l.b16 %v382
        %v415 = vunpack.c.l.b16 %v383
        %v416 = vunpack.c.l.b16 %v384
        %v417 = vunpack.c.l.b16 %v385
        %v418 = vunpack.c.l.b16 %v386
        %v419 = vpack.c.b16 %v412, %v411
        %v420 = vpack.c.b16 %v414, %v413
        %v421 = vpack.c.b16 %v416, %v415
        %v422 = vpack.c.b16 %v418, %v417
        %v443 = vunpack.c.l.b16 %v387
        %v444 = vunpack.c.h.b16 %v387
        %v445 = vunpack.c.l.b16 %v388
        %v446 = vunpack.c.h.b16 %v388
        %v447 = vunpack.c.l.b16 %v389
        %v448 = vunpack.c.h.b16 %v389
        %v449 = vunpack.c.l.b16 %v390
        %v450 = vunpack.c.h.b16 %v390
        %v451 = vunpack.c.l.b16 %v391
        %v452 = vunpack.c.h.b16 %v391
        %v453 = vunpack.c.l.b16 %v392
        %v454 = vunpack.c.h.b16 %v392
        %v455 = vunpack.c.l.b16 %v393
        %v456 = vunpack.c.h.b16 %v393
        %v457 = vunpack.c.l.b16 %v394
        %v458 = vunpack.c.h.b16 %v394
        %v459 = vunpack.c.l.b16 %v395
        %v460 = vunpack.c.h.b16 %v395
        %v461 = vunpack.c.l.b16 %v396
        %v462 = vunpack.c.h.b16 %v396
        %v463 = vunpack.c.l.b16 %v397
        %v464 = vunpack.c.h.b16 %v397
        %v465 = vunpack.c.l.b16 %v398
        %v466 = vunpack.c.h.b16 %v398
        %v467 = vunpack.c.l.b16 %v399
        %v468 = vunpack.c.h.b16 %v399
        %v469 = vunpack.c.l.b16 %v400
        %v470 = vunpack.c.h.b16 %v400
        %v471 = vunpack.c.l.b16 %v401
        %v472 = vunpack.c.h.b16 %v401
        %v473 = vunpack.c.l.b16 %v402
        %v474 = vunpack.c.h.b16 %v402
        %v475 = vpack.c.b16 %v445, %v443
        %v476 = vpack.c.b16 %v446, %v444
        %v477 = vpack.c.b16 %v449, %v447
        %v478 = vpack.c.b16 %v450, %v448
        %v479 = vpack.c.b16 %v453, %v451
        %v480 = vpack.c.b16 %v454, %v452
        %v481 = vpack.c.b16 %v457, %v455
        %v482 = vpack.c.b16 %v458, %v456
        %v483 = vpack.c.b16 %v461, %v459
        %v484 = vpack.c.b16 %v462, %v460
        %v485 = vpack.c.b16 %v465, %v463
        %v486 = vpack.c.b16 %v466, %v464
        %v487 = vpack.c.b16 %v469, %v467
        %v488 = vpack.c.b16 %v470, %v468
        %v489 = vpack.c.b16 %v473, %v471
        %v490 = vpack.c.b16 %v474, %v472
        %507 = vmatpush.bf16.msra.mxu0 %v489
        %508 = vmatpush.bf16.msra.mxu0 %v487
        %509 = vmatpush.bf16.msra.mxu0 %v485
        %510 = vmatpush.bf16.msra.mxu0 %v483
        %511 = vmatpush.bf16.msra.mxu0 %v481
        %512 = vmatpush.bf16.msra.mxu0 %v479
        %513 = vmatpush.bf16.msra.mxu0 %v477
        %514 = vmatpush.bf16.msra.mxu0 %v475
        %515 = vmatmul.bf16.gmra.mxu0 %v419
        %v516 = vpop.f32.mrf.mxu0
        %v517 = vadd.f32 0.0, %v516
        %v518 = vpop.f32.mrf.mxu0
        %v519 = vadd.f32 0.0, %v518
        %520 = vmatmul.bf16.gmra.mxu0 %v420
        %v521 = vpop.f32.mrf.mxu0
        %v522 = vadd.f32 0.0, %v521
        %v523 = vpop.f32.mrf.mxu0
        %v524 = vadd.f32 0.0, %v523
        %525 = vmatmul.bf16.gmra.mxu0 %v421
        %v526 = vpop.f32.mrf.mxu0
        %v527 = vadd.f32 0.0, %v526
        %v528 = vpop.f32.mrf.mxu0
        %v529 = vadd.f32 0.0, %v528
        %530 = vmatmul.bf16.gmra.mxu0 %v422
        %v531 = vpop.f32.mrf.mxu0
        %v532 = vadd.f32 0.0, %v531
        %v533 = vpop.f32.mrf.mxu0
        %v534 = vadd.f32 0.0, %v533
        %535 = vdwg.mxu0
        %536 = vmatpush.bf16.msra.mxu0 %v490
        %537 = vmatpush.bf16.msra.mxu0 %v488
        %538 = vmatpush.bf16.msra.mxu0 %v486
        %539 = vmatpush.bf16.msra.mxu0 %v484
        %540 = vmatpush.bf16.msra.mxu0 %v482
        %541 = vmatpush.bf16.msra.mxu0 %v480
        %542 = vmatpush.bf16.msra.mxu0 %v478
        %543 = vmatpush.bf16.msra.mxu0 %v476
        %544 = vmatmul.bf16.gmra.mxu0 %v419
        %v545 = vpop.f32.mrf.mxu0
        %v546 = vadd.f32 0.0, %v545
        %v547 = vpop.f32.mrf.mxu0
        %v548 = vadd.f32 0.0, %v547
        %549 = vmatmul.bf16.gmra.mxu0 %v420
        %v550 = vpop.f32.mrf.mxu0
        %v551 = vadd.f32 0.0, %v550
        %v552 = vpop.f32.mrf.mxu0
        %v553 = vadd.f32 0.0, %v552
        %554 = vmatmul.bf16.gmra.mxu0 %v421
        %v555 = vpop.f32.mrf.mxu0
        %v556 = vadd.f32 0.0, %v555
        %v557 = vpop.f32.mrf.mxu0
        %v558 = vadd.f32 0.0, %v557
        %559 = vmatmul.bf16.gmra.mxu0 %v422
        %v560 = vpop.f32.mrf.mxu0
        %v561 = vadd.f32 0.0, %v560
        %v562 = vpop.f32.mrf.mxu0
        %v563 = vadd.f32 0.0, %v562
        %564 = vdwg.mxu0
        %v565 = vadd.f32 %v363, %v517
        %v566 = vadd.f32 %v364, %v546
        %v567 = vadd.f32 %v365, %v519
        %v568 = vadd.f32 %v366, %v548
        %v569 = vadd.f32 %v367, %v522
        %v570 = vadd.f32 %v368, %v551
        %v571 = vadd.f32 %v369, %v524
        %v572 = vadd.f32 %v370, %v553
        %v573 = vadd.f32 %v371, %v527
        %v574 = vadd.f32 %v372, %v556
        %v575 = vadd.f32 %v373, %v529
        %v576 = vadd.f32 %v374, %v558
        %v577 = vadd.f32 %v375, %v532
        %v578 = vadd.f32 %v376, %v561
        %v579 = vadd.f32 %v377, %v534
        %v580 = vadd.f32 %v378, %v563
        %581 = vst [vmem:[#allocation2] sm:$0xff] %v565
        %582 = vst [vmem:[#allocation2 + $0x8] sm:$0xff] %v566
        %583 = vst [vmem:[#allocation2 + $0x10] sm:$0xff] %v567
        %584 = vst [vmem:[#allocation2 + $0x18] sm:$0xff] %v568
        %585 = vst [vmem:[#allocation2 + $0x20] sm:$0xff] %v569
        %586 = vst [vmem:[#allocation2 + $0x28] sm:$0xff] %v570
        %587 = vst [vmem:[#allocation2 + $0x30] sm:$0xff] %v571
        %588 = vst [vmem:[#allocation2 + $0x38] sm:$0xff] %v572
        %589 = vst [vmem:[#allocation2 + $0x40] sm:$0xff] %v573
        %590 = vst [vmem:[#allocation2 + $0x48] sm:$0xff] %v574
        %591 = vst [vmem:[#allocation2 + $0x50] sm:$0xff] %v575
        %592 = vst [vmem:[#allocation2 + $0x58] sm:$0xff] %v576
        %593 = vst [vmem:[#allocation2 + $0x60] sm:$0xff] %v577
        %594 = vst [vmem:[#allocation2 + $0x68] sm:$0xff] %v578
        %595 = vst [vmem:[#allocation2 + $0x70] sm:$0xff] %v579
        %596 = vst [vmem:[#allocation2 + $0x78] sm:$0xff] %v580
        // Predicated region
        $region75: #{deepspeech2_forward.9} parent=65 // pred_check
          %p597 = pneg %p343
        $region76: #{deepspeech2_forward.9} parent=65 // pred_check_branch
          %599 = sbr.rel (%p597) target = $region78
        $region77: #{deepspeech2_forward.9} parent=65 // pred_region
          %v600 = vld [vmem:[#allocation2] sm:$0xff]
          %v601 = vld [vmem:[#allocation2 + $0x8] sm:$0xff]
          %v602 = vld [vmem:[#allocation2 + $0x10] sm:$0xff]
          %v603 = vld [vmem:[#allocation2 + $0x18] sm:$0xff]
          %v604 = vld [vmem:[#allocation2 + $0x20] sm:$0xff]
          %v605 = vld [vmem:[#allocation2 + $0x28] sm:$0xff]
          %v606 = vld [vmem:[#allocation2 + $0x30] sm:$0xff]
          %v607 = vld [vmem:[#allocation2 + $0x38] sm:$0xff]
          %v608 = vld [vmem:[#allocation2 + $0x40] sm:$0xff]
          %v609 = vld [vmem:[#allocation2 + $0x48] sm:$0xff]
          %v610 = vld [vmem:[#allocation2 + $0x50] sm:$0xff]
          %v611 = vld [vmem:[#allocation2 + $0x58] sm:$0xff]
          %v612 = vld [vmem:[#allocation2 + $0x60] sm:$0xff]
          %v613 = vld [vmem:[#allocation2 + $0x68] sm:$0xff]
          %v614 = vld [vmem:[#allocation2 + $0x70] sm:$0xff]
          %v615 = vld [vmem:[#allocation2 + $0x78] sm:$0xff]
          %v616 = vld [vmem:[%s339] sm:$0x3]
          %v618 = vperm.slane %v616, 0
          %v619 = vperm.slane %v616, 1
          %v622 = vadd.f32 %v600, %v618
          %v623 = vadd.f32 %v601, %v619
          %v624 = vadd.f32 %v602, %v618
          %v625 = vadd.f32 %v603, %v619
          %v626 = vadd.f32 %v604, %v618
          %v627 = vadd.f32 %v605, %v619
          %v628 = vadd.f32 %v606, %v618
          %v629 = vadd.f32 %v607, %v619
          %v630 = vadd.f32 %v608, %v618
          %v631 = vadd.f32 %v609, %v619
          %v632 = vadd.f32 %v610, %v618
          %v633 = vadd.f32 %v611, %v619
          %v634 = vadd.f32 %v612, %v618
          %v635 = vadd.f32 %v613, %v619
          %v636 = vadd.f32 %v614, %v618
          %v637 = vadd.f32 %v615, %v619
          %638 = vst [vmem:[%s324] sm:$0xff] %v622
          %639 = vst [vmem:[%s324 + $0x8] sm:$0xff] %v623
          %640 = vst [vmem:[%s324 + $0x10] sm:$0xff] %v624
          %641 = vst [vmem:[%s324 + $0x18] sm:$0xff] %v625
          %642 = vst [vmem:[%s324 + $0x20] sm:$0xff] %v626
          %643 = vst [vmem:[%s324 + $0x28] sm:$0xff] %v627
          %644 = vst [vmem:[%s324 + $0x30] sm:$0xff] %v628
          %645 = vst [vmem:[%s324 + $0x38] sm:$0xff] %v629
          %646 = vst [vmem:[%s324 + $0x40] sm:$0xff] %v630
          %647 = vst [vmem:[%s324 + $0x48] sm:$0xff] %v631
          %648 = vst [vmem:[%s324 + $0x50] sm:$0xff] %v632
          %649 = vst [vmem:[%s324 + $0x58] sm:$0xff] %v633
          %650 = vst [vmem:[%s324 + $0x60] sm:$0xff] %v634
          %651 = vst [vmem:[%s324 + $0x68] sm:$0xff] %v635
          %652 = vst [vmem:[%s324 + $0x70] sm:$0xff] %v636
          %653 = vst [vmem:[%s324 + $0x78] sm:$0xff] %v637
        $region78: #{deepspeech2_forward.9} parent=65 // pred_fallthru
          _
        %s654 = sand.u32 %s125, 1
        %s655 = sand.u32 %s125, 1
        %s656 = smul.addr %s655, 128
        %s657 = scalar_lea.vmem [#allocation4], %s656
        // Predicated region
        $region79: #{deepspeech2_forward.9} parent=65 // pred_check
          %p658 = pneg %p135
        $region80: #{deepspeech2_forward.9} parent=65 // pred_check_branch
          %660 = sbr.rel (%p658) target = $region82
        $region81: #{deepspeech2_forward.9} parent=65 // pred_region
          %s661 = smul.u32 8, %s19
          %s662 = smul.u32 2, %s20
          %s663 = smul.addr %s661, 6
          %s664 = sadd.s32 %s662, %s663
          %s665 = smul.addr %s664, 8
          %s666 = scalar_lea.vmem %s3, %s665
          // Predicated region
          $region83: #{deepspeech2_forward.9} parent=81 // pred_check
            _
          $region84: #{deepspeech2_forward.9} parent=81 // pred_check_branch
            %668 = sbr.rel (0) target = $region86
          $region85: #{deepspeech2_forward.9} parent=81 // pred_region
            // Predicated region
            $region87: #{deepspeech2_forward.9} parent=85 // pred_check
              _
            $region88: #{deepspeech2_forward.9} parent=85 // pred_check_branch
              %670 = sbr.rel (0) target = $region90
            $region89: #{deepspeech2_forward.9} parent=85 // pred_region
              loop: start=0, step=1, limit=1
              $region91: #{deepspeech2_forward.9} parent=89 // loop_pre_header
                _
              $region92: #{deepspeech2_forward.9} parent=89 // loop_header
                %s672 = sphi 0, %s676
                %p673 = scmp.ge.s32.totalorder %s672, 1
                %s677 = sphi %s657, %s657
                %s678 = sphi %s666, %s666
              $region93: #{deepspeech2_forward.9} parent=89 // loop_header_branch
                %675 = sbr.rel (%p673) target = $region97
              $region94: #{deepspeech2_forward.9} parent=89 // loop_body
                %v679 = vld [vmem:[%s677] sm:$0xff]
                %680 = vst [vmem:[%s678] sm:$0xff] %v679
                %v681 = vld [vmem:[%s677 + $0x8] sm:$0xff]
                %682 = vst [vmem:[%s678 + $0x8] sm:$0xff] %v681
                %v683 = vld [vmem:[%s677 + $0x10] sm:$0xff]
                %684 = vst [vmem:[%s678 + $0x30] sm:$0xff] %v683
                %v685 = vld [vmem:[%s677 + $0x18] sm:$0xff]
                %686 = vst [vmem:[%s678 + $0x38] sm:$0xff] %v685
                %v687 = vld [vmem:[%s677 + $0x20] sm:$0xff]
                %688 = vst [vmem:[%s678 + $0x60] sm:$0xff] %v687
                %v689 = vld [vmem:[%s677 + $0x28] sm:$0xff]
                %690 = vst [vmem:[%s678 + $0x68] sm:$0xff] %v689
                %v691 = vld [vmem:[%s677 + $0x30] sm:$0xff]
                %692 = vst [vmem:[%s678 + $0x90] sm:$0xff] %v691
                %v693 = vld [vmem:[%s677 + $0x38] sm:$0xff]
                %694 = vst [vmem:[%s678 + $0x98] sm:$0xff] %v693
                %v695 = vld [vmem:[%s677 + $0x40] sm:$0xff]
                %696 = vst [vmem:[%s678 + $0xc0] sm:$0xff] %v695
                %v697 = vld [vmem:[%s677 + $0x48] sm:$0xff]
                %698 = vst [vmem:[%s678 + $0xc8] sm:$0xff] %v697
                %v699 = vld [vmem:[%s677 + $0x50] sm:$0xff]
                %700 = vst [vmem:[%s678 + $0xf0] sm:$0xff] %v699
                %v701 = vld [vmem:[%s677 + $0x58] sm:$0xff]
                %702 = vst [vmem:[%s678 + $0xf8] sm:$0xff] %v701
                %v703 = vld [vmem:[%s677 + $0x60] sm:$0xff]
                %704 = vst [vmem:[%s678 + $0x120] sm:$0xff] %v703
                %v705 = vld [vmem:[%s677 + $0x68] sm:$0xff]
                %706 = vst [vmem:[%s678 + $0x128] sm:$0xff] %v705
                %v707 = vld [vmem:[%s677 + $0x70] sm:$0xff]
                %708 = vst [vmem:[%s678 + $0x150] sm:$0xff] %v707
                %v709 = vld [vmem:[%s677 + $0x78] sm:$0xff]
                %710 = vst [vmem:[%s678 + $0x158] sm:$0xff] %v709
              $region95: #{deepspeech2_forward.9} parent=89 // loop_footer
                %s676 = sadd.s32 1, %s672
              $region96: #{deepspeech2_forward.9} parent=89 // loop_footer_branch
                %671 = sbr.rel target = $region92
              $region97: #{deepspeech2_forward.9} parent=89 // loop_exit
                _
            $region90: #{deepspeech2_forward.9} parent=85 // pred_fallthru
              _
            // Predicated region
            $region98: #{deepspeech2_forward.9} parent=85 // pred_check
              _
            $region99: #{deepspeech2_forward.9} parent=85 // pred_check_branch
              %712 = sbr.rel target = $region101
            $region100: #{deepspeech2_forward.9} parent=85 // pred_region
              _
            $region101: #{deepspeech2_forward.9} parent=85 // pred_fallthru
              _
          $region86: #{deepspeech2_forward.9} parent=81 // pred_fallthru
            _
          %713 = vnop
        $region82: #{deepspeech2_forward.9} parent=65 // pred_fallthru
          _
      $region66: #{deepspeech2_forward.9} parent=5 // pred_fallthru
        _
      %p714 = scmp.le.s32.totalorder 2, %s9
      // Predicated region
      $region102: #{deepspeech2_forward.9} parent=5 // pred_check
        %p715 = pneg %p714
      $region103: #{deepspeech2_forward.9} parent=5 // pred_check_branch
        %717 = sbr.rel (%p715) target = $region105
      $region104: #{deepspeech2_forward.9} parent=5 // pred_region
        %s718 = ssub.s32 %s9, 2
        // Predicated region
        $region106: #{deepspeech2_forward.9} parent=104 // pred_check
          %p719 = pneg %p141
        $region107: #{deepspeech2_forward.9} parent=104 // pred_check_branch
          %721 = sbr.rel (%p719) target = $region109
        $region108: #{deepspeech2_forward.9} parent=104 // pred_region
          %s722 = sand.u32 %s126, 1
          %s723 = sand.u32 %s126, 1
          %s724 = smul.addr %s723, 128
          %s725 = scalar_lea.vmem [#allocation4], %s724
        $region109: #{deepspeech2_forward.9} parent=104 // pred_fallthru
          _
      $region105: #{deepspeech2_forward.9} parent=5 // pred_fallthru
        _
    $region6: #{deepspeech2_forward.9} parent=1 // loop_footer
      %s13 = sadd.s32 1, %s9
    $region7: #{deepspeech2_forward.9} parent=1 // loop_footer_branch
      %8 = sbr.rel target = $region3
    $region8: #{deepspeech2_forward.9} parent=1 // loop_exit
      _

// kernel: deepspeech2_forward.10
$region0: #{deepspeech2_forward.10}
  #allocation0 [shape = 'u32[]', space=smem, size = 0x4, offset = 0x4, fixed_abs, tag = 'smem constant byte address 0x4 - core index']
  #allocation1 [shape = 'u32[72,128]{1,0:T(1,128)}', space=vmem, size = 0x9000, scoped, tag = 'internal scratch']
  #allocation2 [shape = 'f32[2,8,128]{2,1,0:T(8,128)}', space=vmem, size = 0x2000, scoped, tag = 'scratch operand']
  %s0 = inlined_call_operand.vmem [shape: f32[8,2,8,384], index: 0, kind: input, shape index: {}]
  %s1 = inlined_call_operand.vmem [shape: f32[8,1,8,1], index: 1, kind: input, shape index: {}]
  %s2 = inlined_call_operand.vmem [shape: bf16[2,128,384], index: 2, kind: input, shape index: {}]
  %s3 = inlined_call_operand.vmem [shape: f32[2,1,384], index: 3, kind: input, shape index: {}]
  %s4 = inlined_call_operand.vmem [shape: f32[8,2,8,128], index: 4, kind: output, shape index: {}]
  %s5 = sld [smem:[#allocation0]]
  $region30: #{deepspeech2_forward.10} parent=0
    _
  %s7 = ssub.s32 1, %s5
  %s8 = scalar_select 0, %s7, %s5
  // Predicated region
  $region2: #{deepspeech2_forward.10} parent=0 // pred_check
    _
  $region3: #{deepspeech2_forward.10} parent=0 // pred_check_branch
    %10 = sbr.rel (0) target = $region5
  $region4: #{deepspeech2_forward.10} parent=0 // pred_region
    _
  $region5: #{deepspeech2_forward.10} parent=0 // pred_fallthru
    _
  // Predicated region
  $region6: #{deepspeech2_forward.10} parent=0 // pred_check
    _
  $region7: #{deepspeech2_forward.10} parent=0 // pred_check_branch
    %12 = sbr.rel (0) target = $region9
  $region8: #{deepspeech2_forward.10} parent=0 // pred_region
    _
  $region9: #{deepspeech2_forward.10} parent=0 // pred_fallthru
    _
  // Predicated region
  $region10: #{deepspeech2_forward.10} parent=0 // pred_check
    _
  $region11: #{deepspeech2_forward.10} parent=0 // pred_check_branch
    %14 = sbr.rel (0) target = $region13
  $region12: #{deepspeech2_forward.10} parent=0 // pred_region
    _
  $region13: #{deepspeech2_forward.10} parent=0 // pred_fallthru
    _
  // Predicated region
  $region14: #{deepspeech2_forward.10} parent=0 // pred_check
    _
  $region15: #{deepspeech2_forward.10} parent=0 // pred_check_branch
    %16 = sbr.rel (0) target = $region17
  $region16: #{deepspeech2_forward.10} parent=0 // pred_region
    _
  $region17: #{deepspeech2_forward.10} parent=0 // pred_fallthru
    _
  %p17 = scmp.eq.s32.totalorder 0, 0
  // Predicated region
  $region18: #{deepspeech2_forward.10} parent=0 // pred_check
    %p18 = pneg %p17
  $region19: #{deepspeech2_forward.10} parent=0 // pred_check_branch
    %20 = sbr.rel (%p18) target = $region21
  $region20: #{deepspeech2_forward.10} parent=0 // pred_region
    %21 = vst [vmem:[#allocation2] sm:$0xff] 0.0
    %22 = vst [vmem:[#allocation2 + $0x8] sm:$0xff] 0.0
  $region21: #{deepspeech2_forward.10} parent=0 // pred_fallthru
    _
  %v23 = vld [vmem:[%s2] sm:$0xff]
  %v24 = vld [vmem:[%s2 + $0x8] sm:$0xf]
  %v25 = vld [vmem:[%s2 + $0xc] sm:$0xff]
  %v26 = vld [vmem:[%s2 + $0x14] sm:$0xf]
  %v27 = vld [vmem:[%s2 + $0x18] sm:$0xff]
  %v28 = vld [vmem:[%s2 + $0x20] sm:$0xf]
  %v29 = vld [vmem:[%s2 + $0x24] sm:$0xff]
  %v30 = vld [vmem:[%s2 + $0x2c] sm:$0xf]
  %v31 = vld [vmem:[%s2 + $0x30] sm:$0xff]
  %v32 = vld [vmem:[%s2 + $0x38] sm:$0xf]
  %v33 = vld [vmem:[%s2 + $0x3c] sm:$0xff]
  %v34 = vld [vmem:[%s2 + $0x44] sm:$0xf]
  %v35 = vld [vmem:[%s2 + $0x48] sm:$0xff]
  %v36 = vld [vmem:[%s2 + $0x50] sm:$0xf]
  %v37 = vld [vmem:[%s2 + $0x54] sm:$0xff]
  %v38 = vld [vmem:[%s2 + $0x5c] sm:$0xf]
  %v39 = vld [vmem:[%s2 + $0x60] sm:$0xff]
  %v40 = vld [vmem:[%s2 + $0x68] sm:$0xf]
  %v41 = vld [vmem:[%s2 + $0x6c] sm:$0xff]
  %v42 = vld [vmem:[%s2 + $0x74] sm:$0xf]
  %v43 = vld [vmem:[%s2 + $0x78] sm:$0xff]
  %v44 = vld [vmem:[%s2 + $0x80] sm:$0xf]
  %v45 = vld [vmem:[%s2 + $0x84] sm:$0xff]
  %v46 = vld [vmem:[%s2 + $0x8c] sm:$0xf]
  %v47 = vld [vmem:[%s2 + $0x90] sm:$0xff]
  %v48 = vld [vmem:[%s2 + $0x98] sm:$0xf]
  %v49 = vld [vmem:[%s2 + $0x9c] sm:$0xff]
  %v50 = vld [vmem:[%s2 + $0xa4] sm:$0xf]
  %v51 = vld [vmem:[%s2 + $0xa8] sm:$0xff]
  %v52 = vld [vmem:[%s2 + $0xb0] sm:$0xf]
  %v53 = vld [vmem:[%s2 + $0xb4] sm:$0xff]
  %v54 = vld [vmem:[%s2 + $0xbc] sm:$0xf]
  %v55 = vld [vmem:[%s2 + $0xc0] sm:$0xff]
  %v56 = vld [vmem:[%s2 + $0xc8] sm:$0xf]
  %v57 = vld [vmem:[%s2 + $0xcc] sm:$0xff]
  %v58 = vld [vmem:[%s2 + $0xd4] sm:$0xf]
  %v59 = vld [vmem:[%s2 + $0xd8] sm:$0xff]
  %v60 = vld [vmem:[%s2 + $0xe0] sm:$0xf]
  %v61 = vld [vmem:[%s2 + $0xe4] sm:$0xff]
  %v62 = vld [vmem:[%s2 + $0xec] sm:$0xf]
  %v63 = vld [vmem:[%s2 + $0xf0] sm:$0xff]
  %v64 = vld [vmem:[%s2 + $0xf8] sm:$0xf]
  %v65 = vld [vmem:[%s2 + $0xfc] sm:$0xff]
  %v66 = vld [vmem:[%s2 + $0x104] sm:$0xf]
  %v67 = vld [vmem:[%s2 + $0x108] sm:$0xff]
  %v68 = vld [vmem:[%s2 + $0x110] sm:$0xf]
  %v69 = vld [vmem:[%s2 + $0x114] sm:$0xff]
  %v70 = vld [vmem:[%s2 + $0x11c] sm:$0xf]
  %v71 = vld [vmem:[%s2 + $0x120] sm:$0xff]
  %v72 = vld [vmem:[%s2 + $0x128] sm:$0xf]
  %v73 = vld [vmem:[%s2 + $0x12c] sm:$0xff]
  %v74 = vld [vmem:[%s2 + $0x134] sm:$0xf]
  %v75 = vld [vmem:[%s2 + $0x138] sm:$0xff]
  %v76 = vld [vmem:[%s2 + $0x140] sm:$0xf]
  %v77 = vld [vmem:[%s2 + $0x144] sm:$0xff]
  %v78 = vld [vmem:[%s2 + $0x14c] sm:$0xf]
  %v79 = vld [vmem:[%s2 + $0x150] sm:$0xff]
  %v80 = vld [vmem:[%s2 + $0x158] sm:$0xf]
  %v81 = vld [vmem:[%s2 + $0x15c] sm:$0xff]
  %v82 = vld [vmem:[%s2 + $0x164] sm:$0xf]
  %v83 = vld [vmem:[%s2 + $0x168] sm:$0xff]
  %v84 = vld [vmem:[%s2 + $0x170] sm:$0xf]
  %v85 = vld [vmem:[%s2 + $0x174] sm:$0xff]
  %v86 = vld [vmem:[%s2 + $0x17c] sm:$0xf]
  %v87 = vld [vmem:[%s3] sm:$0x7]
  %v88 = vld [vmem:[%s3 + $0x3] sm:$0x7]
  %v89 = vld [vmem:[#allocation2] sm:$0xff]
  %v90 = vld [vmem:[#allocation2 + $0x8] sm:$0xff]
  %v91 = vld [vmem:[%s0] sm:$0xff]
  %v92 = vld [vmem:[%s0 + $0x8] sm:$0xff]
  %v93 = vld [vmem:[%s0 + $0x10] sm:$0xff]
  %v94 = vld [vmem:[%s0 + $0x18] sm:$0xff]
  %v95 = vld [vmem:[%s0 + $0x20] sm:$0xff]
  %v96 = vld [vmem:[%s0 + $0x28] sm:$0xff]
  %v97 = vld [vmem:[%s1] sm:$0xff]
  %v98 = vpack.c.bf16 %v89, %v89
  %v99 = vpack.c.bf16 %v90, %v90
  %v102 = vperm.slane %v87, 0
  %v103 = vperm.slane %v87, 1
  %v104 = vperm.slane %v87, 2
  %v105 = vperm.slane %v88, 0
  %v106 = vperm.slane %v88, 1
  %v107 = vperm.slane %v88, 2
  %v146 = vunpack.c.l.b16 %v23
  %v147 = vunpack.c.h.b16 %v23
  %v148 = vunpack.c.l.b16 %v24
  %v149 = vunpack.c.l.b16 %v25
  %v150 = vunpack.c.h.b16 %v25
  %v151 = vunpack.c.l.b16 %v26
  %v152 = vunpack.c.l.b16 %v27
  %v153 = vunpack.c.h.b16 %v27
  %v154 = vunpack.c.l.b16 %v28
  %v155 = vunpack.c.l.b16 %v29
  %v156 = vunpack.c.h.b16 %v29
  %v157 = vunpack.c.l.b16 %v30
  %v158 = vunpack.c.l.b16 %v31
  %v159 = vunpack.c.h.b16 %v31
  %v160 = vunpack.c.l.b16 %v32
  %v161 = vunpack.c.l.b16 %v33
  %v162 = vunpack.c.h.b16 %v33
  %v163 = vunpack.c.l.b16 %v34
  %v164 = vunpack.c.l.b16 %v35
  %v165 = vunpack.c.h.b16 %v35
  %v166 = vunpack.c.l.b16 %v36
  %v167 = vunpack.c.l.b16 %v37
  %v168 = vunpack.c.h.b16 %v37
  %v169 = vunpack.c.l.b16 %v38
  %v170 = vunpack.c.l.b16 %v39
  %v171 = vunpack.c.h.b16 %v39
  %v172 = vunpack.c.l.b16 %v40
  %v173 = vunpack.c.l.b16 %v41
  %v174 = vunpack.c.h.b16 %v41
  %v175 = vunpack.c.l.b16 %v42
  %v176 = vunpack.c.l.b16 %v43
  %v177 = vunpack.c.h.b16 %v43
  %v178 = vunpack.c.l.b16 %v44
  %v179 = vunpack.c.l.b16 %v45
  %v180 = vunpack.c.h.b16 %v45
  %v181 = vunpack.c.l.b16 %v46
  %v182 = vunpack.c.l.b16 %v47
  %v183 = vunpack.c.h.b16 %v47
  %v184 = vunpack.c.l.b16 %v48
  %v185 = vunpack.c.l.b16 %v49
  %v186 = vunpack.c.h.b16 %v49
  %v187 = vunpack.c.l.b16 %v50
  %v188 = vunpack.c.l.b16 %v51
  %v189 = vunpack.c.h.b16 %v51
  %v190 = vunpack.c.l.b16 %v52
  %v191 = vunpack.c.l.b16 %v53
  %v192 = vunpack.c.h.b16 %v53
  %v193 = vunpack.c.l.b16 %v54
  %v194 = vpack.c.b16 %v149, %v146
  %v195 = vpack.c.b16 %v150, %v147
  %v196 = vpack.c.b16 %v151, %v148
  %v197 = vpack.c.b16 %v155, %v152
  %v198 = vpack.c.b16 %v156, %v153
  %v199 = vpack.c.b16 %v157, %v154
  %v200 = vpack.c.b16 %v161, %v158
  %v201 = vpack.c.b16 %v162, %v159
  %v202 = vpack.c.b16 %v163, %v160
  %v203 = vpack.c.b16 %v167, %v164
  %v204 = vpack.c.b16 %v168, %v165
  %v205 = vpack.c.b16 %v169, %v166
  %v206 = vpack.c.b16 %v173, %v170
  %v207 = vpack.c.b16 %v174, %v171
  %v208 = vpack.c.b16 %v175, %v172
  %v209 = vpack.c.b16 %v179, %v176
  %v210 = vpack.c.b16 %v180, %v177
  %v211 = vpack.c.b16 %v181, %v178
  %v212 = vpack.c.b16 %v185, %v182
  %v213 = vpack.c.b16 %v186, %v183
  %v214 = vpack.c.b16 %v187, %v184
  %v215 = vpack.c.b16 %v191, %v188
  %v216 = vpack.c.b16 %v192, %v189
  %v217 = vpack.c.b16 %v193, %v190
  %242 = vmatpush.bf16.msra.mxu0 %v215
  %243 = vmatpush.bf16.msra.mxu0 %v212
  %244 = vmatpush.bf16.msra.mxu0 %v209
  %245 = vmatpush.bf16.msra.mxu0 %v206
  %246 = vmatpush.bf16.msra.mxu0 %v203
  %247 = vmatpush.bf16.msra.mxu0 %v200
  %248 = vmatpush.bf16.msra.mxu0 %v197
  %249 = vmatpush.bf16.msra.mxu0 %v194
  %250 = vmatmul.bf16.gmra.mxu0 %v98
  %v251 = vpop.f32.mrf.mxu0
  %v252 = vadd.f32 %v102, %v251
  %v253 = vpop.f32.mrf.mxu0
  %254 = vdwg.mxu0
  %255 = vmatpush.bf16.msra.mxu0 %v216
  %256 = vmatpush.bf16.msra.mxu0 %v213
  %257 = vmatpush.bf16.msra.mxu0 %v210
  %258 = vmatpush.bf16.msra.mxu0 %v207
  %259 = vmatpush.bf16.msra.mxu0 %v204
  %260 = vmatpush.bf16.msra.mxu0 %v201
  %261 = vmatpush.bf16.msra.mxu0 %v198
  %262 = vmatpush.bf16.msra.mxu0 %v195
  %263 = vmatmul.bf16.gmra.mxu0 %v98
  %v264 = vpop.f32.mrf.mxu0
  %v265 = vadd.f32 %v103, %v264
  %v266 = vpop.f32.mrf.mxu0
  %267 = vdwg.mxu0
  %268 = vmatpush.bf16.msra.mxu0 %v217
  %269 = vmatpush.bf16.msra.mxu0 %v214
  %270 = vmatpush.bf16.msra.mxu0 %v211
  %271 = vmatpush.bf16.msra.mxu0 %v208
  %272 = vmatpush.bf16.msra.mxu0 %v205
  %273 = vmatpush.bf16.msra.mxu0 %v202
  %274 = vmatpush.bf16.msra.mxu0 %v199
  %275 = vmatpush.bf16.msra.mxu0 %v196
  %276 = vmatmul.bf16.gmra.mxu0 %v98
  %v277 = vpop.f32.mrf.mxu0
  %v278 = vadd.f32 %v104, %v277
  %v279 = vpop.f32.mrf.mxu0
  %280 = vdwg.mxu0
  %v313 = vunpack.c.l.b16 %v55
  %v314 = vunpack.c.h.b16 %v55
  %v315 = vunpack.c.l.b16 %v56
  %v316 = vunpack.c.l.b16 %v57
  %v317 = vunpack.c.h.b16 %v57
  %v318 = vunpack.c.l.b16 %v58
  %v319 = vunpack.c.l.b16 %v59
  %v320 = vunpack.c.h.b16 %v59
  %v321 = vunpack.c.l.b16 %v60
  %v322 = vunpack.c.l.b16 %v61
  %v323 = vunpack.c.h.b16 %v61
  %v324 = vunpack.c.l.b16 %v62
  %v325 = vunpack.c.l.b16 %v63
  %v326 = vunpack.c.h.b16 %v63
  %v327 = vunpack.c.l.b16 %v64
  %v328 = vunpack.c.l.b16 %v65
  %v329 = vunpack.c.h.b16 %v65
  %v330 = vunpack.c.l.b16 %v66
  %v331 = vunpack.c.l.b16 %v67
  %v332 = vunpack.c.h.b16 %v67
  %v333 = vunpack.c.l.b16 %v68
  %v334 = vunpack.c.l.b16 %v69
  %v335 = vunpack.c.h.b16 %v69
  %v336 = vunpack.c.l.b16 %v70
  %v337 = vunpack.c.l.b16 %v71
  %v338 = vunpack.c.h.b16 %v71
  %v339 = vunpack.c.l.b16 %v72
  %v340 = vunpack.c.l.b16 %v73
  %v341 = vunpack.c.h.b16 %v73
  %v342 = vunpack.c.l.b16 %v74
  %v343 = vunpack.c.l.b16 %v75
  %v344 = vunpack.c.h.b16 %v75
  %v345 = vunpack.c.l.b16 %v76
  %v346 = vunpack.c.l.b16 %v77
  %v347 = vunpack.c.h.b16 %v77
  %v348 = vunpack.c.l.b16 %v78
  %v349 = vunpack.c.l.b16 %v79
  %v350 = vunpack.c.h.b16 %v79
  %v351 = vunpack.c.l.b16 %v80
  %v352 = vunpack.c.l.b16 %v81
  %v353 = vunpack.c.h.b16 %v81
  %v354 = vunpack.c.l.b16 %v82
  %v355 = vunpack.c.l.b16 %v83
  %v356 = vunpack.c.h.b16 %v83
  %v357 = vunpack.c.l.b16 %v84
  %v358 = vunpack.c.l.b16 %v85
  %v359 = vunpack.c.h.b16 %v85
  %v360 = vunpack.c.l.b16 %v86
  %v361 = vpack.c.b16 %v316, %v313
  %v362 = vpack.c.b16 %v317, %v314
  %v363 = vpack.c.b16 %v318, %v315
  %v364 = vpack.c.b16 %v322, %v319
  %v365 = vpack.c.b16 %v323, %v320
  %v366 = vpack.c.b16 %v324, %v321
  %v367 = vpack.c.b16 %v328, %v325
  %v368 = vpack.c.b16 %v329, %v326
  %v369 = vpack.c.b16 %v330, %v327
  %v370 = vpack.c.b16 %v334, %v331
  %v371 = vpack.c.b16 %v335, %v332
  %v372 = vpack.c.b16 %v336, %v333
  %v373 = vpack.c.b16 %v340, %v337
  %v374 = vpack.c.b16 %v341, %v338
  %v375 = vpack.c.b16 %v342, %v339
  %v376 = vpack.c.b16 %v346, %v343
  %v377 = vpack.c.b16 %v347, %v344
  %v378 = vpack.c.b16 %v348, %v345
  %v379 = vpack.c.b16 %v352, %v349
  %v380 = vpack.c.b16 %v353, %v350
  %v381 = vpack.c.b16 %v354, %v351
  %v382 = vpack.c.b16 %v358, %v355
  %v383 = vpack.c.b16 %v359, %v356
  %v384 = vpack.c.b16 %v360, %v357
  %409 = vmatpush.bf16.msra.mxu0 %v382
  %410 = vmatpush.bf16.msra.mxu0 %v379
  %411 = vmatpush.bf16.msra.mxu0 %v376
  %412 = vmatpush.bf16.msra.mxu0 %v373
  %413 = vmatpush.bf16.msra.mxu0 %v370
  %414 = vmatpush.bf16.msra.mxu0 %v367
  %415 = vmatpush.bf16.msra.mxu0 %v364
  %416 = vmatpush.bf16.msra.mxu0 %v361
  %417 = vmatmul.bf16.gmra.mxu0 %v99
  %v418 = vpop.f32.mrf.mxu0
  %v419 = vadd.f32 %v105, %v418
  %v420 = vpop.f32.mrf.mxu0
  %421 = vdwg.mxu0
  %422 = vmatpush.bf16.msra.mxu0 %v383
  %423 = vmatpush.bf16.msra.mxu0 %v380
  %424 = vmatpush.bf16.msra.mxu0 %v377
  %425 = vmatpush.bf16.msra.mxu0 %v374
  %426 = vmatpush.bf16.msra.mxu0 %v371
  %427 = vmatpush.bf16.msra.mxu0 %v368
  %428 = vmatpush.bf16.msra.mxu0 %v365
  %429 = vmatpush.bf16.msra.mxu0 %v362
  %430 = vmatmul.bf16.gmra.mxu0 %v99
  %v431 = vpop.f32.mrf.mxu0
  %v432 = vadd.f32 %v106, %v431
  %v433 = vpop.f32.mrf.mxu0
  %434 = vdwg.mxu0
  %435 = vmatpush.bf16.msra.mxu0 %v384
  %436 = vmatpush.bf16.msra.mxu0 %v381
  %437 = vmatpush.bf16.msra.mxu0 %v378
  %438 = vmatpush.bf16.msra.mxu0 %v375
  %439 = vmatpush.bf16.msra.mxu0 %v372
  %440 = vmatpush.bf16.msra.mxu0 %v369
  %441 = vmatpush.bf16.msra.mxu0 %v366
  %442 = vmatpush.bf16.msra.mxu0 %v363
  %443 = vmatmul.bf16.gmra.mxu0 %v99
  %v444 = vpop.f32.mrf.mxu0
  %v445 = vadd.f32 %v107, %v444
  %v446 = vpop.f32.mrf.mxu0
  %447 = vdwg.mxu0
  %v448 = vadd.f32 %v91, %v252
  %v449 = vadd.f32 %v94, %v419
  %v450 = vsub.f32 0.0, %v448
  %v451 = vsub.f32 0.0, %v449
  %v452 = vmul.f32 %v450, 1.442695
  %v453 = vpow.pop %v452
  %v454 = vmul.f32 %v451, 1.442695
  %v455 = vpow.pop %v454
  %v456 = vadd.f32 %v453, 1.0
  %v457 = vadd.f32 %v455, 1.0
  %v458 = vrcp.pop %v456
  %v459 = vrcp.pop %v457
  %v460 = vadd.f32 %v92, %v265
  %v461 = vadd.f32 %v95, %v432
  %v462 = vsub.f32 0.0, %v460
  %v463 = vsub.f32 0.0, %v461
  %v464 = vmul.f32 %v462, 1.442695
  %v465 = vpow.pop %v464
  %v466 = vmul.f32 %v463, 1.442695
  %v467 = vpow.pop %v466
  %v468 = vadd.f32 %v465, 1.0
  %v469 = vadd.f32 %v467, 1.0
  %v470 = vrcp.pop %v468
  %v471 = vrcp.pop %v469
  %v472 = vmul.f32 %v458, %v278
  %v473 = vmul.f32 %v459, %v445
  %v474 = vadd.f32 %v93, %v472
  %v475 = vadd.f32 %v96, %v473
  %v476 = vtanh.pop %v474
  %v477 = vtanh.pop %v475
  %v478 = vsub.f32 1.0, %v470
  %v479 = vsub.f32 1.0, %v471
  %v480 = vmul.f32 %v478, %v476
  %v481 = vmul.f32 %v479, %v477
  %v482 = vmul.f32 %v470, %v89
  %v483 = vmul.f32 %v471, %v90
  %v484 = vadd.f32 %v480, %v482
  %v485 = vadd.f32 %v481, %v483
  %487 = vset.pattern.permute.xlu0 0
  %488 = vperm.xlu0 %487, %v97
  %v489 = vpop.permute.xlu0 %488
  %v491 = vmul.f32 %v489, %v484
  %v492 = vmul.f32 %v489, %v485
  %493 = vst [vmem:[%s4] sm:$0xff] %v491
  %494 = vst [vmem:[%s4 + $0x8] sm:$0xff] %v492
  %v495 = vsub.f32 1.0, %v97
  %497 = vset.pattern.permute.xlu0 0
  %498 = vperm.xlu0 %497, %v495
  %v499 = vpop.permute.xlu0 %498
  %v501 = vmul.f32 %v499, %v89
  %v502 = vmul.f32 %v499, %v90
  %v503 = vadd.f32 %v491, %v501
  %v504 = vadd.f32 %v492, %v502
  %s505 = scalar_lea.vmem %s0, 48
  %v506 = vld [vmem:[%s505] sm:$0xff]
  %v507 = vld [vmem:[%s505 + $0x8] sm:$0xff]
  %v508 = vld [vmem:[%s505 + $0x10] sm:$0xff]
  %v509 = vld [vmem:[%s505 + $0x18] sm:$0xff]
  %v510 = vld [vmem:[%s505 + $0x20] sm:$0xff]
  %v511 = vld [vmem:[%s505 + $0x28] sm:$0xff]
  %s512 = scalar_lea.vmem %s1, 8
  %v513 = vld [vmem:[%s512] sm:$0xff]
  %v514 = vpack.c.bf16 %v503, %v503
  %v515 = vpack.c.bf16 %v504, %v504
  %516 = vmatpush.bf16.msra.mxu0 %v215
  %517 = vmatpush.bf16.msra.mxu0 %v212
  %518 = vmatpush.bf16.msra.mxu0 %v209
  %519 = vmatpush.bf16.msra.mxu0 %v206
  %520 = vmatpush.bf16.msra.mxu0 %v203
  %521 = vmatpush.bf16.msra.mxu0 %v200
  %522 = vmatpush.bf16.msra.mxu0 %v197
  %523 = vmatpush.bf16.msra.mxu0 %v194
  %524 = vmatmul.bf16.gmra.mxu0 %v514
  %v525 = vpop.f32.mrf.mxu0
  %v526 = vadd.f32 %v102, %v525
  %v527 = vpop.f32.mrf.mxu0
  %528 = vdwg.mxu0
  %529 = vmatpush.bf16.msra.mxu0 %v216
  %530 = vmatpush.bf16.msra.mxu0 %v213
  %531 = vmatpush.bf16.msra.mxu0 %v210
  %532 = vmatpush.bf16.msra.mxu0 %v207
  %533 = vmatpush.bf16.msra.mxu0 %v204
  %534 = vmatpush.bf16.msra.mxu0 %v201
  %535 = vmatpush.bf16.msra.mxu0 %v198
  %536 = vmatpush.bf16.msra.mxu0 %v195
  %537 = vmatmul.bf16.gmra.mxu0 %v514
  %v538 = vpop.f32.mrf.mxu0
  %v539 = vadd.f32 %v103, %v538
  %v540 = vpop.f32.mrf.mxu0
  %541 = vdwg.mxu0
  %542 = vmatpush.bf16.msra.mxu0 %v217
  %543 = vmatpush.bf16.msra.mxu0 %v214
  %544 = vmatpush.bf16.msra.mxu0 %v211
  %545 = vmatpush.bf16.msra.mxu0 %v208
  %546 = vmatpush.bf16.msra.mxu0 %v205
  %547 = vmatpush.bf16.msra.mxu0 %v202
  %548 = vmatpush.bf16.msra.mxu0 %v199
  %549 = vmatpush.bf16.msra.mxu0 %v196
  %550 = vmatmul.bf16.gmra.mxu0 %v514
  %v551 = vpop.f32.mrf.mxu0
  %v552 = vadd.f32 %v104, %v551
  %v553 = vpop.f32.mrf.mxu0
  %554 = vdwg.mxu0
  %555 = vmatpush.bf16.msra.mxu0 %v382
  %556 = vmatpush.bf16.msra.mxu0 %v379
  %557 = vmatpush.bf16.msra.mxu0 %v376
  %558 = vmatpush.bf16.msra.mxu0 %v373
  %559 = vmatpush.bf16.msra.mxu0 %v370
  %560 = vmatpush.bf16.msra.mxu0 %v367
  %561 = vmatpush.bf16.msra.mxu0 %v364
  %562 = vmatpush.bf16.msra.mxu0 %v361
  %563 = vmatmul.bf16.gmra.mxu0 %v515
  %v564 = vpop.f32.mrf.mxu0
  %v565 = vadd.f32 %v105, %v564
  %v566 = vpop.f32.mrf.mxu0
  %567 = vdwg.mxu0
  %568 = vmatpush.bf16.msra.mxu0 %v383
  %569 = vmatpush.bf16.msra.mxu0 %v380
  %570 = vmatpush.bf16.msra.mxu0 %v377
  %571 = vmatpush.bf16.msra.mxu0 %v374
  %572 = vmatpush.bf16.msra.mxu0 %v371
  %573 = vmatpush.bf16.msra.mxu0 %v368
  %574 = vmatpush.bf16.msra.mxu0 %v365
  %575 = vmatpush.bf16.msra.mxu0 %v362
  %576 = vmatmul.bf16.gmra.mxu0 %v515
  %v577 = vpop.f32.mrf.mxu0
  %v578 = vadd.f32 %v106, %v577
  %v579 = vpop.f32.mrf.mxu0
  %580 = vdwg.mxu0
  %581 = vmatpush.bf16.msra.mxu0 %v384
  %582 = vmatpush.bf16.msra.mxu0 %v381
  %583 = vmatpush.bf16.msra.mxu0 %v378
  %584 = vmatpush.bf16.msra.mxu0 %v375
  %585 = vmatpush.bf16.msra.mxu0 %v372
  %586 = vmatpush.bf16.msra.mxu0 %v369
  %587 = vmatpush.bf16.msra.mxu0 %v366
  %588 = vmatpush.bf16.msra.mxu0 %v363
  %589 = vmatmul.bf16.gmra.mxu0 %v515
  %v590 = vpop.f32.mrf.mxu0
  %v591 = vadd.f32 %v107, %v590
  %v592 = vpop.f32.mrf.mxu0
  %593 = vdwg.mxu0
  %v594 = vadd.f32 %v506, %v526
  %v595 = vadd.f32 %v509, %v565
  %v596 = vsub.f32 0.0, %v594
  %v597 = vsub.f32 0.0, %v595
  %v598 = vmul.f32 %v596, 1.442695
  %v599 = vpow.pop %v598
  %v600 = vmul.f32 %v597, 1.442695
  %v601 = vpow.pop %v600
  %v602 = vadd.f32 %v599, 1.0
  %v603 = vadd.f32 %v601, 1.0
  %v604 = vrcp.pop %v602
  %v605 = vrcp.pop %v603
  %v606 = vadd.f32 %v507, %v539
  %v607 = vadd.f32 %v510, %v578
  %v608 = vsub.f32 0.0, %v606
  %v609 = vsub.f32 0.0, %v607
  %v610 = vmul.f32 %v608, 1.442695
  %v611 = vpow.pop %v610
  %v612 = vmul.f32 %v609, 1.442695
  %v613 = vpow.pop %v612
  %v614 = vadd.f32 %v611, 1.0
  %v615 = vadd.f32 %v613, 1.0
  %v616 = vrcp.pop %v614
  %v617 = vrcp.pop %v615
  %v618 = vmul.f32 %v604, %v552
  %v619 = vmul.f32 %v605, %v591
  %v620 = vadd.f32 %v508, %v618
  %v621 = vadd.f32 %v511, %v619
  %v622 = vtanh.pop %v620
  %v623 = vtanh.pop %v621
  %v624 = vsub.f32 1.0, %v616
  %v625 = vsub.f32 1.0, %v617
  %v626 = vmul.f32 %v624, %v622
  %v627 = vmul.f32 %v625, %v623
  %v628 = vmul.f32 %v616, %v503
  %v629 = vmul.f32 %v617, %v504
  %v630 = vadd.f32 %v626, %v628
  %v631 = vadd.f32 %v627, %v629
  %633 = vset.pattern.permute.xlu0 0
  %634 = vperm.xlu0 %633, %v513
  %v635 = vpop.permute.xlu0 %634
  %v637 = vmul.f32 %v635, %v630
  %v638 = vmul.f32 %v635, %v631
  %s639 = scalar_lea.vmem %s4, 16
  %640 = vst [vmem:[%s639] sm:$0xff] %v637
  %641 = vst [vmem:[%s639 + $0x8] sm:$0xff] %v638
  %v642 = vsub.f32 1.0, %v513
  %644 = vset.pattern.permute.xlu0 0
  %645 = vperm.xlu0 %644, %v642
  %v646 = vpop.permute.xlu0 %645
  %v648 = vmul.f32 %v646, %v503
  %v649 = vmul.f32 %v646, %v504
  %v650 = vadd.f32 %v637, %v648
  %v651 = vadd.f32 %v638, %v649
  %s652 = scalar_lea.vmem %s0, 96
  %v653 = vld [vmem:[%s652] sm:$0xff]
  %v654 = vld [vmem:[%s652 + $0x8] sm:$0xff]
  %v655 = vld [vmem:[%s652 + $0x10] sm:$0xff]
  %v656 = vld [vmem:[%s652 + $0x18] sm:$0xff]
  %v657 = vld [vmem:[%s652 + $0x20] sm:$0xff]
  %v658 = vld [vmem:[%s652 + $0x28] sm:$0xff]
  %s659 = scalar_lea.vmem %s1, 16
  %v660 = vld [vmem:[%s659] sm:$0xff]
  %v661 = vpack.c.bf16 %v650, %v650
  %v662 = vpack.c.bf16 %v651, %v651
  %663 = vmatpush.bf16.msra.mxu0 %v215
  %664 = vmatpush.bf16.msra.mxu0 %v212
  %665 = vmatpush.bf16.msra.mxu0 %v209
  %666 = vmatpush.bf16.msra.mxu0 %v206
  %667 = vmatpush.bf16.msra.mxu0 %v203
  %668 = vmatpush.bf16.msra.mxu0 %v200
  %669 = vmatpush.bf16.msra.mxu0 %v197
  %670 = vmatpush.bf16.msra.mxu0 %v194
  %671 = vmatmul.bf16.gmra.mxu0 %v661
  %v672 = vpop.f32.mrf.mxu0
  %v673 = vadd.f32 %v102, %v672
  %v674 = vpop.f32.mrf.mxu0
  %675 = vdwg.mxu0
  %676 = vmatpush.bf16.msra.mxu0 %v216
  %677 = vmatpush.bf16.msra.mxu0 %v213
  %678 = vmatpush.bf16.msra.mxu0 %v210
  %679 = vmatpush.bf16.msra.mxu0 %v207
  %680 = vmatpush.bf16.msra.mxu0 %v204
  %681 = vmatpush.bf16.msra.mxu0 %v201
  %682 = vmatpush.bf16.msra.mxu0 %v198
  %683 = vmatpush.bf16.msra.mxu0 %v195
  %684 = vmatmul.bf16.gmra.mxu0 %v661
  %v685 = vpop.f32.mrf.mxu0
  %v686 = vadd.f32 %v103, %v685
  %v687 = vpop.f32.mrf.mxu0
  %688 = vdwg.mxu0
  %689 = vmatpush.bf16.msra.mxu0 %v217
  %690 = vmatpush.bf16.msra.mxu0 %v214
  %691 = vmatpush.bf16.msra.mxu0 %v211
  %692 = vmatpush.bf16.msra.mxu0 %v208
  %693 = vmatpush.bf16.msra.mxu0 %v205
  %694 = vmatpush.bf16.msra.mxu0 %v202
  %695 = vmatpush.bf16.msra.mxu0 %v199
  %696 = vmatpush.bf16.msra.mxu0 %v196
  %697 = vmatmul.bf16.gmra.mxu0 %v661
  %v698 = vpop.f32.mrf.mxu0
  %v699 = vadd.f32 %v104, %v698
  %v700 = vpop.f32.mrf.mxu0
  %701 = vdwg.mxu0
  %702 = vmatpush.bf16.msra.mxu0 %v382
  %703 = vmatpush.bf16.msra.mxu0 %v379
  %704 = vmatpush.bf16.msra.mxu0 %v376
  %705 = vmatpush.bf16.msra.mxu0 %v373
  %706 = vmatpush.bf16.msra.mxu0 %v370
  %707 = vmatpush.bf16.msra.mxu0 %v367
  %708 = vmatpush.bf16.msra.mxu0 %v364
  %709 = vmatpush.bf16.msra.mxu0 %v361
  %710 = vmatmul.bf16.gmra.mxu0 %v662
  %v711 = vpop.f32.mrf.mxu0
  %v712 = vadd.f32 %v105, %v711
  %v713 = vpop.f32.mrf.mxu0
  %714 = vdwg.mxu0
  %715 = vmatpush.bf16.msra.mxu0 %v383
  %716 = vmatpush.bf16.msra.mxu0 %v380
  %717 = vmatpush.bf16.msra.mxu0 %v377
  %718 = vmatpush.bf16.msra.mxu0 %v374
  %719 = vmatpush.bf16.msra.mxu0 %v371
  %720 = vmatpush.bf16.msra.mxu0 %v368
  %721 = vmatpush.bf16.msra.mxu0 %v365
  %722 = vmatpush.bf16.msra.mxu0 %v362
  %723 = vmatmul.bf16.gmra.mxu0 %v662
  %v724 = vpop.f32.mrf.mxu0
  %v725 = vadd.f32 %v106, %v724
  %v726 = vpop.f32.mrf.mxu0
  %727 = vdwg.mxu0
  %728 = vmatpush.bf16.msra.mxu0 %v384
  %729 = vmatpush.bf16.msra.mxu0 %v381
  %730 = vmatpush.bf16.msra.mxu0 %v378
  %731 = vmatpush.bf16.msra.mxu0 %v375
  %732 = vmatpush.bf16.msra.mxu0 %v372
  %733 = vmatpush.bf16.msra.mxu0 %v369
  %734 = vmatpush.bf16.msra.mxu0 %v366
  %735 = vmatpush.bf16.msra.mxu0 %v363
  %736 = vmatmul.bf16.gmra.mxu0 %v662
  %v737 = vpop.f32.mrf.mxu0
  %v738 = vadd.f32 %v107, %v737
  %v739 = vpop.f32.mrf.mxu0
  %740 = vdwg.mxu0
  %v741 = vadd.f32 %v653, %v673
  %v742 = vadd.f32 %v656, %v712
  %v743 = vsub.f32 0.0, %v741
  %v744 = vsub.f32 0.0, %v742
  %v745 = vmul.f32 %v743, 1.442695
  %v746 = vpow.pop %v745
  %v747 = vmul.f32 %v744, 1.442695
  %v748 = vpow.pop %v747
  %v749 = vadd.f32 %v746, 1.0
  %v750 = vadd.f32 %v748, 1.0
  %v751 = vrcp.pop %v749
  %v752 = vrcp.pop %v750
  %v753 = vadd.f32 %v654, %v686
  %v754 = vadd.f32 %v657, %v725
  %v755 = vsub.f32 0.0, %v753
  %v756 = vsub.f32 0.0, %v754
  %v757 = vmul.f32 %v755, 1.442695
  %v758 = vpow.pop %v757
  %v759 = vmul.f32 %v756, 1.442695
  %v760 = vpow.pop %v759
  %v761 = vadd.f32 %v758, 1.0
  %v762 = vadd.f32 %v760, 1.0
  %v763 = vrcp.pop %v761
  %v764 = vrcp.pop %v762
  %v765 = vmul.f32 %v751, %v699
  %v766 = vmul.f32 %v752, %v738
  %v767 = vadd.f32 %v655, %v765
  %v768 = vadd.f32 %v658, %v766
  %v769 = vtanh.pop %v767
  %v770 = vtanh.pop %v768
  %v771 = vsub.f32 1.0, %v763
  %v772 = vsub.f32 1.0, %v764
  %v773 = vmul.f32 %v771, %v769
  %v774 = vmul.f32 %v772, %v770
  %v775 = vmul.f32 %v763, %v650
  %v776 = vmul.f32 %v764, %v651
  %v777 = vadd.f32 %v773, %v775
  %v778 = vadd.f32 %v774, %v776
  %780 = vset.pattern.permute.xlu0 0
  %781 = vperm.xlu0 %780, %v660
  %v782 = vpop.permute.xlu0 %781
  %v784 = vmul.f32 %v782, %v777
  %v785 = vmul.f32 %v782, %v778
  %s786 = scalar_lea.vmem %s4, 32
  %787 = vst [vmem:[%s786] sm:$0xff] %v784
  %788 = vst [vmem:[%s786 + $0x8] sm:$0xff] %v785
  %v789 = vsub.f32 1.0, %v660
  %791 = vset.pattern.permute.xlu0 0
  %792 = vperm.xlu0 %791, %v789
  %v793 = vpop.permute.xlu0 %792
  %v795 = vmul.f32 %v793, %v650
  %v796 = vmul.f32 %v793, %v651
  %v797 = vadd.f32 %v784, %v795
  %v798 = vadd.f32 %v785, %v796
  %s799 = scalar_lea.vmem %s0, 144
  %v800 = vld [vmem:[%s799] sm:$0xff]
  %v801 = vld [vmem:[%s799 + $0x8] sm:$0xff]
  %v802 = vld [vmem:[%s799 + $0x10] sm:$0xff]
  %v803 = vld [vmem:[%s799 + $0x18] sm:$0xff]
  %v804 = vld [vmem:[%s799 + $0x20] sm:$0xff]
  %v805 = vld [vmem:[%s799 + $0x28] sm:$0xff]
  %s806 = scalar_lea.vmem %s1, 24
  %v807 = vld [vmem:[%s806] sm:$0xff]
  %v808 = vpack.c.bf16 %v797, %v797
  %v809 = vpack.c.bf16 %v798, %v798
  %810 = vmatpush.bf16.msra.mxu0 %v215
  %811 = vmatpush.bf16.msra.mxu0 %v212
  %812 = vmatpush.bf16.msra.mxu0 %v209
  %813 = vmatpush.bf16.msra.mxu0 %v206
  %814 = vmatpush.bf16.msra.mxu0 %v203
  %815 = vmatpush.bf16.msra.mxu0 %v200
  %816 = vmatpush.bf16.msra.mxu0 %v197
  %817 = vmatpush.bf16.msra.mxu0 %v194
  %818 = vmatmul.bf16.gmra.mxu0 %v808
  %v819 = vpop.f32.mrf.mxu0
  %v820 = vadd.f32 %v102, %v819
  %v821 = vpop.f32.mrf.mxu0
  %822 = vdwg.mxu0
  %823 = vmatpush.bf16.msra.mxu0 %v216
  %824 = vmatpush.bf16.msra.mxu0 %v213
  %825 = vmatpush.bf16.msra.mxu0 %v210
  %826 = vmatpush.bf16.msra.mxu0 %v207
  %827 = vmatpush.bf16.msra.mxu0 %v204
  %828 = vmatpush.bf16.msra.mxu0 %v201
  %829 = vmatpush.bf16.msra.mxu0 %v198
  %830 = vmatpush.bf16.msra.mxu0 %v195
  %831 = vmatmul.bf16.gmra.mxu0 %v808
  %v832 = vpop.f32.mrf.mxu0
  %v833 = vadd.f32 %v103, %v832
  %v834 = vpop.f32.mrf.mxu0
  %835 = vdwg.mxu0
  %836 = vmatpush.bf16.msra.mxu0 %v217
  %837 = vmatpush.bf16.msra.mxu0 %v214
  %838 = vmatpush.bf16.msra.mxu0 %v211
  %839 = vmatpush.bf16.msra.mxu0 %v208
  %840 = vmatpush.bf16.msra.mxu0 %v205
  %841 = vmatpush.bf16.msra.mxu0 %v202
  %842 = vmatpush.bf16.msra.mxu0 %v199
  %843 = vmatpush.bf16.msra.mxu0 %v196
  %844 = vmatmul.bf16.gmra.mxu0 %v808
  %v845 = vpop.f32.mrf.mxu0
  %v846 = vadd.f32 %v104, %v845
  %v847 = vpop.f32.mrf.mxu0
  %848 = vdwg.mxu0
  %849 = vmatpush.bf16.msra.mxu0 %v382
  %850 = vmatpush.bf16.msra.mxu0 %v379
  %851 = vmatpush.bf16.msra.mxu0 %v376
  %852 = vmatpush.bf16.msra.mxu0 %v373
  %853 = vmatpush.bf16.msra.mxu0 %v370
  %854 = vmatpush.bf16.msra.mxu0 %v367
  %855 = vmatpush.bf16.msra.mxu0 %v364
  %856 = vmatpush.bf16.msra.mxu0 %v361
  %857 = vmatmul.bf16.gmra.mxu0 %v809
  %v858 = vpop.f32.mrf.mxu0
  %v859 = vadd.f32 %v105, %v858
  %v860 = vpop.f32.mrf.mxu0
  %861 = vdwg.mxu0
  %862 = vmatpush.bf16.msra.mxu0 %v383
  %863 = vmatpush.bf16.msra.mxu0 %v380
  %864 = vmatpush.bf16.msra.mxu0 %v377
  %865 = vmatpush.bf16.msra.mxu0 %v374
  %866 = vmatpush.bf16.msra.mxu0 %v371
  %867 = vmatpush.bf16.msra.mxu0 %v368
  %868 = vmatpush.bf16.msra.mxu0 %v365
  %869 = vmatpush.bf16.msra.mxu0 %v362
  %870 = vmatmul.bf16.gmra.mxu0 %v809
  %v871 = vpop.f32.mrf.mxu0
  %v872 = vadd.f32 %v106, %v871
  %v873 = vpop.f32.mrf.mxu0
  %874 = vdwg.mxu0
  %875 = vmatpush.bf16.msra.mxu0 %v384
  %876 = vmatpush.bf16.msra.mxu0 %v381
  %877 = vmatpush.bf16.msra.mxu0 %v378
  %878 = vmatpush.bf16.msra.mxu0 %v375
  %879 = vmatpush.bf16.msra.mxu0 %v372
  %880 = vmatpush.bf16.msra.mxu0 %v369
  %881 = vmatpush.bf16.msra.mxu0 %v366
  %882 = vmatpush.bf16.msra.mxu0 %v363
  %883 = vmatmul.bf16.gmra.mxu0 %v809
  %v884 = vpop.f32.mrf.mxu0
  %v885 = vadd.f32 %v107, %v884
  %v886 = vpop.f32.mrf.mxu0
  %887 = vdwg.mxu0
  %v888 = vadd.f32 %v800, %v820
  %v889 = vadd.f32 %v803, %v859
  %v890 = vsub.f32 0.0, %v888
  %v891 = vsub.f32 0.0, %v889
  %v892 = vmul.f32 %v890, 1.442695
  %v893 = vpow.pop %v892
  %v894 = vmul.f32 %v891, 1.442695
  %v895 = vpow.pop %v894
  %v896 = vadd.f32 %v893, 1.0
  %v897 = vadd.f32 %v895, 1.0
  %v898 = vrcp.pop %v896
  %v899 = vrcp.pop %v897
  %v900 = vadd.f32 %v801, %v833
  %v901 = vadd.f32 %v804, %v872
  %v902 = vsub.f32 0.0, %v900
  %v903 = vsub.f32 0.0, %v901
  %v904 = vmul.f32 %v902, 1.442695
  %v905 = vpow.pop %v904
  %v906 = vmul.f32 %v903, 1.442695
  %v907 = vpow.pop %v906
  %v908 = vadd.f32 %v905, 1.0
  %v909 = vadd.f32 %v907, 1.0
  %v910 = vrcp.pop %v908
  %v911 = vrcp.pop %v909
  %v912 = vmul.f32 %v898, %v846
  %v913 = vmul.f32 %v899, %v885
  %v914 = vadd.f32 %v802, %v912
  %v915 = vadd.f32 %v805, %v913
  %v916 = vtanh.pop %v914
  %v917 = vtanh.pop %v915
  %v918 = vsub.f32 1.0, %v910
  %v919 = vsub.f32 1.0, %v911
  %v920 = vmul.f32 %v918, %v916
  %v921 = vmul.f32 %v919, %v917
  %v922 = vmul.f32 %v910, %v797
  %v923 = vmul.f32 %v911, %v798
  %v924 = vadd.f32 %v920, %v922
  %v925 = vadd.f32 %v921, %v923
  %927 = vset.pattern.permute.xlu0 0
  %928 = vperm.xlu0 %927, %v807
  %v929 = vpop.permute.xlu0 %928
  %v931 = vmul.f32 %v929, %v924
  %v932 = vmul.f32 %v929, %v925
  %s933 = scalar_lea.vmem %s4, 48
  %934 = vst [vmem:[%s933] sm:$0xff] %v931
  %935 = vst [vmem:[%s933 + $0x8] sm:$0xff] %v932
  %v936 = vsub.f32 1.0, %v807
  %938 = vset.pattern.permute.xlu0 0
  %939 = vperm.xlu0 %938, %v936
  %v940 = vpop.permute.xlu0 %939
  %v942 = vmul.f32 %v940, %v797
  %v943 = vmul.f32 %v940, %v798
  %v944 = vadd.f32 %v931, %v942
  %v945 = vadd.f32 %v932, %v943
  %s946 = scalar_lea.vmem %s0, 192
  %v947 = vld [vmem:[%s946] sm:$0xff]
  %v948 = vld [vmem:[%s946 + $0x8] sm:$0xff]
  %v949 = vld [vmem:[%s946 + $0x10] sm:$0xff]
  %v950 = vld [vmem:[%s946 + $0x18] sm:$0xff]
  %v951 = vld [vmem:[%s946 + $0x20] sm:$0xff]
  %v952 = vld [vmem:[%s946 + $0x28] sm:$0xff]
  %s953 = scalar_lea.vmem %s1, 32
  %v954 = vld [vmem:[%s953] sm:$0xff]
  %v955 = vpack.c.bf16 %v944, %v944
  %v956 = vpack.c.bf16 %v945, %v945
  %957 = vmatpush.bf16.msra.mxu0 %v215
  %958 = vmatpush.bf16.msra.mxu0 %v212
  %959 = vmatpush.bf16.msra.mxu0 %v209
  %960 = vmatpush.bf16.msra.mxu0 %v206
  %961 = vmatpush.bf16.msra.mxu0 %v203
  %962 = vmatpush.bf16.msra.mxu0 %v200
  %963 = vmatpush.bf16.msra.mxu0 %v197
  %964 = vmatpush.bf16.msra.mxu0 %v194
  %965 = vmatmul.bf16.gmra.mxu0 %v955
  %v966 = vpop.f32.mrf.mxu0
  %v967 = vadd.f32 %v102, %v966
  %v968 = vpop.f32.mrf.mxu0
  %969 = vdwg.mxu0
  %970 = vmatpush.bf16.msra.mxu0 %v216
  %971 = vmatpush.bf16.msra.mxu0 %v213
  %972 = vmatpush.bf16.msra.mxu0 %v210
  %973 = vmatpush.bf16.msra.mxu0 %v207
  %974 = vmatpush.bf16.msra.mxu0 %v204
  %975 = vmatpush.bf16.msra.mxu0 %v201
  %976 = vmatpush.bf16.msra.mxu0 %v198
  %977 = vmatpush.bf16.msra.mxu0 %v195
  %978 = vmatmul.bf16.gmra.mxu0 %v955
  %v979 = vpop.f32.mrf.mxu0
  %v980 = vadd.f32 %v103, %v979
  %v981 = vpop.f32.mrf.mxu0
  %982 = vdwg.mxu0
  %983 = vmatpush.bf16.msra.mxu0 %v217
  %984 = vmatpush.bf16.msra.mxu0 %v214
  %985 = vmatpush.bf16.msra.mxu0 %v211
  %986 = vmatpush.bf16.msra.mxu0 %v208
  %987 = vmatpush.bf16.msra.mxu0 %v205
  %988 = vmatpush.bf16.msra.mxu0 %v202
  %989 = vmatpush.bf16.msra.mxu0 %v199
  %990 = vmatpush.bf16.msra.mxu0 %v196
  %991 = vmatmul.bf16.gmra.mxu0 %v955
  %v992 = vpop.f32.mrf.mxu0
  %v993 = vadd.f32 %v104, %v992
  %v994 = vpop.f32.mrf.mxu0
  %995 = vdwg.mxu0
  %996 = vmatpush.bf16.msra.mxu0 %v382
  %997 = vmatpush.bf16.msra.mxu0 %v379
  %998 = vmatpush.bf16.msra.mxu0 %v376
  %999 = vmatpush.bf16.msra.mxu0 %v373
  %1000 = vmatpush.bf16.msra.mxu0 %v370
  %1001 = vmatpush.bf16.msra.mxu0 %v367
  %1002 = vmatpush.bf16.msra.mxu0 %v364
  %1003 = vmatpush.bf16.msra.mxu0 %v361
  %1004 = vmatmul.bf16.gmra.mxu0 %v956
  %v1005 = vpop.f32.mrf.mxu0
  %v1006 = vadd.f32 %v105, %v1005
  %v1007 = vpop.f32.mrf.mxu0
  %1008 = vdwg.mxu0
  %1009 = vmatpush.bf16.msra.mxu0 %v383
  %1010 = vmatpush.bf16.msra.mxu0 %v380
  %1011 = vmatpush.bf16.msra.mxu0 %v377
  %1012 = vmatpush.bf16.msra.mxu0 %v374
  %1013 = vmatpush.bf16.msra.mxu0 %v371
  %1014 = vmatpush.bf16.msra.mxu0 %v368
  %1015 = vmatpush.bf16.msra.mxu0 %v365
  %1016 = vmatpush.bf16.msra.mxu0 %v362
  %1017 = vmatmul.bf16.gmra.mxu0 %v956
  %v1018 = vpop.f32.mrf.mxu0
  %v1019 = vadd.f32 %v106, %v1018
  %v1020 = vpop.f32.mrf.mxu0
  %1021 = vdwg.mxu0
  %1022 = vmatpush.bf16.msra.mxu0 %v384
  %1023 = vmatpush.bf16.msra.mxu0 %v381
  %1024 = vmatpush.bf16.msra.mxu0 %v378
  %1025 = vmatpush.bf16.msra.mxu0 %v375
  %1026 = vmatpush.bf16.msra.mxu0 %v372
  %1027 = vmatpush.bf16.msra.mxu0 %v369
  %1028 = vmatpush.bf16.msra.mxu0 %v366
  %1029 = vmatpush.bf16.msra.mxu0 %v363
  %1030 = vmatmul.bf16.gmra.mxu0 %v956
  %v1031 = vpop.f32.mrf.mxu0
  %v1032 = vadd.f32 %v107, %v1031
  %v1033 = vpop.f32.mrf.mxu0
  %1034 = vdwg.mxu0
  %v1035 = vadd.f32 %v947, %v967
  %v1036 = vadd.f32 %v950, %v1006
  %v1037 = vsub.f32 0.0, %v1035
  %v1038 = vsub.f32 0.0, %v1036
  %v1039 = vmul.f32 %v1037, 1.442695
  %v1040 = vpow.pop %v1039
  %v1041 = vmul.f32 %v1038, 1.442695
  %v1042 = vpow.pop %v1041
  %v1043 = vadd.f32 %v1040, 1.0
  %v1044 = vadd.f32 %v1042, 1.0
  %v1045 = vrcp.pop %v1043
  %v1046 = vrcp.pop %v1044
  %v1047 = vadd.f32 %v948, %v980
  %v1048 = vadd.f32 %v951, %v1019
  %v1049 = vsub.f32 0.0, %v1047
  %v1050 = vsub.f32 0.0, %v1048
  %v1051 = vmul.f32 %v1049, 1.442695
  %v1052 = vpow.pop %v1051
  %v1053 = vmul.f32 %v1050, 1.442695
  %v1054 = vpow.pop %v1053
  %v1055 = vadd.f32 %v1052, 1.0
  %v1056 = vadd.f32 %v1054, 1.0
  %v1057 = vrcp.pop %v1055
  %v1058 = vrcp.pop %v1056
  %v1059 = vmul.f32 %v1045, %v993
  %v1060 = vmul.f32 %v1046, %v1032
  %v1061 = vadd.f32 %v949, %v1059
  %v1062 = vadd.f32 %v952, %v1060
  %v1063 = vtanh.pop %v1061
  %v1064 = vtanh.pop %v1062
  %v1065 = vsub.f32 1.0, %v1057
  %v1066 = vsub.f32 1.0, %v1058
  %v1067 = vmul.f32 %v1065, %v1063
  %v1068 = vmul.f32 %v1066, %v1064
  %v1069 = vmul.f32 %v1057, %v944
  %v1070 = vmul.f32 %v1058, %v945
  %v1071 = vadd.f32 %v1067, %v1069
  %v1072 = vadd.f32 %v1068, %v1070
  %1074 = vset.pattern.permute.xlu0 0
  %1075 = vperm.xlu0 %1074, %v954
  %v1076 = vpop.permute.xlu0 %1075
  %v1078 = vmul.f32 %v1076, %v1071
  %v1079 = vmul.f32 %v1076, %v1072
  %s1080 = scalar_lea.vmem %s4, 64
  %1081 = vst [vmem:[%s1080] sm:$0xff] %v1078
  %1082 = vst [vmem:[%s1080 + $0x8] sm:$0xff] %v1079
  %v1083 = vsub.f32 1.0, %v954
  %1085 = vset.pattern.permute.xlu0 0
  %1086 = vperm.xlu0 %1085, %v1083
  %v1087 = vpop.permute.xlu0 %1086
  %v1089 = vmul.f32 %v1087, %v944
  %v1090 = vmul.f32 %v1087, %v945
  %v1091 = vadd.f32 %v1078, %v1089
  %v1092 = vadd.f32 %v1079, %v1090
  %s1093 = scalar_lea.vmem %s0, 240
  %v1094 = vld [vmem:[%s1093] sm:$0xff]
  %v1095 = vld [vmem:[%s1093 + $0x8] sm:$0xff]
  %v1096 = vld [vmem:[%s1093 + $0x10] sm:$0xff]
  %v1097 = vld [vmem:[%s1093 + $0x18] sm:$0xff]
  %v1098 = vld [vmem:[%s1093 + $0x20] sm:$0xff]
  %v1099 = vld [vmem:[%s1093 + $0x28] sm:$0xff]
  %s1100 = scalar_lea.vmem %s1, 40
  %v1101 = vld [vmem:[%s1100] sm:$0xff]
  %v1102 = vpack.c.bf16 %v1091, %v1091
  %v1103 = vpack.c.bf16 %v1092, %v1092
  %1104 = vmatpush.bf16.msra.mxu0 %v215
  %1105 = vmatpush.bf16.msra.mxu0 %v212
  %1106 = vmatpush.bf16.msra.mxu0 %v209
  %1107 = vmatpush.bf16.msra.mxu0 %v206
  %1108 = vmatpush.bf16.msra.mxu0 %v203
  %1109 = vmatpush.bf16.msra.mxu0 %v200
  %1110 = vmatpush.bf16.msra.mxu0 %v197
  %1111 = vmatpush.bf16.msra.mxu0 %v194
  %1112 = vmatmul.bf16.gmra.mxu0 %v1102
  %v1113 = vpop.f32.mrf.mxu0
  %v1114 = vadd.f32 %v102, %v1113
  %v1115 = vpop.f32.mrf.mxu0
  %1116 = vdwg.mxu0
  %1117 = vmatpush.bf16.msra.mxu0 %v216
  %1118 = vmatpush.bf16.msra.mxu0 %v213
  %1119 = vmatpush.bf16.msra.mxu0 %v210
  %1120 = vmatpush.bf16.msra.mxu0 %v207
  %1121 = vmatpush.bf16.msra.mxu0 %v204
  %1122 = vmatpush.bf16.msra.mxu0 %v201
  %1123 = vmatpush.bf16.msra.mxu0 %v198
  %1124 = vmatpush.bf16.msra.mxu0 %v195
  %1125 = vmatmul.bf16.gmra.mxu0 %v1102
  %v1126 = vpop.f32.mrf.mxu0
  %v1127 = vadd.f32 %v103, %v1126
  %v1128 = vpop.f32.mrf.mxu0
  %1129 = vdwg.mxu0
  %1130 = vmatpush.bf16.msra.mxu0 %v217
  %1131 = vmatpush.bf16.msra.mxu0 %v214
  %1132 = vmatpush.bf16.msra.mxu0 %v211
  %1133 = vmatpush.bf16.msra.mxu0 %v208
  %1134 = vmatpush.bf16.msra.mxu0 %v205
  %1135 = vmatpush.bf16.msra.mxu0 %v202
  %1136 = vmatpush.bf16.msra.mxu0 %v199
  %1137 = vmatpush.bf16.msra.mxu0 %v196
  %1138 = vmatmul.bf16.gmra.mxu0 %v1102
  %v1139 = vpop.f32.mrf.mxu0
  %v1140 = vadd.f32 %v104, %v1139
  %v1141 = vpop.f32.mrf.mxu0
  %1142 = vdwg.mxu0
  %1143 = vmatpush.bf16.msra.mxu0 %v382
  %1144 = vmatpush.bf16.msra.mxu0 %v379
  %1145 = vmatpush.bf16.msra.mxu0 %v376
  %1146 = vmatpush.bf16.msra.mxu0 %v373
  %1147 = vmatpush.bf16.msra.mxu0 %v370
  %1148 = vmatpush.bf16.msra.mxu0 %v367
  %1149 = vmatpush.bf16.msra.mxu0 %v364
  %1150 = vmatpush.bf16.msra.mxu0 %v361
  %1151 = vmatmul.bf16.gmra.mxu0 %v1103
  %v1152 = vpop.f32.mrf.mxu0
  %v1153 = vadd.f32 %v105, %v1152
  %v1154 = vpop.f32.mrf.mxu0
  %1155 = vdwg.mxu0
  %1156 = vmatpush.bf16.msra.mxu0 %v383
  %1157 = vmatpush.bf16.msra.mxu0 %v380
  %1158 = vmatpush.bf16.msra.mxu0 %v377
  %1159 = vmatpush.bf16.msra.mxu0 %v374
  %1160 = vmatpush.bf16.msra.mxu0 %v371
  %1161 = vmatpush.bf16.msra.mxu0 %v368
  %1162 = vmatpush.bf16.msra.mxu0 %v365
  %1163 = vmatpush.bf16.msra.mxu0 %v362
  %1164 = vmatmul.bf16.gmra.mxu0 %v1103
  %v1165 = vpop.f32.mrf.mxu0
  %v1166 = vadd.f32 %v106, %v1165
  %v1167 = vpop.f32.mrf.mxu0
  %1168 = vdwg.mxu0
  %1169 = vmatpush.bf16.msra.mxu0 %v384
  %1170 = vmatpush.bf16.msra.mxu0 %v381
  %1171 = vmatpush.bf16.msra.mxu0 %v378
  %1172 = vmatpush.bf16.msra.mxu0 %v375
  %1173 = vmatpush.bf16.msra.mxu0 %v372
  %1174 = vmatpush.bf16.msra.mxu0 %v369
  %1175 = vmatpush.bf16.msra.mxu0 %v366
  %1176 = vmatpush.bf16.msra.mxu0 %v363
  %1177 = vmatmul.bf16.gmra.mxu0 %v1103
  %v1178 = vpop.f32.mrf.mxu0
  %v1179 = vadd.f32 %v107, %v1178
  %v1180 = vpop.f32.mrf.mxu0
  %1181 = vdwg.mxu0
  %v1182 = vadd.f32 %v1094, %v1114
  %v1183 = vadd.f32 %v1097, %v1153
  %v1184 = vsub.f32 0.0, %v1182
  %v1185 = vsub.f32 0.0, %v1183
  %v1186 = vmul.f32 %v1184, 1.442695
  %v1187 = vpow.pop %v1186
  %v1188 = vmul.f32 %v1185, 1.442695
  %v1189 = vpow.pop %v1188
  %v1190 = vadd.f32 %v1187, 1.0
  %v1191 = vadd.f32 %v1189, 1.0
  %v1192 = vrcp.pop %v1190
  %v1193 = vrcp.pop %v1191
  %v1194 = vadd.f32 %v1095, %v1127
  %v1195 = vadd.f32 %v1098, %v1166
  %v1196 = vsub.f32 0.0, %v1194
  %v1197 = vsub.f32 0.0, %v1195
  %v1198 = vmul.f32 %v1196, 1.442695
  %v1199 = vpow.pop %v1198
  %v1200 = vmul.f32 %v1197, 1.442695
  %v1201 = vpow.pop %v1200
  %v1202 = vadd.f32 %v1199, 1.0
  %v1203 = vadd.f32 %v1201, 1.0
  %v1204 = vrcp.pop %v1202
  %v1205 = vrcp.pop %v1203
  %v1206 = vmul.f32 %v1192, %v1140
  %v1207 = vmul.f32 %v1193, %v1179
  %v1208 = vadd.f32 %v1096, %v1206
  %v1209 = vadd.f32 %v1099, %v1207
  %v1210 = vtanh.pop %v1208
  %v1211 = vtanh.pop %v1209
  %v1212 = vsub.f32 1.0, %v1204
  %v1213 = vsub.f32 1.0, %v1205
  %v1214 = vmul.f32 %v1212, %v1210
  %v1215 = vmul.f32 %v1213, %v1211
  %v1216 = vmul.f32 %v1204, %v1091
  %v1217 = vmul.f32 %v1205, %v1092
  %v1218 = vadd.f32 %v1214, %v1216
  %v1219 = vadd.f32 %v1215, %v1217
  %1221 = vset.pattern.permute.xlu0 0
  %1222 = vperm.xlu0 %1221, %v1101
  %v1223 = vpop.permute.xlu0 %1222
  %v1225 = vmul.f32 %v1223, %v1218
  %v1226 = vmul.f32 %v1223, %v1219
  %s1227 = scalar_lea.vmem %s4, 80
  %1228 = vst [vmem:[%s1227] sm:$0xff] %v1225
  %1229 = vst [vmem:[%s1227 + $0x8] sm:$0xff] %v1226
  %v1230 = vsub.f32 1.0, %v1101
  %1232 = vset.pattern.permute.xlu0 0
  %1233 = vperm.xlu0 %1232, %v1230
  %v1234 = vpop.permute.xlu0 %1233
  %v1236 = vmul.f32 %v1234, %v1091
  %v1237 = vmul.f32 %v1234, %v1092
  %v1238 = vadd.f32 %v1225, %v1236
  %v1239 = vadd.f32 %v1226, %v1237
  %s1240 = scalar_lea.vmem %s0, 288
  %v1241 = vld [vmem:[%s1240] sm:$0xff]
  %v1242 = vld [vmem:[%s1240 + $0x8] sm:$0xff]
  %v1243 = vld [vmem:[%s1240 + $0x10] sm:$0xff]
  %v1244 = vld [vmem:[%s1240 + $0x18] sm:$0xff]
  %v1245 = vld [vmem:[%s1240 + $0x20] sm:$0xff]
  %v1246 = vld [vmem:[%s1240 + $0x28] sm:$0xff]
  %s1247 = scalar_lea.vmem %s1, 48
  %v1248 = vld [vmem:[%s1247] sm:$0xff]
  %v1249 = vpack.c.bf16 %v1238, %v1238
  %v1250 = vpack.c.bf16 %v1239, %v1239
  %1251 = vmatpush.bf16.msra.mxu0 %v215
  %1252 = vmatpush.bf16.msra.mxu0 %v212
  %1253 = vmatpush.bf16.msra.mxu0 %v209
  %1254 = vmatpush.bf16.msra.mxu0 %v206
  %1255 = vmatpush.bf16.msra.mxu0 %v203
  %1256 = vmatpush.bf16.msra.mxu0 %v200
  %1257 = vmatpush.bf16.msra.mxu0 %v197
  %1258 = vmatpush.bf16.msra.mxu0 %v194
  %1259 = vmatmul.bf16.gmra.mxu0 %v1249
  %v1260 = vpop.f32.mrf.mxu0
  %v1261 = vadd.f32 %v102, %v1260
  %v1262 = vpop.f32.mrf.mxu0
  %1263 = vdwg.mxu0
  %1264 = vmatpush.bf16.msra.mxu0 %v216
  %1265 = vmatpush.bf16.msra.mxu0 %v213
  %1266 = vmatpush.bf16.msra.mxu0 %v210
  %1267 = vmatpush.bf16.msra.mxu0 %v207
  %1268 = vmatpush.bf16.msra.mxu0 %v204
  %1269 = vmatpush.bf16.msra.mxu0 %v201
  %1270 = vmatpush.bf16.msra.mxu0 %v198
  %1271 = vmatpush.bf16.msra.mxu0 %v195
  %1272 = vmatmul.bf16.gmra.mxu0 %v1249
  %v1273 = vpop.f32.mrf.mxu0
  %v1274 = vadd.f32 %v103, %v1273
  %v1275 = vpop.f32.mrf.mxu0
  %1276 = vdwg.mxu0
  %1277 = vmatpush.bf16.msra.mxu0 %v217
  %1278 = vmatpush.bf16.msra.mxu0 %v214
  %1279 = vmatpush.bf16.msra.mxu0 %v211
  %1280 = vmatpush.bf16.msra.mxu0 %v208
  %1281 = vmatpush.bf16.msra.mxu0 %v205
  %1282 = vmatpush.bf16.msra.mxu0 %v202
  %1283 = vmatpush.bf16.msra.mxu0 %v199
  %1284 = vmatpush.bf16.msra.mxu0 %v196
  %1285 = vmatmul.bf16.gmra.mxu0 %v1249
  %v1286 = vpop.f32.mrf.mxu0
  %v1287 = vadd.f32 %v104, %v1286
  %v1288 = vpop.f32.mrf.mxu0
  %1289 = vdwg.mxu0
  %1290 = vmatpush.bf16.msra.mxu0 %v382
  %1291 = vmatpush.bf16.msra.mxu0 %v379
  %1292 = vmatpush.bf16.msra.mxu0 %v376
  %1293 = vmatpush.bf16.msra.mxu0 %v373
  %1294 = vmatpush.bf16.msra.mxu0 %v370
  %1295 = vmatpush.bf16.msra.mxu0 %v367
  %1296 = vmatpush.bf16.msra.mxu0 %v364
  %1297 = vmatpush.bf16.msra.mxu0 %v361
  %1298 = vmatmul.bf16.gmra.mxu0 %v1250
  %v1299 = vpop.f32.mrf.mxu0
  %v1300 = vadd.f32 %v105, %v1299
  %v1301 = vpop.f32.mrf.mxu0
  %1302 = vdwg.mxu0
  %1303 = vmatpush.bf16.msra.mxu0 %v383
  %1304 = vmatpush.bf16.msra.mxu0 %v380
  %1305 = vmatpush.bf16.msra.mxu0 %v377
  %1306 = vmatpush.bf16.msra.mxu0 %v374
  %1307 = vmatpush.bf16.msra.mxu0 %v371
  %1308 = vmatpush.bf16.msra.mxu0 %v368
  %1309 = vmatpush.bf16.msra.mxu0 %v365
  %1310 = vmatpush.bf16.msra.mxu0 %v362
  %1311 = vmatmul.bf16.gmra.mxu0 %v1250
  %v1312 = vpop.f32.mrf.mxu0
  %v1313 = vadd.f32 %v106, %v1312
  %v1314 = vpop.f32.mrf.mxu0
  %1315 = vdwg.mxu0
  %1316 = vmatpush.bf16.msra.mxu0 %v384
  %1317 = vmatpush.bf16.msra.mxu0 %v381
  %1318 = vmatpush.bf16.msra.mxu0 %v378
  %1319 = vmatpush.bf16.msra.mxu0 %v375
  %1320 = vmatpush.bf16.msra.mxu0 %v372
  %1321 = vmatpush.bf16.msra.mxu0 %v369
  %1322 = vmatpush.bf16.msra.mxu0 %v366
  %1323 = vmatpush.bf16.msra.mxu0 %v363
  %1324 = vmatmul.bf16.gmra.mxu0 %v1250
  %v1325 = vpop.f32.mrf.mxu0
  %v1326 = vadd.f32 %v107, %v1325
  %v1327 = vpop.f32.mrf.mxu0
  %1328 = vdwg.mxu0
  %v1329 = vadd.f32 %v1241, %v1261
  %v1330 = vadd.f32 %v1244, %v1300
  %v1331 = vsub.f32 0.0, %v1329
  %v1332 = vsub.f32 0.0, %v1330
  %v1333 = vmul.f32 %v1331, 1.442695
  %v1334 = vpow.pop %v1333
  %v1335 = vmul.f32 %v1332, 1.442695
  %v1336 = vpow.pop %v1335
  %v1337 = vadd.f32 %v1334, 1.0
  %v1338 = vadd.f32 %v1336, 1.0
  %v1339 = vrcp.pop %v1337
  %v1340 = vrcp.pop %v1338
  %v1341 = vadd.f32 %v1242, %v1274
  %v1342 = vadd.f32 %v1245, %v1313
  %v1343 = vsub.f32 0.0, %v1341
  %v1344 = vsub.f32 0.0, %v1342
  %v1345 = vmul.f32 %v1343, 1.442695
  %v1346 = vpow.pop %v1345
  %v1347 = vmul.f32 %v1344, 1.442695
  %v1348 = vpow.pop %v1347
  %v1349 = vadd.f32 %v1346, 1.0
  %v1350 = vadd.f32 %v1348, 1.0
  %v1351 = vrcp.pop %v1349
  %v1352 = vrcp.pop %v1350
  %v1353 = vmul.f32 %v1339, %v1287
  %v1354 = vmul.f32 %v1340, %v1326
  %v1355 = vadd.f32 %v1243, %v1353
  %v1356 = vadd.f32 %v1246, %v1354
  %v1357 = vtanh.pop %v1355
  %v1358 = vtanh.pop %v1356
  %v1359 = vsub.f32 1.0, %v1351
  %v1360 = vsub.f32 1.0, %v1352
  %v1361 = vmul.f32 %v1359, %v1357
  %v1362 = vmul.f32 %v1360, %v1358
  %v1363 = vmul.f32 %v1351, %v1238
  %v1364 = vmul.f32 %v1352, %v1239
  %v1365 = vadd.f32 %v1361, %v1363
  %v1366 = vadd.f32 %v1362, %v1364
  %1368 = vset.pattern.permute.xlu0 0
  %1369 = vperm.xlu0 %1368, %v1248
  %v1370 = vpop.permute.xlu0 %1369
  %v1372 = vmul.f32 %v1370, %v1365
  %v1373 = vmul.f32 %v1370, %v1366
  %s1374 = scalar_lea.vmem %s4, 96
  %1375 = vst [vmem:[%s1374] sm:$0xff] %v1372
  %1376 = vst [vmem:[%s1374 + $0x8] sm:$0xff] %v1373
  %v1377 = vsub.f32 1.0, %v1248
  %1379 = vset.pattern.permute.xlu0 0
  %1380 = vperm.xlu0 %1379, %v1377
  %v1381 = vpop.permute.xlu0 %1380
  %v1383 = vmul.f32 %v1381, %v1238
  %v1384 = vmul.f32 %v1381, %v1239
  %v1385 = vadd.f32 %v1372, %v1383
  %v1386 = vadd.f32 %v1373, %v1384
  %s1387 = scalar_lea.vmem %s0, 336
  %v1388 = vld [vmem:[%s1387] sm:$0xff]
  %v1389 = vld [vmem:[%s1387 + $0x8] sm:$0xff]
  %v1390 = vld [vmem:[%s1387 + $0x10] sm:$0xff]
  %v1391 = vld [vmem:[%s1387 + $0x18] sm:$0xff]
  %v1392 = vld [vmem:[%s1387 + $0x20] sm:$0xff]
  %v1393 = vld [vmem:[%s1387 + $0x28] sm:$0xff]
  %s1394 = scalar_lea.vmem %s1, 56
  %v1395 = vld [vmem:[%s1394] sm:$0xff]
  %v1396 = vpack.c.bf16 %v1385, %v1385
  %v1397 = vpack.c.bf16 %v1386, %v1386
  %1398 = vmatpush.bf16.msra.mxu0 %v215
  %1399 = vmatpush.bf16.msra.mxu0 %v212
  %1400 = vmatpush.bf16.msra.mxu0 %v209
  %1401 = vmatpush.bf16.msra.mxu0 %v206
  %1402 = vmatpush.bf16.msra.mxu0 %v203
  %1403 = vmatpush.bf16.msra.mxu0 %v200
  %1404 = vmatpush.bf16.msra.mxu0 %v197
  %1405 = vmatpush.bf16.msra.mxu0 %v194
  %1406 = vmatmul.bf16.gmra.mxu0 %v1396
  %v1407 = vpop.f32.mrf.mxu0
  %v1408 = vadd.f32 %v102, %v1407
  %v1409 = vpop.f32.mrf.mxu0
  %1410 = vdwg.mxu0
  %1411 = vmatpush.bf16.msra.mxu0 %v216
  %1412 = vmatpush.bf16.msra.mxu0 %v213
  %1413 = vmatpush.bf16.msra.mxu0 %v210
  %1414 = vmatpush.bf16.msra.mxu0 %v207
  %1415 = vmatpush.bf16.msra.mxu0 %v204
  %1416 = vmatpush.bf16.msra.mxu0 %v201
  %1417 = vmatpush.bf16.msra.mxu0 %v198
  %1418 = vmatpush.bf16.msra.mxu0 %v195
  %1419 = vmatmul.bf16.gmra.mxu0 %v1396
  %v1420 = vpop.f32.mrf.mxu0
  %v1421 = vadd.f32 %v103, %v1420
  %v1422 = vpop.f32.mrf.mxu0
  %1423 = vdwg.mxu0
  %1424 = vmatpush.bf16.msra.mxu0 %v217
  %1425 = vmatpush.bf16.msra.mxu0 %v214
  %1426 = vmatpush.bf16.msra.mxu0 %v211
  %1427 = vmatpush.bf16.msra.mxu0 %v208
  %1428 = vmatpush.bf16.msra.mxu0 %v205
  %1429 = vmatpush.bf16.msra.mxu0 %v202
  %1430 = vmatpush.bf16.msra.mxu0 %v199
  %1431 = vmatpush.bf16.msra.mxu0 %v196
  %1432 = vmatmul.bf16.gmra.mxu0 %v1396
  %v1433 = vpop.f32.mrf.mxu0
  %v1434 = vadd.f32 %v104, %v1433
  %v1435 = vpop.f32.mrf.mxu0
  %1436 = vdwg.mxu0
  %1437 = vmatpush.bf16.msra.mxu0 %v382
  %1438 = vmatpush.bf16.msra.mxu0 %v379
  %1439 = vmatpush.bf16.msra.mxu0 %v376
  %1440 = vmatpush.bf16.msra.mxu0 %v373
  %1441 = vmatpush.bf16.msra.mxu0 %v370
  %1442 = vmatpush.bf16.msra.mxu0 %v367
  %1443 = vmatpush.bf16.msra.mxu0 %v364
  %1444 = vmatpush.bf16.msra.mxu0 %v361
  %1445 = vmatmul.bf16.gmra.mxu0 %v1397
  %v1446 = vpop.f32.mrf.mxu0
  %v1447 = vadd.f32 %v105, %v1446
  %v1448 = vpop.f32.mrf.mxu0
  %1449 = vdwg.mxu0
  %1450 = vmatpush.bf16.msra.mxu0 %v383
  %1451 = vmatpush.bf16.msra.mxu0 %v380
  %1452 = vmatpush.bf16.msra.mxu0 %v377
  %1453 = vmatpush.bf16.msra.mxu0 %v374
  %1454 = vmatpush.bf16.msra.mxu0 %v371
  %1455 = vmatpush.bf16.msra.mxu0 %v368
  %1456 = vmatpush.bf16.msra.mxu0 %v365
  %1457 = vmatpush.bf16.msra.mxu0 %v362
  %1458 = vmatmul.bf16.gmra.mxu0 %v1397
  %v1459 = vpop.f32.mrf.mxu0
  %v1460 = vadd.f32 %v106, %v1459
  %v1461 = vpop.f32.mrf.mxu0
  %1462 = vdwg.mxu0
  %1463 = vmatpush.bf16.msra.mxu0 %v384
  %1464 = vmatpush.bf16.msra.mxu0 %v381
  %1465 = vmatpush.bf16.msra.mxu0 %v378
  %1466 = vmatpush.bf16.msra.mxu0 %v375
  %1467 = vmatpush.bf16.msra.mxu0 %v372
  %1468 = vmatpush.bf16.msra.mxu0 %v369
  %1469 = vmatpush.bf16.msra.mxu0 %v366
  %1470 = vmatpush.bf16.msra.mxu0 %v363
  %1471 = vmatmul.bf16.gmra.mxu0 %v1397
  %v1472 = vpop.f32.mrf.mxu0
  %v1473 = vadd.f32 %v107, %v1472
  %v1474 = vpop.f32.mrf.mxu0
  %1475 = vdwg.mxu0
  %v1476 = vadd.f32 %v1388, %v1408
  %v1477 = vadd.f32 %v1391, %v1447
  %v1478 = vsub.f32 0.0, %v1476
  %v1479 = vsub.f32 0.0, %v1477
  %v1480 = vmul.f32 %v1478, 1.442695
  %v1481 = vpow.pop %v1480
  %v1482 = vmul.f32 %v1479, 1.442695
  %v1483 = vpow.pop %v1482
  %v1484 = vadd.f32 %v1481, 1.0
  %v1485 = vadd.f32 %v1483, 1.0
  %v1486 = vrcp.pop %v1484
  %v1487 = vrcp.pop %v1485
  %v1488 = vadd.f32 %v1389, %v1421
  %v1489 = vadd.f32 %v1392, %v1460
  %v1490 = vsub.f32 0.0, %v1488
  %v1491 = vsub.f32 0.0, %v1489
  %v1492 = vmul.f32 %v1490, 1.442695
  %v1493 = vpow.pop %v1492
  %v1494 = vmul.f32 %v1491, 1.442695
  %v1495 = vpow.pop %v1494
  %v1496 = vadd.f32 %v1493, 1.0
  %v1497 = vadd.f32 %v1495, 1.0
  %v1498 = vrcp.pop %v1496
  %v1499 = vrcp.pop %v1497
  %v1500 = vmul.f32 %v1486, %v1434
  %v1501 = vmul.f32 %v1487, %v1473
  %v1502 = vadd.f32 %v1390, %v1500
  %v1503 = vadd.f32 %v1393, %v1501
  %v1504 = vtanh.pop %v1502
  %v1505 = vtanh.pop %v1503
  %v1506 = vsub.f32 1.0, %v1498
  %v1507 = vsub.f32 1.0, %v1499
  %v1508 = vmul.f32 %v1506, %v1504
  %v1509 = vmul.f32 %v1507, %v1505
  %v1510 = vmul.f32 %v1498, %v1385
  %v1511 = vmul.f32 %v1499, %v1386
  %v1512 = vadd.f32 %v1508, %v1510
  %v1513 = vadd.f32 %v1509, %v1511
  %1515 = vset.pattern.permute.xlu0 0
  %1516 = vperm.xlu0 %1515, %v1395
  %v1517 = vpop.permute.xlu0 %1516
  %v1519 = vmul.f32 %v1517, %v1512
  %v1520 = vmul.f32 %v1517, %v1513
  %s1521 = scalar_lea.vmem %s4, 112
  %1522 = vst [vmem:[%s1521] sm:$0xff] %v1519
  %1523 = vst [vmem:[%s1521 + $0x8] sm:$0xff] %v1520
  %v1524 = vsub.f32 1.0, %v1395
  %1526 = vset.pattern.permute.xlu0 0
  %1527 = vperm.xlu0 %1526, %v1524
  %v1528 = vpop.permute.xlu0 %1527
  %v1530 = vmul.f32 %v1528, %v1385
  %v1531 = vmul.f32 %v1528, %v1386
  %v1532 = vadd.f32 %v1519, %v1530
  %v1533 = vadd.f32 %v1520, %v1531
  %1534 = vst [vmem:[#allocation2] sm:$0xff] %v1532
  %1535 = vst [vmem:[#allocation2 + $0x8] sm:$0xff] %v1533
  // Predicated region
  $region22: #{deepspeech2_forward.10} parent=0 // pred_check
    _
  $region23: #{deepspeech2_forward.10} parent=0 // pred_check_branch
    %1537 = sbr.rel (0) target = $region25
  $region24: #{deepspeech2_forward.10} parent=0 // pred_region
    _
  $region25: #{deepspeech2_forward.10} parent=0 // pred_fallthru
    _
  // Predicated region
  $region26: #{deepspeech2_forward.10} parent=0 // pred_check
    _
  $region27: #{deepspeech2_forward.10} parent=0 // pred_check_branch
    %1539 = sbr.rel (0) target = $region29
  $region28: #{deepspeech2_forward.10} parent=0 // pred_region
    _
  $region29: #{deepspeech2_forward.10} parent=0 // pred_fallthru
    _

// kernel: deepspeech2_forward.13
$region0: #{deepspeech2_forward.13}
  #allocation0 [shape = 'u32[]', space=smem, size = 0x4, offset = 0x4, fixed_abs, tag = 'smem constant byte address 0x4 - core index']
  #allocation1 [shape = 'u32[72,128]{1,0:T(1,128)}', space=vmem, size = 0x9000, scoped, tag = 'internal scratch']
  %s0 = inlined_call_operand.vmem [shape: bf16[64,128], index: 0, kind: input, shape index: {}]
  %s1 = inlined_call_operand.vmem [shape: bf16[128,128], index: 1, kind: input, shape index: {}]
  %s2 = inlined_call_operand.vmem [shape: f32[1,128], index: 2, kind: input, shape index: {}]
  %s3 = inlined_call_operand.vmem [shape: f32[64,128], index: 3, kind: output, shape index: {}]
  %s4 = sld [smem:[#allocation0]]
  $region22: #{deepspeech2_forward.13} parent=0
    _
  %s6 = ssub.s32 1, %s4
  %s7 = scalar_select 0, %s6, %s4
  // Predicated region
  $region2: #{deepspeech2_forward.13} parent=0 // pred_check
    _
  $region3: #{deepspeech2_forward.13} parent=0 // pred_check_branch
    %9 = sbr.rel (0) target = $region5
  $region4: #{deepspeech2_forward.13} parent=0 // pred_region
    _
  $region5: #{deepspeech2_forward.13} parent=0 // pred_fallthru
    _
  // Predicated region
  $region6: #{deepspeech2_forward.13} parent=0 // pred_check
    _
  $region7: #{deepspeech2_forward.13} parent=0 // pred_check_branch
    %11 = sbr.rel (0) target = $region9
  $region8: #{deepspeech2_forward.13} parent=0 // pred_region
    _
  $region9: #{deepspeech2_forward.13} parent=0 // pred_fallthru
    _
  // Predicated region
  $region10: #{deepspeech2_forward.13} parent=0 // pred_check
    _
  $region11: #{deepspeech2_forward.13} parent=0 // pred_check_branch
    %13 = sbr.rel (0) target = $region13
  $region12: #{deepspeech2_forward.13} parent=0 // pred_region
    _
  $region13: #{deepspeech2_forward.13} parent=0 // pred_fallthru
    _
  %v14 = vld [vmem:[%s0] sm:$0xf]
  %v15 = vld [vmem:[%s0 + $0x4] sm:$0xf]
  %v16 = vld [vmem:[%s0 + $0x8] sm:$0xf]
  %v17 = vld [vmem:[%s0 + $0xc] sm:$0xf]
  %v18 = vld [vmem:[%s0 + $0x10] sm:$0xf]
  %v19 = vld [vmem:[%s0 + $0x14] sm:$0xf]
  %v20 = vld [vmem:[%s0 + $0x18] sm:$0xf]
  %v21 = vld [vmem:[%s0 + $0x1c] sm:$0xf]
  %v22 = vld [vmem:[%s1] sm:$0xf]
  %v23 = vld [vmem:[%s1 + $0x4] sm:$0xf]
  %v24 = vld [vmem:[%s1 + $0x8] sm:$0xf]
  %v25 = vld [vmem:[%s1 + $0xc] sm:$0xf]
  %v26 = vld [vmem:[%s1 + $0x10] sm:$0xf]
  %v27 = vld [vmem:[%s1 + $0x14] sm:$0xf]
  %v28 = vld [vmem:[%s1 + $0x18] sm:$0xf]
  %v29 = vld [vmem:[%s1 + $0x1c] sm:$0xf]
  %v30 = vld [vmem:[%s1 + $0x20] sm:$0xf]
  %v31 = vld [vmem:[%s1 + $0x24] sm:$0xf]
  %v32 = vld [vmem:[%s1 + $0x28] sm:$0xf]
  %v33 = vld [vmem:[%s1 + $0x2c] sm:$0xf]
  %v34 = vld [vmem:[%s1 + $0x30] sm:$0xf]
  %v35 = vld [vmem:[%s1 + $0x34] sm:$0xf]
  %v36 = vld [vmem:[%s1 + $0x38] sm:$0xf]
  %v37 = vld [vmem:[%s1 + $0x3c] sm:$0xf]
  %v38 = vld [vmem:[%s2] sm:$0x1]
  %v40 = vperm.slane %v38, 0
  %v50 = vunpack.c.l.b16 %v14
  %v51 = vunpack.c.l.b16 %v15
  %v52 = vunpack.c.l.b16 %v16
  %v53 = vunpack.c.l.b16 %v17
  %v54 = vunpack.c.l.b16 %v18
  %v55 = vunpack.c.l.b16 %v19
  %v56 = vunpack.c.l.b16 %v20
  %v57 = vunpack.c.l.b16 %v21
  %v58 = vpack.c.b16 %v51, %v50
  %v59 = vpack.c.b16 %v53, %v52
  %v60 = vpack.c.b16 %v55, %v54
  %v61 = vpack.c.b16 %v57, %v56
  %v82 = vunpack.c.l.b16 %v22
  %v83 = vunpack.c.l.b16 %v23
  %v84 = vunpack.c.l.b16 %v24
  %v85 = vunpack.c.l.b16 %v25
  %v86 = vunpack.c.l.b16 %v26
  %v87 = vunpack.c.l.b16 %v27
  %v88 = vunpack.c.l.b16 %v28
  %v89 = vunpack.c.l.b16 %v29
  %v90 = vunpack.c.l.b16 %v30
  %v91 = vunpack.c.l.b16 %v31
  %v92 = vunpack.c.l.b16 %v32
  %v93 = vunpack.c.l.b16 %v33
  %v94 = vunpack.c.l.b16 %v34
  %v95 = vunpack.c.l.b16 %v35
  %v96 = vunpack.c.l.b16 %v36
  %v97 = vunpack.c.l.b16 %v37
  %v98 = vpack.c.b16 %v83, %v82
  %v99 = vpack.c.b16 %v85, %v84
  %v100 = vpack.c.b16 %v87, %v86
  %v101 = vpack.c.b16 %v89, %v88
  %v102 = vpack.c.b16 %v91, %v90
  %v103 = vpack.c.b16 %v93, %v92
  %v104 = vpack.c.b16 %v95, %v94
  %v105 = vpack.c.b16 %v97, %v96
  %114 = vmatpush.bf16.msra.mxu0 %v105
  %115 = vmatpush.bf16.msra.mxu0 %v104
  %116 = vmatpush.bf16.msra.mxu0 %v103
  %117 = vmatpush.bf16.msra.mxu0 %v102
  %118 = vmatpush.bf16.msra.mxu0 %v101
  %119 = vmatpush.bf16.msra.mxu0 %v100
  %120 = vmatpush.bf16.msra.mxu0 %v99
  %121 = vmatpush.bf16.msra.mxu0 %v98
  %122 = vmatmul.bf16.gmra.mxu0 %v58
  %v123 = vpop.f32.mrf.mxu0
  %v124 = vadd.f32 %v40, %v123
  %v125 = vpop.f32.mrf.mxu0
  %v126 = vadd.f32 %v40, %v125
  %127 = vmatmul.bf16.gmra.mxu0 %v59
  %v128 = vpop.f32.mrf.mxu0
  %v129 = vadd.f32 %v40, %v128
  %v130 = vpop.f32.mrf.mxu0
  %v131 = vadd.f32 %v40, %v130
  %132 = vmatmul.bf16.gmra.mxu0 %v60
  %v133 = vpop.f32.mrf.mxu0
  %v134 = vadd.f32 %v40, %v133
  %v135 = vpop.f32.mrf.mxu0
  %v136 = vadd.f32 %v40, %v135
  %137 = vmatmul.bf16.gmra.mxu0 %v61
  %v138 = vpop.f32.mrf.mxu0
  %v139 = vadd.f32 %v40, %v138
  %v140 = vpop.f32.mrf.mxu0
  %v141 = vadd.f32 %v40, %v140
  %142 = vdwg.mxu0
  %v143 = vlaneseq
  %v144 = vand.u32 %v143, 127
  %vm145 = vcmp.lt.s32.totalorder %v144, 16
  %v146 = vsel %vm145, %v124, -1e+30
  %v147 = vsel %vm145, %v126, -1e+30
  %v148 = vsel %vm145, %v129, -1e+30
  %v149 = vsel %vm145, %v131, -1e+30
  %v150 = vsel %vm145, %v134, -1e+30
  %v151 = vsel %vm145, %v136, -1e+30
  %v152 = vsel %vm145, %v139, -1e+30
  %v153 = vsel %vm145, %v141, -1e+30
  %154 = vmax.xlane.f32.xlu0 %v146
  %v155 = vpop.xlane.xlu0 %154
  %156 = vmax.xlane.f32.xlu0 %v147
  %v157 = vpop.xlane.xlu0 %156
  %158 = vmax.xlane.f32.xlu0 %v148
  %v159 = vpop.xlane.xlu0 %158
  %160 = vmax.xlane.f32.xlu0 %v149
  %v161 = vpop.xlane.xlu0 %160
  %162 = vmax.xlane.f32.xlu0 %v150
  %v163 = vpop.xlane.xlu0 %162
  %164 = vmax.xlane.f32.xlu0 %v151
  %v165 = vpop.xlane.xlu0 %164
  %166 = vmax.xlane.f32.xlu0 %v152
  %v167 = vpop.xlane.xlu0 %166
  %168 = vmax.xlane.f32.xlu0 %v153
  %v169 = vpop.xlane.xlu0 %168
  %v170 = vsub.f32 %v146, %v155
  %v171 = vsub.f32 %v147, %v157
  %v172 = vsub.f32 %v148, %v159
  %v173 = vsub.f32 %v149, %v161
  %v174 = vsub.f32 %v150, %v163
  %v175 = vsub.f32 %v151, %v165
  %v176 = vsub.f32 %v152, %v167
  %v177 = vsub.f32 %v153, %v169
  %v178 = vmul.f32 %v170, 1.442695
  %v179 = vpow.pop %v178
  %v180 = vmul.f32 %v171, 1.442695
  %v181 = vpow.pop %v180
  %v182 = vmul.f32 %v172, 1.442695
  %v183 = vpow.pop %v182
  %v184 = vmul.f32 %v173, 1.442695
  %v185 = vpow.pop %v184
  %v186 = vmul.f32 %v174, 1.442695
  %v187 = vpow.pop %v186
  %v188 = vmul.f32 %v175, 1.442695
  %v189 = vpow.pop %v188
  %v190 = vmul.f32 %v176, 1.442695
  %v191 = vpow.pop %v190
  %v192 = vmul.f32 %v177, 1.442695
  %v193 = vpow.pop %v192
  %194 = vadd.xlane.f32.xlu0 %v179
  %v195 = vpop.xlane.xlu0 %194
  %196 = vadd.xlane.f32.xlu0 %v181
  %v197 = vpop.xlane.xlu0 %196
  %198 = vadd.xlane.f32.xlu0 %v183
  %v199 = vpop.xlane.xlu0 %198
  %200 = vadd.xlane.f32.xlu0 %v185
  %v201 = vpop.xlane.xlu0 %200
  %202 = vadd.xlane.f32.xlu0 %v187
  %v203 = vpop.xlane.xlu0 %202
  %204 = vadd.xlane.f32.xlu0 %v189
  %v205 = vpop.xlane.xlu0 %204
  %206 = vadd.xlane.f32.xlu0 %v191
  %v207 = vpop.xlane.xlu0 %206
  %208 = vadd.xlane.f32.xlu0 %v193
  %v209 = vpop.xlane.xlu0 %208
  %v210 = vlog2.pop %v195
  %v211 = vmul.f32 %v210, 0.6931472
  %v212 = vlog2.pop %v197
  %v213 = vmul.f32 %v212, 0.6931472
  %v214 = vlog2.pop %v199
  %v215 = vmul.f32 %v214, 0.6931472
  %v216 = vlog2.pop %v201
  %v217 = vmul.f32 %v216, 0.6931472
  %v218 = vlog2.pop %v203
  %v219 = vmul.f32 %v218, 0.6931472
  %v220 = vlog2.pop %v205
  %v221 = vmul.f32 %v220, 0.6931472
  %v222 = vlog2.pop %v207
  %v223 = vmul.f32 %v222, 0.6931472
  %v224 = vlog2.pop %v209
  %v225 = vmul.f32 %v224, 0.6931472
  %v226 = vsub.f32 %v170, %v211
  %v227 = vsub.f32 %v171, %v213
  %v228 = vsub.f32 %v172, %v215
  %v229 = vsub.f32 %v173, %v217
  %v230 = vsub.f32 %v174, %v219
  %v231 = vsub.f32 %v175, %v221
  %v232 = vsub.f32 %v176, %v223
  %v233 = vsub.f32 %v177, %v225
  %234 = vst [vmem:[%s3] sm:$0xff] %v226
  %235 = vst [vmem:[%s3 + $0x8] sm:$0xff] %v227
  %236 = vst [vmem:[%s3 + $0x10] sm:$0xff] %v228
  %237 = vst [vmem:[%s3 + $0x18] sm:$0xff] %v229
  %238 = vst [vmem:[%s3 + $0x20] sm:$0xff] %v230
  %239 = vst [vmem:[%s3 + $0x28] sm:$0xff] %v231
  %240 = vst [vmem:[%s3 + $0x30] sm:$0xff] %v232
  %241 = vst [vmem:[%s3 + $0x38] sm:$0xff] %v233
  // Predicated region
  $region14: #{deepspeech2_forward.13} parent=0 // pred_check
    _
  $region15: #{deepspeech2_forward.13} parent=0 // pred_check_branch
    %243 = sbr.rel (0) target = $region17
  $region16: #{deepspeech2_forward.13} parent=0 // pred_region
    _
  $region17: #{deepspeech2_forward.13} parent=0 // pred_fallthru
    _
  // Predicated region
  $region18: #{deepspeech2_forward.13} parent=0 // pred_check
    _
  $region19: #{deepspeech2_forward.13} parent=0 // pred_check_branch
    %245 = sbr.rel (0) target = $region21
  $region20: #{deepspeech2_forward.13} parent=0 // pred_region
    _
  $region21: #{deepspeech2_forward.13} parent=0 // pred_fallthru
    _

</llo_original>
